<compile_context>
chip_gen: v7x
topology: tpu7x:2x2x1
jax: 0.10.0
libtpu: 0.0.40
codegen_flags: <defaults>
</compile_context>

<pallas_src>
import jax
import jax.numpy as jnp
from jax.experimental import pallas as pl
from jax.experimental.pallas import tpu as pltpu

# Small synthetic configuration consistent with the module's __init__ shapes.
VOCAB = 100          # stand-in for tokenizer.vocab_size
EMB = 32             # embedding_dim
HID = 32             # hidden_dim
NUM_LAYERS = 2
NUM_CLASSES = 5
D2 = 2 * HID         # bidirectional feature dim
OUT_PAD = 128        # lane-dense logits slab; sliced to NUM_CLASSES in the wrapper


# ----------------------------------------------------------------------------
# Fused forward kernel: 2x bidirectional LSTM layers + attention + MLP head.
# Packed weight layout (done once in pack_params):
#   * gate columns reordered to i|f|o|g per direction,
#   * input-projection weights of both directions stacked -> (Din, 8H),
#   * recurrent weights block-diagonal [whh_f 0; 0 whh_b]   -> (2H, 8H),
#   * biases = b_ih + b_hh, fwd|bwd stacked -> (1, 8H),
#   * fc3 padded to a lane-dense 128-wide output.
# ----------------------------------------------------------------------------
def _fused_forward_kernel(
    x_ref,                                       # (T, TB, E)  time-major embedded input (bf16)
    wih0_ref, whh0_ref, b0_ref,                  # layer 0: (E,8H) bf16, (2H,8H) bf16, (1,8H) f32
    wih1_ref, whh1_ref, b1_ref,                  # layer 1: (2H,8H), (2H,8H), (1,8H)
    wa1_ref, ba1_ref, wa2_ref, ba2_ref,          # attention: (2H,H) bf16, (1,H), (1,H), (1,1)
    w1_ref, fb1_ref, w2_ref, fb2_ref, w3_ref, fb3_ref,   # fc1/fc2/fc3 (fc3 lane-padded)
    out_ref,                                     # (TB, OUT_PAD) f32
    lo_sc,                                       # (T, TB, 2H) f32 — per-layer LSTM outputs
):
    T, Bt, E = x_ref.shape
    H = HID
    H3, H4, H8 = 3 * HID, 4 * HID, 8 * HID

    def cell(gates, c):
        # packed gate order i | f | o | g -> one sigmoid over 3H lanes + one tanh over H.
        sg = jax.nn.sigmoid(gates[:, :H3])
        g = jnp.tanh(gates[:, H3:H4])
        i, f, o = sg[:, :H], sg[:, H:2 * H], sg[:, 2 * H:H3]
        c_new = f * c + i * g
        return o * jnp.tanh(c_new), c_new

    def bilstm_layer(x_flat, wih_ref_, whh_ref_, b_ref_):
        # Hoisted input projection: ONE (T*Bt, Din)@(Din, 8H) bf16 MXU pass computes
        # every timestep's input gates for BOTH directions; kept in registers.
        gx = jnp.dot(x_flat.astype(jnp.bfloat16), wih_ref_[...],
                     preferred_element_type=jnp.float32) + b_ref_[...]
        gx = gx.reshape(T, Bt, H8)
        whh = whh_ref_[...]                        # block-diag [whh_f 0; 0 whh_b], (2H, 8H)

        # Recurrent state in vregs (loop-carried values), not scratch refs.
        h_f = jnp.zeros((Bt, H), jnp.float32)
        c_f = jnp.zeros((Bt, H), jnp.float32)
        h_b = jnp.zeros((Bt, H), jnp.float32)
        c_b = jnp.zeros((Bt, H), jnp.float32)

        # Fully unrolled at trace time (T is small here).
        # TODO(synk): for long sequences switch to lax.fori_loop with a bounded
        # unroll factor (4-8) and a time-chunked gx to cap code size / vreg pressure.
        for t in range(T):
            tr = T - 1 - t
            # ONE block-diagonal recurrent matmul per step covers both directions.
            rec = jnp.dot(
                jnp.concatenate([h_f, h_b], axis=-1).astype(jnp.bfloat16), whh,
                preferred_element_type=jnp.float32)                      # (Bt, 8H)
            h_f, c_f = cell(gx[t][:, :H4] + rec[:, :H4], c_f)            # fwd @ time t
            h_b, c_b = cell(gx[tr][:, H4:] + rec[:, H4:], c_b)           # bwd @ time T-1-t
            # fwd features -> lanes [0,H), bwd -> lanes [H,2H): no final concat pass.
            lo_sc[t, :, :H] = h_f
            lo_sc[tr, :, H:] = h_b

    bilstm_layer(x_ref[...].reshape(T * Bt, E), wih0_ref, whh0_ref, b0_ref)
    # Layer-2's input projection reads lo_sc once (a value), then its own outputs
    # overwrite the same scratch buffer.
    bilstm_layer(lo_sc[...].reshape(T * Bt, D2), wih1_ref, whh1_ref, b1_ref)

    # ---- attention + 3-layer MLP head (batch-vectorized, f32 elementwise math) ----
    lo = lo_sc[...]                                                      # (T, Bt, 2H)
    lo_flat = lo.reshape(T * Bt, D2)
    a1 = jnp.tanh(jnp.dot(lo_flat.astype(jnp.bfloat16), wa1_ref[...],
                          preferred_element_type=jnp.float32) + ba1_ref[...])
    s = jnp.sum(a1 * wa2_ref[...], axis=1, keepdims=True) + ba2_ref[...]  # (T*Bt, 1)
    s3 = s.reshape(T, Bt, 1)
    m = jnp.max(s3, axis=0, keepdims=True)
    e = jnp.exp(s3 - m)
    attn = e * pl.reciprocal(jnp.sum(e, axis=0, keepdims=True), approx=True)
    ctx = jnp.sum(attn * lo, axis=0)                                      # (Bt, 2H)

    h1 = jnp.maximum(jnp.dot(ctx.astype(jnp.bfloat16), w1_ref[...],
                             preferred_element_type=jnp.float32) + fb1_ref[...], 0.0)
    h2 = jnp.maximum(jnp.dot(h1.astype(jnp.bfloat16), w2_ref[...],
                             preferred_element_type=jnp.float32) + fb2_ref[...], 0.0)
    out_ref[...] = jnp.dot(h2.astype(jnp.bfloat16), w3_ref[...],
                           preferred_element_type=jnp.float32) + fb3_ref[...]


# ----------------------------------------------------------------------------
# Parameters (deterministic synthetic init, PyTorch weight layout: (out, in)).
# ----------------------------------------------------------------------------
def init_params(key):
    keys = iter(jax.random.split(key, 64))

    def rnd(shape, scale=0.1):
        return jax.random.normal(next(keys), shape, jnp.float32) * scale

    p = {"emb": rnd((VOCAB, EMB)), "lstm": []}
    for layer in range(NUM_LAYERS):
        din = EMB if layer == 0 else D2
        dirs = []
        for _direction in range(2):  # forward, reverse
            w_ih = rnd((4 * HID, din))
            w_hh = rnd((4 * HID, HID))
            b = (rnd((4 * HID,)) + rnd((4 * HID,))).reshape(1, 4 * HID)  # b_ih + b_hh
            dirs.append((w_ih, w_hh, b))
        p["lstm"].append(dirs)
    p["wa1"], p["ba1"] = rnd((HID, D2)), rnd((1, HID))
    p["wa2"], p["ba2"] = rnd((1, HID)), rnd((1, 1))
    p["w1"], p["b1"] = rnd((HID, D2)), rnd((1, HID))
    p["w2"], p["b2"] = rnd((HID // 2, HID)), rnd((1, HID // 2))
    p["w3"], p["b3"] = rnd((NUM_CLASSES, HID // 2)), rnd((1, NUM_CLASSES))
    return p


def pack_params(p):
    """One-time re-layout: transpose, reorder gate columns i,f,g,o -> i,f,o,g,
    stack fwd|bwd input projections, build the block-diagonal recurrent weight,
    pad fc3 lane-dense, and store all MXU operands in bf16 (biases stay f32)."""
    H = HID
    MXU_DT = jnp.bfloat16   # matmul-operand dtype; elementwise/EUP math stays f32

    def reorder_rows(w):  # (4H, X) in PyTorch gate-row order i,f,g,o
        return jnp.concatenate([w[:H], w[H:2 * H], w[3 * H:4 * H], w[2 * H:3 * H]],
                               axis=0)

    pk = {"emb": p["emb"].astype(MXU_DT)}
    for layer in range(NUM_LAYERS):
        wihs, whhs, bs = [], [], []
        for d in range(2):
            w_ih, w_hh, b = p["lstm"][layer][d]
            wihs.append(reorder_rows(w_ih).T)                               # (Din, 4H)
            whhs.append(reorder_rows(w_hh).T)                               # (H, 4H)
            bs.append(reorder_rows(b[0].reshape(4 * H, 1)).reshape(1, 4 * H))
        pk[f"wih{layer}"] = jnp.concatenate(wihs, axis=1).astype(MXU_DT)    # (Din, 8H)
        z = jnp.zeros((H, 4 * H), jnp.float32)
        pk[f"whh{layer}"] = jnp.concatenate(                                # (2H, 8H)
            [jnp.concatenate([whhs[0], z], axis=1),
             jnp.concatenate([z, whhs[1]], axis=1)], axis=0).astype(MXU_DT)
        pk[f"b{layer}"] = jnp.concatenate(bs, axis=1)                       # (1, 8H) f32
    pk["wa1"], pk["ba1"] = p["wa1"].T.astype(MXU_DT), p["ba1"]   # (2H,H), (1,H)
    pk["wa2"], pk["ba2"] = p["wa2"], p["ba2"]                    # elementwise use -> f32
    pk["w1"], pk["fb1"] = p["w1"].T.astype(MXU_DT), p["b1"]      # (2H,H), (1,H)
    pk["w2"], pk["fb2"] = p["w2"].T.astype(MXU_DT), p["b2"]      # (H,H/2), (1,H/2)
    pk["w3"] = jnp.pad(p["w3"].T,
                       ((0, 0), (0, OUT_PAD - NUM_CLASSES))).astype(MXU_DT)  # (H/2,128)
    pk["fb3"] = jnp.pad(p["b3"], ((0, 0), (0, OUT_PAD - NUM_CLASSES)))       # (1,128)
    return pk


# ----------------------------------------------------------------------------
# Full forward pass: one embedding gather (already in the kernel's time-major,
# batch-padded layout) + one fused pallas_call with a parallel batch grid.
# ----------------------------------------------------------------------------
def forward(pk, input_ids, attention_mask):
    del attention_mask  # unused by the PyTorch forward; dropout = inference no-op
    B, T = input_ids.shape
    Bp = ((B + 7) // 8) * 8           # sublane-align the batch
    TB = min(Bp, 128)                 # batch tile per grid step (fills both v7x TCs at scale)
    Bp = ((Bp + TB - 1) // TB) * TB
    grid = (Bp // TB,)

    ids = input_ids
    if Bp != B:
        ids = jnp.pad(ids, ((0, Bp - B), (0, 0)))
    # Gather emits the time-major padded (T, Bp, E) bf16 layout directly.
    # TODO(synk): move the gather in-kernel via scalar-prefetched ids + pl.Element rows.
    x = jnp.take(pk["emb"], ids.T, axis=0)            # (T, Bp, E)

    def whole(a):                                     # weights: VMEM-resident, grid-invariant
        n = a.ndim
        return pl.BlockSpec(a.shape, lambda i: (0,) * n)

    weights = (pk["wih0"], pk["whh0"], pk["b0"],
               pk["wih1"], pk["whh1"], pk["b1"],
               pk["wa1"], pk["ba1"], pk["wa2"], pk["ba2"],
               pk["w1"], pk["fb1"], pk["w2"], pk["fb2"], pk["w3"], pk["fb3"])

    in_specs = ([pl.BlockSpec((T, TB, EMB), lambda i: (0, i, 0))]
                + [whole(w) for w in weights])

    out = pl.pallas_call(
        _fused_forward_kernel,
        out_shape=jax.ShapeDtypeStruct((Bp, OUT_PAD), jnp.float32),
        grid_spec=pltpu.PrefetchScalarGridSpec(
            num_scalar_prefetch=0,
            grid=grid,
            in_specs=in_specs,
            out_specs=pl.BlockSpec((TB, OUT_PAD), lambda i: (i, 0)),
            # Only remaining scratch: the per-layer LSTM outputs (reused by both
            # layers and the head).  ~T*TB*2H*4 bytes — well inside v7x's 64 MiB
            # at these tile sizes.
            scratch_shapes=[pltpu.VMEM((T, TB, D2), jnp.float32)],
        ),
        compiler_params=pltpu.CompilerParams(
            dimension_semantics=("parallel",),
        ),
    )(x, *weights)
    return out[:B, :NUM_CLASSES]


# Pure-JAX f32 reference for correctness checking (PyTorch-layout params).
def reference_forward(params, input_ids, attention_mask):
    del attention_mask
    emb = params["emb"][input_ids]                        # (B, T, E)
    x = emb
    for layer in range(NUM_LAYERS):
        outs = []
        for d in range(2):
            w_ih, w_hh, b = params["lstm"][layer][d]
            xi = x if d == 0 else x[:, ::-1]
            B, T, _ = xi.shape
            h = jnp.zeros((B, HID), jnp.float32)
            c = jnp.zeros((B, HID), jnp.float32)
            hs = []
            for t in range(T):
                gates = xi[:, t] @ w_ih.T + h @ w_hh.T + b[0]
                i = jax.nn.sigmoid(gates[:, :HID])
                f = jax.nn.sigmoid(gates[:, HID:2 * HID])
                g = jnp.tanh(gates[:, 2 * HID:3 * HID])
                o = jax.nn.sigmoid(gates[:, 3 * HID:4 * HID])
                c = f * c + i * g
                h = o * jnp.tanh(c)
                hs.append(h)
            out = jnp.stack(hs, axis=1)
            if d == 1:
                out = out[:, ::-1]
            outs.append(out)
        x = jnp.concatenate(outs, axis=-1)
    lo = x                                                # (B, T, 2H)
    a1 = jnp.tanh(lo @ params["wa1"].T + params["ba1"][0])
    s = a1 @ params["wa2"].T + params["ba2"][0]           # (B, T, 1)
    attn = jax.nn.softmax(s, axis=1)
    ctx = jnp.sum(attn * lo, axis=1)                      # (B, 2H)
    h1 = jax.nn.relu(ctx @ params["w1"].T + params["b1"][0])
    h2 = jax.nn.relu(h1 @ params["w2"].T + params["b2"][0])
    return h2 @ params["w3"].T + params["b3"][0]


if __name__ == "__main__":
    key = jax.random.PRNGKey(0)
    pkey, ikey = jax.random.split(key)
    params = init_params(pkey)
    packed = pack_params(params)          # one-time re-layout (outside jit)

    B, T = 2, 8
    input_ids = jax.random.randint(ikey, (B, T), 0, VOCAB, dtype=jnp.int32)
    attention_mask = jnp.ones((B, T), jnp.int32)

    logits = jax.jit(forward)(packed, input_ids, attention_mask)
    logits = jax.block_until_ready(logits)

    ref = reference_forward(params, input_ids, attention_mask)
    assert logits.shape == (B, NUM_CLASSES)
    # Kernel uses bf16 MXU operands (f32 accumulation) + approx reciprocal in the
    # softmax, so compare against the pure-f32 reference with a loosened tolerance.
    assert jnp.allclose(logits, ref, rtol=2e-2, atol=2e-2), (logits, ref)

    print("KERNEL_OK")
</pallas_src>

<mosaic_0001>
module attributes {stable_mosaic.version = 11 : i64} {
  func.func @_fused_forward_kernel(%arg0: i32, %arg1: memref<8x8x32xbf16, #tpu.memory_space<vmem>>, %arg2: memref<32x256xbf16, #tpu.memory_space<vmem>>, %arg3: memref<64x256xbf16, #tpu.memory_space<vmem>>, %arg4: memref<1x256xf32, #tpu.memory_space<vmem>>, %arg5: memref<64x256xbf16, #tpu.memory_space<vmem>>, %arg6: memref<64x256xbf16, #tpu.memory_space<vmem>>, %arg7: memref<1x256xf32, #tpu.memory_space<vmem>>, %arg8: memref<64x32xbf16, #tpu.memory_space<vmem>>, %arg9: memref<1x32xf32, #tpu.memory_space<vmem>>, %arg10: memref<1x32xf32, #tpu.memory_space<vmem>>, %arg11: memref<1x1xf32, #tpu.memory_space<vmem>>, %arg12: memref<64x32xbf16, #tpu.memory_space<vmem>>, %arg13: memref<1x32xf32, #tpu.memory_space<vmem>>, %arg14: memref<32x16xbf16, #tpu.memory_space<vmem>>, %arg15: memref<1x16xf32, #tpu.memory_space<vmem>>, %arg16: memref<16x128xbf16, #tpu.memory_space<vmem>>, %arg17: memref<1x128xf32, #tpu.memory_space<vmem>>, %arg18: memref<8x128xf32, #tpu.memory_space<vmem>>, %arg19: memref<8x8x64xf32, #tpu.memory_space<vmem>>) attributes {dimension_semantics = [#tpu.dimension_semantics<parallel>], iteration_bounds = array<i64: 1>, scalar_prefetch = 0 : i64, scratch_operands = 1 : i64, tpu.core_type = #tpu.core_type<tc>, window_params = [{transform_indices = @transform_0, window_bounds = array<i64: 8, 8, 32>}, {pipeline_mode = #tpu.pipeline_mode<synchronous>, transform_indices = @transform_1, window_bounds = array<i64: 32, 256>}, {pipeline_mode = #tpu.pipeline_mode<synchronous>, transform_indices = @transform_2, window_bounds = array<i64: 64, 256>}, {pipeline_mode = #tpu.pipeline_mode<synchronous>, transform_indices = @transform_3, window_bounds = array<i64: 1, 256>}, {pipeline_mode = #tpu.pipeline_mode<synchronous>, transform_indices = @transform_4, window_bounds = array<i64: 64, 256>}, {pipeline_mode = #tpu.pipeline_mode<synchronous>, transform_indices = @transform_5, window_bounds = array<i64: 64, 256>}, {pipeline_mode = #tpu.pipeline_mode<synchronous>, transform_indices = @transform_6, window_bounds = array<i64: 1, 256>}, {pipeline_mode = #tpu.pipeline_mode<synchronous>, transform_indices = @transform_7, window_bounds = array<i64: 64, 32>}, {pipeline_mode = #tpu.pipeline_mode<synchronous>, transform_indices = @transform_8, window_bounds = array<i64: 1, 32>}, {pipeline_mode = #tpu.pipeline_mode<synchronous>, transform_indices = @transform_9, window_bounds = array<i64: 1, 32>}, {pipeline_mode = #tpu.pipeline_mode<synchronous>, transform_indices = @transform_10, window_bounds = array<i64: 1, 1>}, {pipeline_mode = #tpu.pipeline_mode<synchronous>, transform_indices = @transform_11, window_bounds = array<i64: 64, 32>}, {pipeline_mode = #tpu.pipeline_mode<synchronous>, transform_indices = @transform_12, window_bounds = array<i64: 1, 32>}, {pipeline_mode = #tpu.pipeline_mode<synchronous>, transform_indices = @transform_13, window_bounds = array<i64: 32, 16>}, {pipeline_mode = #tpu.pipeline_mode<synchronous>, transform_indices = @transform_14, window_bounds = array<i64: 1, 16>}, {pipeline_mode = #tpu.pipeline_mode<synchronous>, transform_indices = @transform_15, window_bounds = array<i64: 16, 128>}, {pipeline_mode = #tpu.pipeline_mode<synchronous>, transform_indices = @transform_16, window_bounds = array<i64: 1, 128>}, {transform_indices = @transform_17, window_bounds = array<i64: 8, 128>}]} {
    %c0 = arith.constant 0 : index
    %c0_0 = arith.constant 0 : index
    %c0_1 = arith.constant 0 : index
    %0 = vector.load %arg1[%c0, %c0_0, %c0_1] : memref<8x8x32xbf16, #tpu.memory_space<vmem>>, vector<8x8x32xbf16>
    %1 = vector.shape_cast %0 : vector<8x8x32xbf16> to vector<64x32xbf16>
    %c0_2 = arith.constant 0 : index
    %c0_3 = arith.constant 0 : index
    %2 = vector.load %arg2[%c0_2, %c0_3] : memref<32x256xbf16, #tpu.memory_space<vmem>>, vector<32x256xbf16>
    %cst = arith.constant dense<0.000000e+00> : vector<64x256xf32>
    %3 = tpu.matmul %1, %2, %cst {dimension_numbers = #tpu.dot_dimension_numbers<[1], [0], [0], [1], [0, 0, 1, 1], [], []>} : vector<64x32xbf16>, vector<32x256xbf16>, vector<64x256xf32> -> vector<64x256xf32>
    %c0_4 = arith.constant 0 : index
    %c0_5 = arith.constant 0 : index
    %4 = vector.load %arg4[%c0_4, %c0_5] : memref<1x256xf32, #tpu.memory_space<vmem>>, vector<1x256xf32>
    %5 = vector.broadcast %4 : vector<1x256xf32> to vector<64x256xf32>
    %6 = arith.addf %3, %5 : vector<64x256xf32>
    %7 = vector.shape_cast %6 : vector<64x256xf32> to vector<8x8x256xf32>
    %c0_6 = arith.constant 0 : index
    %c0_7 = arith.constant 0 : index
    %8 = vector.load %arg3[%c0_6, %c0_7] : memref<64x256xbf16, #tpu.memory_space<vmem>>, vector<64x256xbf16>
    %cst_8 = arith.constant 0.000000e+00 : f32
    %9 = vector.broadcast %cst_8 : f32 to vector<8x32xf32>
    %cst_9 = arith.constant 0.000000e+00 : f32
    %10 = vector.broadcast %cst_9 : f32 to vector<8x32xf32>
    %cst_10 = arith.constant 0.000000e+00 : f32
    %11 = vector.broadcast %cst_10 : f32 to vector<8x32xf32>
    %cst_11 = arith.constant 0.000000e+00 : f32
    %12 = vector.broadcast %cst_11 : f32 to vector<8x32xf32>
    %13 = tpu.concatenate %9, %11 in 1 : vector<8x32xf32>, vector<8x32xf32> -> vector<8x64xf32>
    %14 = arith.truncf %13 : vector<8x64xf32> to vector<8x64xbf16>
    %cst_12 = arith.constant dense<0.000000e+00> : vector<8x256xf32>
    %15 = tpu.matmul %14, %8, %cst_12 {dimension_numbers = #tpu.dot_dimension_numbers<[1], [0], [0], [1], [0, 0, 1, 1], [], []>} : vector<8x64xbf16>, vector<64x256xbf16>, vector<8x256xf32> -> vector<8x256xf32>
    %16 = vector.extract_strided_slice %7 {offsets = [0, 0, 0], sizes = [1, 8, 256], strides = [1, 1, 1]} : vector<8x8x256xf32> to vector<1x8x256xf32>
    %17 = vector.shape_cast %16 : vector<1x8x256xf32> to vector<8x256xf32>
    %18 = vector.extract_strided_slice %17 {offsets = [0, 0], sizes = [8, 128], strides = [1, 1]} : vector<8x256xf32> to vector<8x128xf32>
    %19 = vector.extract_strided_slice %15 {offsets = [0, 0], sizes = [8, 128], strides = [1, 1]} : vector<8x256xf32> to vector<8x128xf32>
    %20 = arith.addf %18, %19 : vector<8x128xf32>
    %21 = vector.extract_strided_slice %20 {offsets = [0, 0], sizes = [8, 96], strides = [1, 1]} : vector<8x128xf32> to vector<8x96xf32>
    %22 = arith.negf %21 : vector<8x96xf32>
    %23 = math.exp %22 : vector<8x96xf32>
    %cst_13 = arith.constant 1.000000e+00 : f32
    %24 = vector.broadcast %cst_13 : f32 to vector<8x96xf32>
    %25 = arith.addf %24, %23 : vector<8x96xf32>
    %26 = arith.divf %24, %25 : vector<8x96xf32>
    %27 = vector.extract_strided_slice %20 {offsets = [0, 96], sizes = [8, 32], strides = [1, 1]} : vector<8x128xf32> to vector<8x32xf32>
    %28 = math.tanh %27 : vector<8x32xf32>
    %29 = vector.extract_strided_slice %26 {offsets = [0, 0], sizes = [8, 32], strides = [1, 1]} : vector<8x96xf32> to vector<8x32xf32>
    %30 = vector.extract_strided_slice %26 {offsets = [0, 32], sizes = [8, 32], strides = [1, 1]} : vector<8x96xf32> to vector<8x32xf32>
    %31 = vector.extract_strided_slice %26 {offsets = [0, 64], sizes = [8, 32], strides = [1, 1]} : vector<8x96xf32> to vector<8x32xf32>
    %32 = arith.mulf %30, %10 : vector<8x32xf32>
    %33 = arith.mulf %29, %28 : vector<8x32xf32>
    %34 = arith.addf %32, %33 : vector<8x32xf32>
    %35 = math.tanh %34 : vector<8x32xf32>
    %36 = arith.mulf %31, %35 : vector<8x32xf32>
    %37 = vector.extract_strided_slice %7 {offsets = [7, 0, 0], sizes = [1, 8, 256], strides = [1, 1, 1]} : vector<8x8x256xf32> to vector<1x8x256xf32>
    %38 = vector.shape_cast %37 : vector<1x8x256xf32> to vector<8x256xf32>
    %39 = vector.extract_strided_slice %38 {offsets = [0, 128], sizes = [8, 128], strides = [1, 1]} : vector<8x256xf32> to vector<8x128xf32>
    %40 = vector.extract_strided_slice %15 {offsets = [0, 128], sizes = [8, 128], strides = [1, 1]} : vector<8x256xf32> to vector<8x128xf32>
    %41 = arith.addf %39, %40 : vector<8x128xf32>
    %42 = vector.extract_strided_slice %41 {offsets = [0, 0], sizes = [8, 96], strides = [1, 1]} : vector<8x128xf32> to vector<8x96xf32>
    %43 = arith.negf %42 : vector<8x96xf32>
    %44 = math.exp %43 : vector<8x96xf32>
    %cst_14 = arith.constant 1.000000e+00 : f32
    %45 = vector.broadcast %cst_14 : f32 to vector<8x96xf32>
    %46 = arith.addf %45, %44 : vector<8x96xf32>
    %47 = arith.divf %45, %46 : vector<8x96xf32>
    %48 = vector.extract_strided_slice %41 {offsets = [0, 96], sizes = [8, 32], strides = [1, 1]} : vector<8x128xf32> to vector<8x32xf32>
    %49 = math.tanh %48 : vector<8x32xf32>
    %50 = vector.extract_strided_slice %47 {offsets = [0, 0], sizes = [8, 32], strides = [1, 1]} : vector<8x96xf32> to vector<8x32xf32>
    %51 = vector.extract_strided_slice %47 {offsets = [0, 32], sizes = [8, 32], strides = [1, 1]} : vector<8x96xf32> to vector<8x32xf32>
    %52 = vector.extract_strided_slice %47 {offsets = [0, 64], sizes = [8, 32], strides = [1, 1]} : vector<8x96xf32> to vector<8x32xf32>
    %53 = arith.mulf %51, %12 : vector<8x32xf32>
    %54 = arith.mulf %50, %49 : vector<8x32xf32>
    %55 = arith.addf %53, %54 : vector<8x32xf32>
    %56 = math.tanh %55 : vector<8x32xf32>
    %57 = arith.mulf %52, %56 : vector<8x32xf32>
    %c0_15 = arith.constant 0 : index
    %c0_16 = arith.constant 0 : index
    %c0_17 = arith.constant 0 : index
    %58 = vector.load %arg19[%c0_15, %c0_16, %c0_17] : memref<8x8x64xf32, #tpu.memory_space<vmem>>, vector<1x8x32xf32>
    %59 = vector.shape_cast %58 : vector<1x8x32xf32> to vector<8x32xf32>
    %60 = vector.shape_cast %36 : vector<8x32xf32> to vector<1x8x32xf32>
    tpu.vector_store %arg19[%c0_15, %c0_16, %c0_17], %60 {strides = array<i32>} : memref<8x8x64xf32, #tpu.memory_space<vmem>>, vector<1x8x32xf32>,
    %c7 = arith.constant 7 : index
    %c0_18 = arith.constant 0 : index
    %c32 = arith.constant 32 : index
    %61 = vector.load %arg19[%c7, %c0_18, %c32] : memref<8x8x64xf32, #tpu.memory_space<vmem>>, vector<1x8x32xf32>
    %62 = vector.shape_cast %61 : vector<1x8x32xf32> to vector<8x32xf32>
    %63 = vector.shape_cast %57 : vector<8x32xf32> to vector<1x8x32xf32>
    tpu.vector_store %arg19[%c7, %c0_18, %c32], %63 {strides = array<i32>} : memref<8x8x64xf32, #tpu.memory_space<vmem>>, vector<1x8x32xf32>,
    %64 = tpu.concatenate %36, %57 in 1 : vector<8x32xf32>, vector<8x32xf32> -> vector<8x64xf32>
    %65 = arith.truncf %64 : vector<8x64xf32> to vector<8x64xbf16>
    %cst_19 = arith.constant dense<0.000000e+00> : vector<8x256xf32>
    %66 = tpu.matmul %65, %8, %cst_19 {dimension_numbers = #tpu.dot_dimension_numbers<[1], [0], [0], [1], [0, 0, 1, 1], [], []>} : vector<8x64xbf16>, vector<64x256xbf16>, vector<8x256xf32> -> vector<8x256xf32>
    %67 = vector.extract_strided_slice %7 {offsets = [1, 0, 0], sizes = [1, 8, 256], strides = [1, 1, 1]} : vector<8x8x256xf32> to vector<1x8x256xf32>
    %68 = vector.shape_cast %67 : vector<1x8x256xf32> to vector<8x256xf32>
    %69 = vector.extract_strided_slice %68 {offsets = [0, 0], sizes = [8, 128], strides = [1, 1]} : vector<8x256xf32> to vector<8x128xf32>
    %70 = vector.extract_strided_slice %66 {offsets = [0, 0], sizes = [8, 128], strides = [1, 1]} : vector<8x256xf32> to vector<8x128xf32>
    %71 = arith.addf %69, %70 : vector<8x128xf32>
    %72 = vector.extract_strided_slice %71 {offsets = [0, 0], sizes = [8, 96], strides = [1, 1]} : vector<8x128xf32> to vector<8x96xf32>
    %73 = arith.negf %72 : vector<8x96xf32>
    %74 = math.exp %73 : vector<8x96xf32>
    %cst_20 = arith.constant 1.000000e+00 : f32
    %75 = vector.broadcast %cst_20 : f32 to vector<8x96xf32>
    %76 = arith.addf %75, %74 : vector<8x96xf32>
    %77 = arith.divf %75, %76 : vector<8x96xf32>
    %78 = vector.extract_strided_slice %71 {offsets = [0, 96], sizes = [8, 32], strides = [1, 1]} : vector<8x128xf32> to vector<8x32xf32>
    %79 = math.tanh %78 : vector<8x32xf32>
    %80 = vector.extract_strided_slice %77 {offsets = [0, 0], sizes = [8, 32], strides = [1, 1]} : vector<8x96xf32> to vector<8x32xf32>
    %81 = vector.extract_strided_slice %77 {offsets = [0, 32], sizes = [8, 32], strides = [1, 1]} : vector<8x96xf32> to vector<8x32xf32>
    %82 = vector.extract_strided_slice %77 {offsets = [0, 64], sizes = [8, 32], strides = [1, 1]} : vector<8x96xf32> to vector<8x32xf32>
    %83 = arith.mulf %81, %34 : vector<8x32xf32>
    %84 = arith.mulf %80, %79 : vector<8x32xf32>
    %85 = arith.addf %83, %84 : vector<8x32xf32>
    %86 = math.tanh %85 : vector<8x32xf32>
    %87 = arith.mulf %82, %86 : vector<8x32xf32>
    %88 = vector.extract_strided_slice %7 {offsets = [6, 0, 0], sizes = [1, 8, 256], strides = [1, 1, 1]} : vector<8x8x256xf32> to vector<1x8x256xf32>
    %89 = vector.shape_cast %88 : vector<1x8x256xf32> to vector<8x256xf32>
    %90 = vector.extract_strided_slice %89 {offsets = [0, 128], sizes = [8, 128], strides = [1, 1]} : vector<8x256xf32> to vector<8x128xf32>
    %91 = vector.extract_strided_slice %66 {offsets = [0, 128], sizes = [8, 128], strides = [1, 1]} : vector<8x256xf32> to vector<8x128xf32>
    %92 = arith.addf %90, %91 : vector<8x128xf32>
    %93 = vector.extract_strided_slice %92 {offsets = [0, 0], sizes = [8, 96], strides = [1, 1]} : vector<8x128xf32> to vector<8x96xf32>
    %94 = arith.negf %93 : vector<8x96xf32>
    %95 = math.exp %94 : vector<8x96xf32>
    %cst_21 = arith.constant 1.000000e+00 : f32
    %96 = vector.broadcast %cst_21 : f32 to vector<8x96xf32>
    %97 = arith.addf %96, %95 : vector<8x96xf32>
    %98 = arith.divf %96, %97 : vector<8x96xf32>
    %99 = vector.extract_strided_slice %92 {offsets = [0, 96], sizes = [8, 32], strides = [1, 1]} : vector<8x128xf32> to vector<8x32xf32>
    %100 = math.tanh %99 : vector<8x32xf32>
    %101 = vector.extract_strided_slice %98 {offsets = [0, 0], sizes = [8, 32], strides = [1, 1]} : vector<8x96xf32> to vector<8x32xf32>
    %102 = vector.extract_strided_slice %98 {offsets = [0, 32], sizes = [8, 32], strides = [1, 1]} : vector<8x96xf32> to vector<8x32xf32>
    %103 = vector.extract_strided_slice %98 {offsets = [0, 64], sizes = [8, 32], strides = [1, 1]} : vector<8x96xf32> to vector<8x32xf32>
    %104 = arith.mulf %102, %55 : vector<8x32xf32>
    %105 = arith.mulf %101, %100 : vector<8x32xf32>
    %106 = arith.addf %104, %105 : vector<8x32xf32>
    %107 = math.tanh %106 : vector<8x32xf32>
    %108 = arith.mulf %103, %107 : vector<8x32xf32>
    %c1 = arith.constant 1 : index
    %c0_22 = arith.constant 0 : index
    %c0_23 = arith.constant 0 : index
    %109 = vector.load %arg19[%c1, %c0_22, %c0_23] : memref<8x8x64xf32, #tpu.memory_space<vmem>>, vector<1x8x32xf32>
    %110 = vector.shape_cast %109 : vector<1x8x32xf32> to vector<8x32xf32>
    %111 = vector.shape_cast %87 : vector<8x32xf32> to vector<1x8x32xf32>
    tpu.vector_store %arg19[%c1, %c0_22, %c0_23], %111 {strides = array<i32>} : memref<8x8x64xf32, #tpu.memory_space<vmem>>, vector<1x8x32xf32>,
    %c6 = arith.constant 6 : index
    %c0_24 = arith.constant 0 : index
    %c32_25 = arith.constant 32 : index
    %112 = vector.load %arg19[%c6, %c0_24, %c32_25] : memref<8x8x64xf32, #tpu.memory_space<vmem>>, vector<1x8x32xf32>
    %113 = vector.shape_cast %112 : vector<1x8x32xf32> to vector<8x32xf32>
    %114 = vector.shape_cast %108 : vector<8x32xf32> to vector<1x8x32xf32>
    tpu.vector_store %arg19[%c6, %c0_24, %c32_25], %114 {strides = array<i32>} : memref<8x8x64xf32, #tpu.memory_space<vmem>>, vector<1x8x32xf32>,
    %115 = tpu.concatenate %87, %108 in 1 : vector<8x32xf32>, vector<8x32xf32> -> vector<8x64xf32>
    %116 = arith.truncf %115 : vector<8x64xf32> to vector<8x64xbf16>
    %cst_26 = arith.constant dense<0.000000e+00> : vector<8x256xf32>
    %117 = tpu.matmul %116, %8, %cst_26 {dimension_numbers = #tpu.dot_dimension_numbers<[1], [0], [0], [1], [0, 0, 1, 1], [], []>} : vector<8x64xbf16>, vector<64x256xbf16>, vector<8x256xf32> -> vector<8x256xf32>
    %118 = vector.extract_strided_slice %7 {offsets = [2, 0, 0], sizes = [1, 8, 256], strides = [1, 1, 1]} : vector<8x8x256xf32> to vector<1x8x256xf32>
    %119 = vector.shape_cast %118 : vector<1x8x256xf32> to vector<8x256xf32>
    %120 = vector.extract_strided_slice %119 {offsets = [0, 0], sizes = [8, 128], strides = [1, 1]} : vector<8x256xf32> to vector<8x128xf32>
    %121 = vector.extract_strided_slice %117 {offsets = [0, 0], sizes = [8, 128], strides = [1, 1]} : vector<8x256xf32> to vector<8x128xf32>
    %122 = arith.addf %120, %121 : vector<8x128xf32>
    %123 = vector.extract_strided_slice %122 {offsets = [0, 0], sizes = [8, 96], strides = [1, 1]} : vector<8x128xf32> to vector<8x96xf32>
    %124 = arith.negf %123 : vector<8x96xf32>
    %125 = math.exp %124 : vector<8x96xf32>
    %cst_27 = arith.constant 1.000000e+00 : f32
    %126 = vector.broadcast %cst_27 : f32 to vector<8x96xf32>
    %127 = arith.addf %126, %125 : vector<8x96xf32>
    %128 = arith.divf %126, %127 : vector<8x96xf32>
    %129 = vector.extract_strided_slice %122 {offsets = [0, 96], sizes = [8, 32], strides = [1, 1]} : vector<8x128xf32> to vector<8x32xf32>
    %130 = math.tanh %129 : vector<8x32xf32>
    %131 = vector.extract_strided_slice %128 {offsets = [0, 0], sizes = [8, 32], strides = [1, 1]} : vector<8x96xf32> to vector<8x32xf32>
    %132 = vector.extract_strided_slice %128 {offsets = [0, 32], sizes = [8, 32], strides = [1, 1]} : vector<8x96xf32> to vector<8x32xf32>
    %133 = vector.extract_strided_slice %128 {offsets = [0, 64], sizes = [8, 32], strides = [1, 1]} : vector<8x96xf32> to vector<8x32xf32>
    %134 = arith.mulf %132, %85 : vector<8x32xf32>
    %135 = arith.mulf %131, %130 : vector<8x32xf32>
    %136 = arith.addf %134, %135 : vector<8x32xf32>
    %137 = math.tanh %136 : vector<8x32xf32>
    %138 = arith.mulf %133, %137 : vector<8x32xf32>
    %139 = vector.extract_strided_slice %7 {offsets = [5, 0, 0], sizes = [1, 8, 256], strides = [1, 1, 1]} : vector<8x8x256xf32> to vector<1x8x256xf32>
    %140 = vector.shape_cast %139 : vector<1x8x256xf32> to vector<8x256xf32>
    %141 = vector.extract_strided_slice %140 {offsets = [0, 128], sizes = [8, 128], strides = [1, 1]} : vector<8x256xf32> to vector<8x128xf32>
    %142 = vector.extract_strided_slice %117 {offsets = [0, 128], sizes = [8, 128], strides = [1, 1]} : vector<8x256xf32> to vector<8x128xf32>
    %143 = arith.addf %141, %142 : vector<8x128xf32>
    %144 = vector.extract_strided_slice %143 {offsets = [0, 0], sizes = [8, 96], strides = [1, 1]} : vector<8x128xf32> to vector<8x96xf32>
    %145 = arith.negf %144 : vector<8x96xf32>
    %146 = math.exp %145 : vector<8x96xf32>
    %cst_28 = arith.constant 1.000000e+00 : f32
    %147 = vector.broadcast %cst_28 : f32 to vector<8x96xf32>
    %148 = arith.addf %147, %146 : vector<8x96xf32>
    %149 = arith.divf %147, %148 : vector<8x96xf32>
    %150 = vector.extract_strided_slice %143 {offsets = [0, 96], sizes = [8, 32], strides = [1, 1]} : vector<8x128xf32> to vector<8x32xf32>
    %151 = math.tanh %150 : vector<8x32xf32>
    %152 = vector.extract_strided_slice %149 {offsets = [0, 0], sizes = [8, 32], strides = [1, 1]} : vector<8x96xf32> to vector<8x32xf32>
    %153 = vector.extract_strided_slice %149 {offsets = [0, 32], sizes = [8, 32], strides = [1, 1]} : vector<8x96xf32> to vector<8x32xf32>
    %154 = vector.extract_strided_slice %149 {offsets = [0, 64], sizes = [8, 32], strides = [1, 1]} : vector<8x96xf32> to vector<8x32xf32>
    %155 = arith.mulf %153, %106 : vector<8x32xf32>
    %156 = arith.mulf %152, %151 : vector<8x32xf32>
    %157 = arith.addf %155, %156 : vector<8x32xf32>
    %158 = math.tanh %157 : vector<8x32xf32>
    %159 = arith.mulf %154, %158 : vector<8x32xf32>
    %c2 = arith.constant 2 : index
    %c0_29 = arith.constant 0 : index
    %c0_30 = arith.constant 0 : index
    %160 = vector.load %arg19[%c2, %c0_29, %c0_30] : memref<8x8x64xf32, #tpu.memory_space<vmem>>, vector<1x8x32xf32>
    %161 = vector.shape_cast %160 : vector<1x8x32xf32> to vector<8x32xf32>
    %162 = vector.shape_cast %138 : vector<8x32xf32> to vector<1x8x32xf32>
    tpu.vector_store %arg19[%c2, %c0_29, %c0_30], %162 {strides = array<i32>} : memref<8x8x64xf32, #tpu.memory_space<vmem>>, vector<1x8x32xf32>,
    %c5 = arith.constant 5 : index
    %c0_31 = arith.constant 0 : index
    %c32_32 = arith.constant 32 : index
    %163 = vector.load %arg19[%c5, %c0_31, %c32_32] : memref<8x8x64xf32, #tpu.memory_space<vmem>>, vector<1x8x32xf32>
    %164 = vector.shape_cast %163 : vector<1x8x32xf32> to vector<8x32xf32>
    %165 = vector.shape_cast %159 : vector<8x32xf32> to vector<1x8x32xf32>
    tpu.vector_store %arg19[%c5, %c0_31, %c32_32], %165 {strides = array<i32>} : memref<8x8x64xf32, #tpu.memory_space<vmem>>, vector<1x8x32xf32>,
    %166 = tpu.concatenate %138, %159 in 1 : vector<8x32xf32>, vector<8x32xf32> -> vector<8x64xf32>
    %167 = arith.truncf %166 : vector<8x64xf32> to vector<8x64xbf16>
    %cst_33 = arith.constant dense<0.000000e+00> : vector<8x256xf32>
    %168 = tpu.matmul %167, %8, %cst_33 {dimension_numbers = #tpu.dot_dimension_numbers<[1], [0], [0], [1], [0, 0, 1, 1], [], []>} : vector<8x64xbf16>, vector<64x256xbf16>, vector<8x256xf32> -> vector<8x256xf32>
    %169 = vector.extract_strided_slice %7 {offsets = [3, 0, 0], sizes = [1, 8, 256], strides = [1, 1, 1]} : vector<8x8x256xf32> to vector<1x8x256xf32>
    %170 = vector.shape_cast %169 : vector<1x8x256xf32> to vector<8x256xf32>
    %171 = vector.extract_strided_slice %170 {offsets = [0, 0], sizes = [8, 128], strides = [1, 1]} : vector<8x256xf32> to vector<8x128xf32>
    %172 = vector.extract_strided_slice %168 {offsets = [0, 0], sizes = [8, 128], strides = [1, 1]} : vector<8x256xf32> to vector<8x128xf32>
    %173 = arith.addf %171, %172 : vector<8x128xf32>
    %174 = vector.extract_strided_slice %173 {offsets = [0, 0], sizes = [8, 96], strides = [1, 1]} : vector<8x128xf32> to vector<8x96xf32>
    %175 = arith.negf %174 : vector<8x96xf32>
    %176 = math.exp %175 : vector<8x96xf32>
    %cst_34 = arith.constant 1.000000e+00 : f32
    %177 = vector.broadcast %cst_34 : f32 to vector<8x96xf32>
    %178 = arith.addf %177, %176 : vector<8x96xf32>
    %179 = arith.divf %177, %178 : vector<8x96xf32>
    %180 = vector.extract_strided_slice %173 {offsets = [0, 96], sizes = [8, 32], strides = [1, 1]} : vector<8x128xf32> to vector<8x32xf32>
    %181 = math.tanh %180 : vector<8x32xf32>
    %182 = vector.extract_strided_slice %179 {offsets = [0, 0], sizes = [8, 32], strides = [1, 1]} : vector<8x96xf32> to vector<8x32xf32>
    %183 = vector.extract_strided_slice %179 {offsets = [0, 32], sizes = [8, 32], strides = [1, 1]} : vector<8x96xf32> to vector<8x32xf32>
    %184 = vector.extract_strided_slice %179 {offsets = [0, 64], sizes = [8, 32], strides = [1, 1]} : vector<8x96xf32> to vector<8x32xf32>
    %185 = arith.mulf %183, %136 : vector<8x32xf32>
    %186 = arith.mulf %182, %181 : vector<8x32xf32>
    %187 = arith.addf %185, %186 : vector<8x32xf32>
    %188 = math.tanh %187 : vector<8x32xf32>
    %189 = arith.mulf %184, %188 : vector<8x32xf32>
    %190 = vector.extract_strided_slice %7 {offsets = [4, 0, 0], sizes = [1, 8, 256], strides = [1, 1, 1]} : vector<8x8x256xf32> to vector<1x8x256xf32>
    %191 = vector.shape_cast %190 : vector<1x8x256xf32> to vector<8x256xf32>
    %192 = vector.extract_strided_slice %191 {offsets = [0, 128], sizes = [8, 128], strides = [1, 1]} : vector<8x256xf32> to vector<8x128xf32>
    %193 = vector.extract_strided_slice %168 {offsets = [0, 128], sizes = [8, 128], strides = [1, 1]} : vector<8x256xf32> to vector<8x128xf32>
    %194 = arith.addf %192, %193 : vector<8x128xf32>
    %195 = vector.extract_strided_slice %194 {offsets = [0, 0], sizes = [8, 96], strides = [1, 1]} : vector<8x128xf32> to vector<8x96xf32>
    %196 = arith.negf %195 : vector<8x96xf32>
    %197 = math.exp %196 : vector<8x96xf32>
    %cst_35 = arith.constant 1.000000e+00 : f32
    %198 = vector.broadcast %cst_35 : f32 to vector<8x96xf32>
    %199 = arith.addf %198, %197 : vector<8x96xf32>
    %200 = arith.divf %198, %199 : vector<8x96xf32>
    %201 = vector.extract_strided_slice %194 {offsets = [0, 96], sizes = [8, 32], strides = [1, 1]} : vector<8x128xf32> to vector<8x32xf32>
    %202 = math.tanh %201 : vector<8x32xf32>
    %203 = vector.extract_strided_slice %200 {offsets = [0, 0], sizes = [8, 32], strides = [1, 1]} : vector<8x96xf32> to vector<8x32xf32>
    %204 = vector.extract_strided_slice %200 {offsets = [0, 32], sizes = [8, 32], strides = [1, 1]} : vector<8x96xf32> to vector<8x32xf32>
    %205 = vector.extract_strided_slice %200 {offsets = [0, 64], sizes = [8, 32], strides = [1, 1]} : vector<8x96xf32> to vector<8x32xf32>
    %206 = arith.mulf %204, %157 : vector<8x32xf32>
    %207 = arith.mulf %203, %202 : vector<8x32xf32>
    %208 = arith.addf %206, %207 : vector<8x32xf32>
    %209 = math.tanh %208 : vector<8x32xf32>
    %210 = arith.mulf %205, %209 : vector<8x32xf32>
    %c3 = arith.constant 3 : index
    %c0_36 = arith.constant 0 : index
    %c0_37 = arith.constant 0 : index
    %211 = vector.load %arg19[%c3, %c0_36, %c0_37] : memref<8x8x64xf32, #tpu.memory_space<vmem>>, vector<1x8x32xf32>
    %212 = vector.shape_cast %211 : vector<1x8x32xf32> to vector<8x32xf32>
    %213 = vector.shape_cast %189 : vector<8x32xf32> to vector<1x8x32xf32>
    tpu.vector_store %arg19[%c3, %c0_36, %c0_37], %213 {strides = array<i32>} : memref<8x8x64xf32, #tpu.memory_space<vmem>>, vector<1x8x32xf32>,
    %c4 = arith.constant 4 : index
    %c0_38 = arith.constant 0 : index
    %c32_39 = arith.constant 32 : index
    %214 = vector.load %arg19[%c4, %c0_38, %c32_39] : memref<8x8x64xf32, #tpu.memory_space<vmem>>, vector<1x8x32xf32>
    %215 = vector.shape_cast %214 : vector<1x8x32xf32> to vector<8x32xf32>
    %216 = vector.shape_cast %210 : vector<8x32xf32> to vector<1x8x32xf32>
    tpu.vector_store %arg19[%c4, %c0_38, %c32_39], %216 {strides = array<i32>} : memref<8x8x64xf32, #tpu.memory_space<vmem>>, vector<1x8x32xf32>,
    %217 = tpu.concatenate %189, %210 in 1 : vector<8x32xf32>, vector<8x32xf32> -> vector<8x64xf32>
    %218 = arith.truncf %217 : vector<8x64xf32> to vector<8x64xbf16>
    %cst_40 = arith.constant dense<0.000000e+00> : vector<8x256xf32>
    %219 = tpu.matmul %218, %8, %cst_40 {dimension_numbers = #tpu.dot_dimension_numbers<[1], [0], [0], [1], [0, 0, 1, 1], [], []>} : vector<8x64xbf16>, vector<64x256xbf16>, vector<8x256xf32> -> vector<8x256xf32>
    %220 = vector.extract_strided_slice %7 {offsets = [4, 0, 0], sizes = [1, 8, 256], strides = [1, 1, 1]} : vector<8x8x256xf32> to vector<1x8x256xf32>
    %221 = vector.shape_cast %220 : vector<1x8x256xf32> to vector<8x256xf32>
    %222 = vector.extract_strided_slice %221 {offsets = [0, 0], sizes = [8, 128], strides = [1, 1]} : vector<8x256xf32> to vector<8x128xf32>
    %223 = vector.extract_strided_slice %219 {offsets = [0, 0], sizes = [8, 128], strides = [1, 1]} : vector<8x256xf32> to vector<8x128xf32>
    %224 = arith.addf %222, %223 : vector<8x128xf32>
    %225 = vector.extract_strided_slice %224 {offsets = [0, 0], sizes = [8, 96], strides = [1, 1]} : vector<8x128xf32> to vector<8x96xf32>
    %226 = arith.negf %225 : vector<8x96xf32>
    %227 = math.exp %226 : vector<8x96xf32>
    %cst_41 = arith.constant 1.000000e+00 : f32
    %228 = vector.broadcast %cst_41 : f32 to vector<8x96xf32>
    %229 = arith.addf %228, %227 : vector<8x96xf32>
    %230 = arith.divf %228, %229 : vector<8x96xf32>
    %231 = vector.extract_strided_slice %224 {offsets = [0, 96], sizes = [8, 32], strides = [1, 1]} : vector<8x128xf32> to vector<8x32xf32>
    %232 = math.tanh %231 : vector<8x32xf32>
    %233 = vector.extract_strided_slice %230 {offsets = [0, 0], sizes = [8, 32], strides = [1, 1]} : vector<8x96xf32> to vector<8x32xf32>
    %234 = vector.extract_strided_slice %230 {offsets = [0, 32], sizes = [8, 32], strides = [1, 1]} : vector<8x96xf32> to vector<8x32xf32>
    %235 = vector.extract_strided_slice %230 {offsets = [0, 64], sizes = [8, 32], strides = [1, 1]} : vector<8x96xf32> to vector<8x32xf32>
    %236 = arith.mulf %234, %187 : vector<8x32xf32>
    %237 = arith.mulf %233, %232 : vector<8x32xf32>
    %238 = arith.addf %236, %237 : vector<8x32xf32>
    %239 = math.tanh %238 : vector<8x32xf32>
    %240 = arith.mulf %235, %239 : vector<8x32xf32>
    %241 = vector.extract_strided_slice %7 {offsets = [3, 0, 0], sizes = [1, 8, 256], strides = [1, 1, 1]} : vector<8x8x256xf32> to vector<1x8x256xf32>
    %242 = vector.shape_cast %241 : vector<1x8x256xf32> to vector<8x256xf32>
    %243 = vector.extract_strided_slice %242 {offsets = [0, 128], sizes = [8, 128], strides = [1, 1]} : vector<8x256xf32> to vector<8x128xf32>
    %244 = vector.extract_strided_slice %219 {offsets = [0, 128], sizes = [8, 128], strides = [1, 1]} : vector<8x256xf32> to vector<8x128xf32>
    %245 = arith.addf %243, %244 : vector<8x128xf32>
    %246 = vector.extract_strided_slice %245 {offsets = [0, 0], sizes = [8, 96], strides = [1, 1]} : vector<8x128xf32> to vector<8x96xf32>
    %247 = arith.negf %246 : vector<8x96xf32>
    %248 = math.exp %247 : vector<8x96xf32>
    %cst_42 = arith.constant 1.000000e+00 : f32
    %249 = vector.broadcast %cst_42 : f32 to vector<8x96xf32>
    %250 = arith.addf %249, %248 : vector<8x96xf32>
    %251 = arith.divf %249, %250 : vector<8x96xf32>
    %252 = vector.extract_strided_slice %245 {offsets = [0, 96], sizes = [8, 32], strides = [1, 1]} : vector<8x128xf32> to vector<8x32xf32>
    %253 = math.tanh %252 : vector<8x32xf32>
    %254 = vector.extract_strided_slice %251 {offsets = [0, 0], sizes = [8, 32], strides = [1, 1]} : vector<8x96xf32> to vector<8x32xf32>
    %255 = vector.extract_strided_slice %251 {offsets = [0, 32], sizes = [8, 32], strides = [1, 1]} : vector<8x96xf32> to vector<8x32xf32>
    %256 = vector.extract_strided_slice %251 {offsets = [0, 64], sizes = [8, 32], strides = [1, 1]} : vector<8x96xf32> to vector<8x32xf32>
    %257 = arith.mulf %255, %208 : vector<8x32xf32>
    %258 = arith.mulf %254, %253 : vector<8x32xf32>
    %259 = arith.addf %257, %258 : vector<8x32xf32>
    %260 = math.tanh %259 : vector<8x32xf32>
    %261 = arith.mulf %256, %260 : vector<8x32xf32>
    %c4_43 = arith.constant 4 : index
    %c0_44 = arith.constant 0 : index
    %c0_45 = arith.constant 0 : index
    %262 = vector.load %arg19[%c4_43, %c0_44, %c0_45] : memref<8x8x64xf32, #tpu.memory_space<vmem>>, vector<1x8x32xf32>
    %263 = vector.shape_cast %262 : vector<1x8x32xf32> to vector<8x32xf32>
    %264 = vector.shape_cast %240 : vector<8x32xf32> to vector<1x8x32xf32>
    tpu.vector_store %arg19[%c4_43, %c0_44, %c0_45], %264 {strides = array<i32>} : memref<8x8x64xf32, #tpu.memory_space<vmem>>, vector<1x8x32xf32>,
    %c3_46 = arith.constant 3 : index
    %c0_47 = arith.constant 0 : index
    %c32_48 = arith.constant 32 : index
    %265 = vector.load %arg19[%c3_46, %c0_47, %c32_48] : memref<8x8x64xf32, #tpu.memory_space<vmem>>, vector<1x8x32xf32>
    %266 = vector.shape_cast %265 : vector<1x8x32xf32> to vector<8x32xf32>
    %267 = vector.shape_cast %261 : vector<8x32xf32> to vector<1x8x32xf32>
    tpu.vector_store %arg19[%c3_46, %c0_47, %c32_48], %267 {strides = array<i32>} : memref<8x8x64xf32, #tpu.memory_space<vmem>>, vector<1x8x32xf32>,
    %268 = tpu.concatenate %240, %261 in 1 : vector<8x32xf32>, vector<8x32xf32> -> vector<8x64xf32>
    %269 = arith.truncf %268 : vector<8x64xf32> to vector<8x64xbf16>
    %cst_49 = arith.constant dense<0.000000e+00> : vector<8x256xf32>
    %270 = tpu.matmul %269, %8, %cst_49 {dimension_numbers = #tpu.dot_dimension_numbers<[1], [0], [0], [1], [0, 0, 1, 1], [], []>} : vector<8x64xbf16>, vector<64x256xbf16>, vector<8x256xf32> -> vector<8x256xf32>
    %271 = vector.extract_strided_slice %7 {offsets = [5, 0, 0], sizes = [1, 8, 256], strides = [1, 1, 1]} : vector<8x8x256xf32> to vector<1x8x256xf32>
    %272 = vector.shape_cast %271 : vector<1x8x256xf32> to vector<8x256xf32>
    %273 = vector.extract_strided_slice %272 {offsets = [0, 0], sizes = [8, 128], strides = [1, 1]} : vector<8x256xf32> to vector<8x128xf32>
    %274 = vector.extract_strided_slice %270 {offsets = [0, 0], sizes = [8, 128], strides = [1, 1]} : vector<8x256xf32> to vector<8x128xf32>
    %275 = arith.addf %273, %274 : vector<8x128xf32>
    %276 = vector.extract_strided_slice %275 {offsets = [0, 0], sizes = [8, 96], strides = [1, 1]} : vector<8x128xf32> to vector<8x96xf32>
    %277 = arith.negf %276 : vector<8x96xf32>
    %278 = math.exp %277 : vector<8x96xf32>
    %cst_50 = arith.constant 1.000000e+00 : f32
    %279 = vector.broadcast %cst_50 : f32 to vector<8x96xf32>
    %280 = arith.addf %279, %278 : vector<8x96xf32>
    %281 = arith.divf %279, %280 : vector<8x96xf32>
    %282 = vector.extract_strided_slice %275 {offsets = [0, 96], sizes = [8, 32], strides = [1, 1]} : vector<8x128xf32> to vector<8x32xf32>
    %283 = math.tanh %282 : vector<8x32xf32>
    %284 = vector.extract_strided_slice %281 {offsets = [0, 0], sizes = [8, 32], strides = [1, 1]} : vector<8x96xf32> to vector<8x32xf32>
    %285 = vector.extract_strided_slice %281 {offsets = [0, 32], sizes = [8, 32], strides = [1, 1]} : vector<8x96xf32> to vector<8x32xf32>
    %286 = vector.extract_strided_slice %281 {offsets = [0, 64], sizes = [8, 32], strides = [1, 1]} : vector<8x96xf32> to vector<8x32xf32>
    %287 = arith.mulf %285, %238 : vector<8x32xf32>
    %288 = arith.mulf %284, %283 : vector<8x32xf32>
    %289 = arith.addf %287, %288 : vector<8x32xf32>
    %290 = math.tanh %289 : vector<8x32xf32>
    %291 = arith.mulf %286, %290 : vector<8x32xf32>
    %292 = vector.extract_strided_slice %7 {offsets = [2, 0, 0], sizes = [1, 8, 256], strides = [1, 1, 1]} : vector<8x8x256xf32> to vector<1x8x256xf32>
    %293 = vector.shape_cast %292 : vector<1x8x256xf32> to vector<8x256xf32>
    %294 = vector.extract_strided_slice %293 {offsets = [0, 128], sizes = [8, 128], strides = [1, 1]} : vector<8x256xf32> to vector<8x128xf32>
    %295 = vector.extract_strided_slice %270 {offsets = [0, 128], sizes = [8, 128], strides = [1, 1]} : vector<8x256xf32> to vector<8x128xf32>
    %296 = arith.addf %294, %295 : vector<8x128xf32>
    %297 = vector.extract_strided_slice %296 {offsets = [0, 0], sizes = [8, 96], strides = [1, 1]} : vector<8x128xf32> to vector<8x96xf32>
    %298 = arith.negf %297 : vector<8x96xf32>
    %299 = math.exp %298 : vector<8x96xf32>
    %cst_51 = arith.constant 1.000000e+00 : f32
    %300 = vector.broadcast %cst_51 : f32 to vector<8x96xf32>
    %301 = arith.addf %300, %299 : vector<8x96xf32>
    %302 = arith.divf %300, %301 : vector<8x96xf32>
    %303 = vector.extract_strided_slice %296 {offsets = [0, 96], sizes = [8, 32], strides = [1, 1]} : vector<8x128xf32> to vector<8x32xf32>
    %304 = math.tanh %303 : vector<8x32xf32>
    %305 = vector.extract_strided_slice %302 {offsets = [0, 0], sizes = [8, 32], strides = [1, 1]} : vector<8x96xf32> to vector<8x32xf32>
    %306 = vector.extract_strided_slice %302 {offsets = [0, 32], sizes = [8, 32], strides = [1, 1]} : vector<8x96xf32> to vector<8x32xf32>
    %307 = vector.extract_strided_slice %302 {offsets = [0, 64], sizes = [8, 32], strides = [1, 1]} : vector<8x96xf32> to vector<8x32xf32>
    %308 = arith.mulf %306, %259 : vector<8x32xf32>
    %309 = arith.mulf %305, %304 : vector<8x32xf32>
    %310 = arith.addf %308, %309 : vector<8x32xf32>
    %311 = math.tanh %310 : vector<8x32xf32>
    %312 = arith.mulf %307, %311 : vector<8x32xf32>
    %c5_52 = arith.constant 5 : index
    %c0_53 = arith.constant 0 : index
    %c0_54 = arith.constant 0 : index
    %313 = vector.load %arg19[%c5_52, %c0_53, %c0_54] : memref<8x8x64xf32, #tpu.memory_space<vmem>>, vector<1x8x32xf32>
    %314 = vector.shape_cast %313 : vector<1x8x32xf32> to vector<8x32xf32>
    %315 = vector.shape_cast %291 : vector<8x32xf32> to vector<1x8x32xf32>
    tpu.vector_store %arg19[%c5_52, %c0_53, %c0_54], %315 {strides = array<i32>} : memref<8x8x64xf32, #tpu.memory_space<vmem>>, vector<1x8x32xf32>,
    %c2_55 = arith.constant 2 : index
    %c0_56 = arith.constant 0 : index
    %c32_57 = arith.constant 32 : index
    %316 = vector.load %arg19[%c2_55, %c0_56, %c32_57] : memref<8x8x64xf32, #tpu.memory_space<vmem>>, vector<1x8x32xf32>
    %317 = vector.shape_cast %316 : vector<1x8x32xf32> to vector<8x32xf32>
    %318 = vector.shape_cast %312 : vector<8x32xf32> to vector<1x8x32xf32>
    tpu.vector_store %arg19[%c2_55, %c0_56, %c32_57], %318 {strides = array<i32>} : memref<8x8x64xf32, #tpu.memory_space<vmem>>, vector<1x8x32xf32>,
    %319 = tpu.concatenate %291, %312 in 1 : vector<8x32xf32>, vector<8x32xf32> -> vector<8x64xf32>
    %320 = arith.truncf %319 : vector<8x64xf32> to vector<8x64xbf16>
    %cst_58 = arith.constant dense<0.000000e+00> : vector<8x256xf32>
    %321 = tpu.matmul %320, %8, %cst_58 {dimension_numbers = #tpu.dot_dimension_numbers<[1], [0], [0], [1], [0, 0, 1, 1], [], []>} : vector<8x64xbf16>, vector<64x256xbf16>, vector<8x256xf32> -> vector<8x256xf32>
    %322 = vector.extract_strided_slice %7 {offsets = [6, 0, 0], sizes = [1, 8, 256], strides = [1, 1, 1]} : vector<8x8x256xf32> to vector<1x8x256xf32>
    %323 = vector.shape_cast %322 : vector<1x8x256xf32> to vector<8x256xf32>
    %324 = vector.extract_strided_slice %323 {offsets = [0, 0], sizes = [8, 128], strides = [1, 1]} : vector<8x256xf32> to vector<8x128xf32>
    %325 = vector.extract_strided_slice %321 {offsets = [0, 0], sizes = [8, 128], strides = [1, 1]} : vector<8x256xf32> to vector<8x128xf32>
    %326 = arith.addf %324, %325 : vector<8x128xf32>
    %327 = vector.extract_strided_slice %326 {offsets = [0, 0], sizes = [8, 96], strides = [1, 1]} : vector<8x128xf32> to vector<8x96xf32>
    %328 = arith.negf %327 : vector<8x96xf32>
    %329 = math.exp %328 : vector<8x96xf32>
    %cst_59 = arith.constant 1.000000e+00 : f32
    %330 = vector.broadcast %cst_59 : f32 to vector<8x96xf32>
    %331 = arith.addf %330, %329 : vector<8x96xf32>
    %332 = arith.divf %330, %331 : vector<8x96xf32>
    %333 = vector.extract_strided_slice %326 {offsets = [0, 96], sizes = [8, 32], strides = [1, 1]} : vector<8x128xf32> to vector<8x32xf32>
    %334 = math.tanh %333 : vector<8x32xf32>
    %335 = vector.extract_strided_slice %332 {offsets = [0, 0], sizes = [8, 32], strides = [1, 1]} : vector<8x96xf32> to vector<8x32xf32>
    %336 = vector.extract_strided_slice %332 {offsets = [0, 32], sizes = [8, 32], strides = [1, 1]} : vector<8x96xf32> to vector<8x32xf32>
    %337 = vector.extract_strided_slice %332 {offsets = [0, 64], sizes = [8, 32], strides = [1, 1]} : vector<8x96xf32> to vector<8x32xf32>
    %338 = arith.mulf %336, %289 : vector<8x32xf32>
    %339 = arith.mulf %335, %334 : vector<8x32xf32>
    %340 = arith.addf %338, %339 : vector<8x32xf32>
    %341 = math.tanh %340 : vector<8x32xf32>
    %342 = arith.mulf %337, %341 : vector<8x32xf32>
    %343 = vector.extract_strided_slice %7 {offsets = [1, 0, 0], sizes = [1, 8, 256], strides = [1, 1, 1]} : vector<8x8x256xf32> to vector<1x8x256xf32>
    %344 = vector.shape_cast %343 : vector<1x8x256xf32> to vector<8x256xf32>
    %345 = vector.extract_strided_slice %344 {offsets = [0, 128], sizes = [8, 128], strides = [1, 1]} : vector<8x256xf32> to vector<8x128xf32>
    %346 = vector.extract_strided_slice %321 {offsets = [0, 128], sizes = [8, 128], strides = [1, 1]} : vector<8x256xf32> to vector<8x128xf32>
    %347 = arith.addf %345, %346 : vector<8x128xf32>
    %348 = vector.extract_strided_slice %347 {offsets = [0, 0], sizes = [8, 96], strides = [1, 1]} : vector<8x128xf32> to vector<8x96xf32>
    %349 = arith.negf %348 : vector<8x96xf32>
    %350 = math.exp %349 : vector<8x96xf32>
    %cst_60 = arith.constant 1.000000e+00 : f32
    %351 = vector.broadcast %cst_60 : f32 to vector<8x96xf32>
    %352 = arith.addf %351, %350 : vector<8x96xf32>
    %353 = arith.divf %351, %352 : vector<8x96xf32>
    %354 = vector.extract_strided_slice %347 {offsets = [0, 96], sizes = [8, 32], strides = [1, 1]} : vector<8x128xf32> to vector<8x32xf32>
    %355 = math.tanh %354 : vector<8x32xf32>
    %356 = vector.extract_strided_slice %353 {offsets = [0, 0], sizes = [8, 32], strides = [1, 1]} : vector<8x96xf32> to vector<8x32xf32>
    %357 = vector.extract_strided_slice %353 {offsets = [0, 32], sizes = [8, 32], strides = [1, 1]} : vector<8x96xf32> to vector<8x32xf32>
    %358 = vector.extract_strided_slice %353 {offsets = [0, 64], sizes = [8, 32], strides = [1, 1]} : vector<8x96xf32> to vector<8x32xf32>
    %359 = arith.mulf %357, %310 : vector<8x32xf32>
    %360 = arith.mulf %356, %355 : vector<8x32xf32>
    %361 = arith.addf %359, %360 : vector<8x32xf32>
    %362 = math.tanh %361 : vector<8x32xf32>
    %363 = arith.mulf %358, %362 : vector<8x32xf32>
    %c6_61 = arith.constant 6 : index
    %c0_62 = arith.constant 0 : index
    %c0_63 = arith.constant 0 : index
    %364 = vector.load %arg19[%c6_61, %c0_62, %c0_63] : memref<8x8x64xf32, #tpu.memory_space<vmem>>, vector<1x8x32xf32>
    %365 = vector.shape_cast %364 : vector<1x8x32xf32> to vector<8x32xf32>
    %366 = vector.shape_cast %342 : vector<8x32xf32> to vector<1x8x32xf32>
    tpu.vector_store %arg19[%c6_61, %c0_62, %c0_63], %366 {strides = array<i32>} : memref<8x8x64xf32, #tpu.memory_space<vmem>>, vector<1x8x32xf32>,
    %c1_64 = arith.constant 1 : index
    %c0_65 = arith.constant 0 : index
    %c32_66 = arith.constant 32 : index
    %367 = vector.load %arg19[%c1_64, %c0_65, %c32_66] : memref<8x8x64xf32, #tpu.memory_space<vmem>>, vector<1x8x32xf32>
    %368 = vector.shape_cast %367 : vector<1x8x32xf32> to vector<8x32xf32>
    %369 = vector.shape_cast %363 : vector<8x32xf32> to vector<1x8x32xf32>
    tpu.vector_store %arg19[%c1_64, %c0_65, %c32_66], %369 {strides = array<i32>} : memref<8x8x64xf32, #tpu.memory_space<vmem>>, vector<1x8x32xf32>,
    %370 = tpu.concatenate %342, %363 in 1 : vector<8x32xf32>, vector<8x32xf32> -> vector<8x64xf32>
    %371 = arith.truncf %370 : vector<8x64xf32> to vector<8x64xbf16>
    %cst_67 = arith.constant dense<0.000000e+00> : vector<8x256xf32>
    %372 = tpu.matmul %371, %8, %cst_67 {dimension_numbers = #tpu.dot_dimension_numbers<[1], [0], [0], [1], [0, 0, 1, 1], [], []>} : vector<8x64xbf16>, vector<64x256xbf16>, vector<8x256xf32> -> vector<8x256xf32>
    %373 = vector.extract_strided_slice %7 {offsets = [7, 0, 0], sizes = [1, 8, 256], strides = [1, 1, 1]} : vector<8x8x256xf32> to vector<1x8x256xf32>
    %374 = vector.shape_cast %373 : vector<1x8x256xf32> to vector<8x256xf32>
    %375 = vector.extract_strided_slice %374 {offsets = [0, 0], sizes = [8, 128], strides = [1, 1]} : vector<8x256xf32> to vector<8x128xf32>
    %376 = vector.extract_strided_slice %372 {offsets = [0, 0], sizes = [8, 128], strides = [1, 1]} : vector<8x256xf32> to vector<8x128xf32>
    %377 = arith.addf %375, %376 : vector<8x128xf32>
    %378 = vector.extract_strided_slice %377 {offsets = [0, 0], sizes = [8, 96], strides = [1, 1]} : vector<8x128xf32> to vector<8x96xf32>
    %379 = arith.negf %378 : vector<8x96xf32>
    %380 = math.exp %379 : vector<8x96xf32>
    %cst_68 = arith.constant 1.000000e+00 : f32
    %381 = vector.broadcast %cst_68 : f32 to vector<8x96xf32>
    %382 = arith.addf %381, %380 : vector<8x96xf32>
    %383 = arith.divf %381, %382 : vector<8x96xf32>
    %384 = vector.extract_strided_slice %377 {offsets = [0, 96], sizes = [8, 32], strides = [1, 1]} : vector<8x128xf32> to vector<8x32xf32>
    %385 = math.tanh %384 : vector<8x32xf32>
    %386 = vector.extract_strided_slice %383 {offsets = [0, 0], sizes = [8, 32], strides = [1, 1]} : vector<8x96xf32> to vector<8x32xf32>
    %387 = vector.extract_strided_slice %383 {offsets = [0, 32], sizes = [8, 32], strides = [1, 1]} : vector<8x96xf32> to vector<8x32xf32>
    %388 = vector.extract_strided_slice %383 {offsets = [0, 64], sizes = [8, 32], strides = [1, 1]} : vector<8x96xf32> to vector<8x32xf32>
    %389 = arith.mulf %387, %340 : vector<8x32xf32>
    %390 = arith.mulf %386, %385 : vector<8x32xf32>
    %391 = arith.addf %389, %390 : vector<8x32xf32>
    %392 = math.tanh %391 : vector<8x32xf32>
    %393 = arith.mulf %388, %392 : vector<8x32xf32>
    %394 = vector.extract_strided_slice %7 {offsets = [0, 0, 0], sizes = [1, 8, 256], strides = [1, 1, 1]} : vector<8x8x256xf32> to vector<1x8x256xf32>
    %395 = vector.shape_cast %394 : vector<1x8x256xf32> to vector<8x256xf32>
    %396 = vector.extract_strided_slice %395 {offsets = [0, 128], sizes = [8, 128], strides = [1, 1]} : vector<8x256xf32> to vector<8x128xf32>
    %397 = vector.extract_strided_slice %372 {offsets = [0, 128], sizes = [8, 128], strides = [1, 1]} : vector<8x256xf32> to vector<8x128xf32>
    %398 = arith.addf %396, %397 : vector<8x128xf32>
    %399 = vector.extract_strided_slice %398 {offsets = [0, 0], sizes = [8, 96], strides = [1, 1]} : vector<8x128xf32> to vector<8x96xf32>
    %400 = arith.negf %399 : vector<8x96xf32>
    %401 = math.exp %400 : vector<8x96xf32>
    %cst_69 = arith.constant 1.000000e+00 : f32
    %402 = vector.broadcast %cst_69 : f32 to vector<8x96xf32>
    %403 = arith.addf %402, %401 : vector<8x96xf32>
    %404 = arith.divf %402, %403 : vector<8x96xf32>
    %405 = vector.extract_strided_slice %398 {offsets = [0, 96], sizes = [8, 32], strides = [1, 1]} : vector<8x128xf32> to vector<8x32xf32>
    %406 = math.tanh %405 : vector<8x32xf32>
    %407 = vector.extract_strided_slice %404 {offsets = [0, 0], sizes = [8, 32], strides = [1, 1]} : vector<8x96xf32> to vector<8x32xf32>
    %408 = vector.extract_strided_slice %404 {offsets = [0, 32], sizes = [8, 32], strides = [1, 1]} : vector<8x96xf32> to vector<8x32xf32>
    %409 = vector.extract_strided_slice %404 {offsets = [0, 64], sizes = [8, 32], strides = [1, 1]} : vector<8x96xf32> to vector<8x32xf32>
    %410 = arith.mulf %408, %361 : vector<8x32xf32>
    %411 = arith.mulf %407, %406 : vector<8x32xf32>
    %412 = arith.addf %410, %411 : vector<8x32xf32>
    %413 = math.tanh %412 : vector<8x32xf32>
    %414 = arith.mulf %409, %413 : vector<8x32xf32>
    %c7_70 = arith.constant 7 : index
    %c0_71 = arith.constant 0 : index
    %c0_72 = arith.constant 0 : index
    %415 = vector.load %arg19[%c7_70, %c0_71, %c0_72] : memref<8x8x64xf32, #tpu.memory_space<vmem>>, vector<1x8x32xf32>
    %416 = vector.shape_cast %415 : vector<1x8x32xf32> to vector<8x32xf32>
    %417 = vector.shape_cast %393 : vector<8x32xf32> to vector<1x8x32xf32>
    tpu.vector_store %arg19[%c7_70, %c0_71, %c0_72], %417 {strides = array<i32>} : memref<8x8x64xf32, #tpu.memory_space<vmem>>, vector<1x8x32xf32>,
    %c0_73 = arith.constant 0 : index
    %c0_74 = arith.constant 0 : index
    %c32_75 = arith.constant 32 : index
    %418 = vector.load %arg19[%c0_73, %c0_74, %c32_75] : memref<8x8x64xf32, #tpu.memory_space<vmem>>, vector<1x8x32xf32>
    %419 = vector.shape_cast %418 : vector<1x8x32xf32> to vector<8x32xf32>
    %420 = vector.shape_cast %414 : vector<8x32xf32> to vector<1x8x32xf32>
    tpu.vector_store %arg19[%c0_73, %c0_74, %c32_75], %420 {strides = array<i32>} : memref<8x8x64xf32, #tpu.memory_space<vmem>>, vector<1x8x32xf32>,
    %c0_76 = arith.constant 0 : index
    %c0_77 = arith.constant 0 : index
    %c0_78 = arith.constant 0 : index
    %421 = vector.load %arg19[%c0_76, %c0_77, %c0_78] : memref<8x8x64xf32, #tpu.memory_space<vmem>>, vector<8x8x64xf32>
    %422 = vector.shape_cast %421 : vector<8x8x64xf32> to vector<64x64xf32>
    %423 = arith.truncf %422 : vector<64x64xf32> to vector<64x64xbf16>
    %c0_79 = arith.constant 0 : index
    %c0_80 = arith.constant 0 : index
    %424 = vector.load %arg5[%c0_79, %c0_80] : memref<64x256xbf16, #tpu.memory_space<vmem>>, vector<64x256xbf16>
    %cst_81 = arith.constant dense<0.000000e+00> : vector<64x256xf32>
    %425 = tpu.matmul %423, %424, %cst_81 {dimension_numbers = #tpu.dot_dimension_numbers<[1], [0], [0], [1], [0, 0, 1, 1], [], []>} : vector<64x64xbf16>, vector<64x256xbf16>, vector<64x256xf32> -> vector<64x256xf32>
    %c0_82 = arith.constant 0 : index
    %c0_83 = arith.constant 0 : index
    %426 = vector.load %arg7[%c0_82, %c0_83] : memref<1x256xf32, #tpu.memory_space<vmem>>, vector<1x256xf32>
    %427 = vector.broadcast %426 : vector<1x256xf32> to vector<64x256xf32>
    %428 = arith.addf %425, %427 : vector<64x256xf32>
    %429 = vector.shape_cast %428 : vector<64x256xf32> to vector<8x8x256xf32>
    %c0_84 = arith.constant 0 : index
    %c0_85 = arith.constant 0 : index
    %430 = vector.load %arg6[%c0_84, %c0_85] : memref<64x256xbf16, #tpu.memory_space<vmem>>, vector<64x256xbf16>
    %cst_86 = arith.constant 0.000000e+00 : f32
    %431 = vector.broadcast %cst_86 : f32 to vector<8x32xf32>
    %cst_87 = arith.constant 0.000000e+00 : f32
    %432 = vector.broadcast %cst_87 : f32 to vector<8x32xf32>
    %cst_88 = arith.constant 0.000000e+00 : f32
    %433 = vector.broadcast %cst_88 : f32 to vector<8x32xf32>
    %cst_89 = arith.constant 0.000000e+00 : f32
    %434 = vector.broadcast %cst_89 : f32 to vector<8x32xf32>
    %435 = tpu.concatenate %431, %433 in 1 : vector<8x32xf32>, vector<8x32xf32> -> vector<8x64xf32>
    %436 = arith.truncf %435 : vector<8x64xf32> to vector<8x64xbf16>
    %cst_90 = arith.constant dense<0.000000e+00> : vector<8x256xf32>
    %437 = tpu.matmul %436, %430, %cst_90 {dimension_numbers = #tpu.dot_dimension_numbers<[1], [0], [0], [1], [0, 0, 1, 1], [], []>} : vector<8x64xbf16>, vector<64x256xbf16>, vector<8x256xf32> -> vector<8x256xf32>
    %438 = vector.extract_strided_slice %429 {offsets = [0, 0, 0], sizes = [1, 8, 256], strides = [1, 1, 1]} : vector<8x8x256xf32> to vector<1x8x256xf32>
    %439 = vector.shape_cast %438 : vector<1x8x256xf32> to vector<8x256xf32>
    %440 = vector.extract_strided_slice %439 {offsets = [0, 0], sizes = [8, 128], strides = [1, 1]} : vector<8x256xf32> to vector<8x128xf32>
    %441 = vector.extract_strided_slice %437 {offsets = [0, 0], sizes = [8, 128], strides = [1, 1]} : vector<8x256xf32> to vector<8x128xf32>
    %442 = arith.addf %440, %441 : vector<8x128xf32>
    %443 = vector.extract_strided_slice %442 {offsets = [0, 0], sizes = [8, 96], strides = [1, 1]} : vector<8x128xf32> to vector<8x96xf32>
    %444 = arith.negf %443 : vector<8x96xf32>
    %445 = math.exp %444 : vector<8x96xf32>
    %cst_91 = arith.constant 1.000000e+00 : f32
    %446 = vector.broadcast %cst_91 : f32 to vector<8x96xf32>
    %447 = arith.addf %446, %445 : vector<8x96xf32>
    %448 = arith.divf %446, %447 : vector<8x96xf32>
    %449 = vector.extract_strided_slice %442 {offsets = [0, 96], sizes = [8, 32], strides = [1, 1]} : vector<8x128xf32> to vector<8x32xf32>
    %450 = math.tanh %449 : vector<8x32xf32>
    %451 = vector.extract_strided_slice %448 {offsets = [0, 0], sizes = [8, 32], strides = [1, 1]} : vector<8x96xf32> to vector<8x32xf32>
    %452 = vector.extract_strided_slice %448 {offsets = [0, 32], sizes = [8, 32], strides = [1, 1]} : vector<8x96xf32> to vector<8x32xf32>
    %453 = vector.extract_strided_slice %448 {offsets = [0, 64], sizes = [8, 32], strides = [1, 1]} : vector<8x96xf32> to vector<8x32xf32>
    %454 = arith.mulf %452, %432 : vector<8x32xf32>
    %455 = arith.mulf %451, %450 : vector<8x32xf32>
    %456 = arith.addf %454, %455 : vector<8x32xf32>
    %457 = math.tanh %456 : vector<8x32xf32>
    %458 = arith.mulf %453, %457 : vector<8x32xf32>
    %459 = vector.extract_strided_slice %429 {offsets = [7, 0, 0], sizes = [1, 8, 256], strides = [1, 1, 1]} : vector<8x8x256xf32> to vector<1x8x256xf32>
    %460 = vector.shape_cast %459 : vector<1x8x256xf32> to vector<8x256xf32>
    %461 = vector.extract_strided_slice %460 {offsets = [0, 128], sizes = [8, 128], strides = [1, 1]} : vector<8x256xf32> to vector<8x128xf32>
    %462 = vector.extract_strided_slice %437 {offsets = [0, 128], sizes = [8, 128], strides = [1, 1]} : vector<8x256xf32> to vector<8x128xf32>
    %463 = arith.addf %461, %462 : vector<8x128xf32>
    %464 = vector.extract_strided_slice %463 {offsets = [0, 0], sizes = [8, 96], strides = [1, 1]} : vector<8x128xf32> to vector<8x96xf32>
    %465 = arith.negf %464 : vector<8x96xf32>
    %466 = math.exp %465 : vector<8x96xf32>
    %cst_92 = arith.constant 1.000000e+00 : f32
    %467 = vector.broadcast %cst_92 : f32 to vector<8x96xf32>
    %468 = arith.addf %467, %466 : vector<8x96xf32>
    %469 = arith.divf %467, %468 : vector<8x96xf32>
    %470 = vector.extract_strided_slice %463 {offsets = [0, 96], sizes = [8, 32], strides = [1, 1]} : vector<8x128xf32> to vector<8x32xf32>
    %471 = math.tanh %470 : vector<8x32xf32>
    %472 = vector.extract_strided_slice %469 {offsets = [0, 0], sizes = [8, 32], strides = [1, 1]} : vector<8x96xf32> to vector<8x32xf32>
    %473 = vector.extract_strided_slice %469 {offsets = [0, 32], sizes = [8, 32], strides = [1, 1]} : vector<8x96xf32> to vector<8x32xf32>
    %474 = vector.extract_strided_slice %469 {offsets = [0, 64], sizes = [8, 32], strides = [1, 1]} : vector<8x96xf32> to vector<8x32xf32>
    %475 = arith.mulf %473, %434 : vector<8x32xf32>
    %476 = arith.mulf %472, %471 : vector<8x32xf32>
    %477 = arith.addf %475, %476 : vector<8x32xf32>
    %478 = math.tanh %477 : vector<8x32xf32>
    %479 = arith.mulf %474, %478 : vector<8x32xf32>
    %c0_93 = arith.constant 0 : index
    %c0_94 = arith.constant 0 : index
    %c0_95 = arith.constant 0 : index
    %480 = vector.load %arg19[%c0_93, %c0_94, %c0_95] : memref<8x8x64xf32, #tpu.memory_space<vmem>>, vector<1x8x32xf32>
    %481 = vector.shape_cast %480 : vector<1x8x32xf32> to vector<8x32xf32>
    %482 = vector.shape_cast %458 : vector<8x32xf32> to vector<1x8x32xf32>
    tpu.vector_store %arg19[%c0_93, %c0_94, %c0_95], %482 {strides = array<i32>} : memref<8x8x64xf32, #tpu.memory_space<vmem>>, vector<1x8x32xf32>,
    %c7_96 = arith.constant 7 : index
    %c0_97 = arith.constant 0 : index
    %c32_98 = arith.constant 32 : index
    %483 = vector.load %arg19[%c7_96, %c0_97, %c32_98] : memref<8x8x64xf32, #tpu.memory_space<vmem>>, vector<1x8x32xf32>
    %484 = vector.shape_cast %483 : vector<1x8x32xf32> to vector<8x32xf32>
    %485 = vector.shape_cast %479 : vector<8x32xf32> to vector<1x8x32xf32>
    tpu.vector_store %arg19[%c7_96, %c0_97, %c32_98], %485 {strides = array<i32>} : memref<8x8x64xf32, #tpu.memory_space<vmem>>, vector<1x8x32xf32>,
    %486 = tpu.concatenate %458, %479 in 1 : vector<8x32xf32>, vector<8x32xf32> -> vector<8x64xf32>
    %487 = arith.truncf %486 : vector<8x64xf32> to vector<8x64xbf16>
    %cst_99 = arith.constant dense<0.000000e+00> : vector<8x256xf32>
    %488 = tpu.matmul %487, %430, %cst_99 {dimension_numbers = #tpu.dot_dimension_numbers<[1], [0], [0], [1], [0, 0, 1, 1], [], []>} : vector<8x64xbf16>, vector<64x256xbf16>, vector<8x256xf32> -> vector<8x256xf32>
    %489 = vector.extract_strided_slice %429 {offsets = [1, 0, 0], sizes = [1, 8, 256], strides = [1, 1, 1]} : vector<8x8x256xf32> to vector<1x8x256xf32>
    %490 = vector.shape_cast %489 : vector<1x8x256xf32> to vector<8x256xf32>
    %491 = vector.extract_strided_slice %490 {offsets = [0, 0], sizes = [8, 128], strides = [1, 1]} : vector<8x256xf32> to vector<8x128xf32>
    %492 = vector.extract_strided_slice %488 {offsets = [0, 0], sizes = [8, 128], strides = [1, 1]} : vector<8x256xf32> to vector<8x128xf32>
    %493 = arith.addf %491, %492 : vector<8x128xf32>
    %494 = vector.extract_strided_slice %493 {offsets = [0, 0], sizes = [8, 96], strides = [1, 1]} : vector<8x128xf32> to vector<8x96xf32>
    %495 = arith.negf %494 : vector<8x96xf32>
    %496 = math.exp %495 : vector<8x96xf32>
    %cst_100 = arith.constant 1.000000e+00 : f32
    %497 = vector.broadcast %cst_100 : f32 to vector<8x96xf32>
    %498 = arith.addf %497, %496 : vector<8x96xf32>
    %499 = arith.divf %497, %498 : vector<8x96xf32>
    %500 = vector.extract_strided_slice %493 {offsets = [0, 96], sizes = [8, 32], strides = [1, 1]} : vector<8x128xf32> to vector<8x32xf32>
    %501 = math.tanh %500 : vector<8x32xf32>
    %502 = vector.extract_strided_slice %499 {offsets = [0, 0], sizes = [8, 32], strides = [1, 1]} : vector<8x96xf32> to vector<8x32xf32>
    %503 = vector.extract_strided_slice %499 {offsets = [0, 32], sizes = [8, 32], strides = [1, 1]} : vector<8x96xf32> to vector<8x32xf32>
    %504 = vector.extract_strided_slice %499 {offsets = [0, 64], sizes = [8, 32], strides = [1, 1]} : vector<8x96xf32> to vector<8x32xf32>
    %505 = arith.mulf %503, %456 : vector<8x32xf32>
    %506 = arith.mulf %502, %501 : vector<8x32xf32>
    %507 = arith.addf %505, %506 : vector<8x32xf32>
    %508 = math.tanh %507 : vector<8x32xf32>
    %509 = arith.mulf %504, %508 : vector<8x32xf32>
    %510 = vector.extract_strided_slice %429 {offsets = [6, 0, 0], sizes = [1, 8, 256], strides = [1, 1, 1]} : vector<8x8x256xf32> to vector<1x8x256xf32>
    %511 = vector.shape_cast %510 : vector<1x8x256xf32> to vector<8x256xf32>
    %512 = vector.extract_strided_slice %511 {offsets = [0, 128], sizes = [8, 128], strides = [1, 1]} : vector<8x256xf32> to vector<8x128xf32>
    %513 = vector.extract_strided_slice %488 {offsets = [0, 128], sizes = [8, 128], strides = [1, 1]} : vector<8x256xf32> to vector<8x128xf32>
    %514 = arith.addf %512, %513 : vector<8x128xf32>
    %515 = vector.extract_strided_slice %514 {offsets = [0, 0], sizes = [8, 96], strides = [1, 1]} : vector<8x128xf32> to vector<8x96xf32>
    %516 = arith.negf %515 : vector<8x96xf32>
    %517 = math.exp %516 : vector<8x96xf32>
    %cst_101 = arith.constant 1.000000e+00 : f32
    %518 = vector.broadcast %cst_101 : f32 to vector<8x96xf32>
    %519 = arith.addf %518, %517 : vector<8x96xf32>
    %520 = arith.divf %518, %519 : vector<8x96xf32>
    %521 = vector.extract_strided_slice %514 {offsets = [0, 96], sizes = [8, 32], strides = [1, 1]} : vector<8x128xf32> to vector<8x32xf32>
    %522 = math.tanh %521 : vector<8x32xf32>
    %523 = vector.extract_strided_slice %520 {offsets = [0, 0], sizes = [8, 32], strides = [1, 1]} : vector<8x96xf32> to vector<8x32xf32>
    %524 = vector.extract_strided_slice %520 {offsets = [0, 32], sizes = [8, 32], strides = [1, 1]} : vector<8x96xf32> to vector<8x32xf32>
    %525 = vector.extract_strided_slice %520 {offsets = [0, 64], sizes = [8, 32], strides = [1, 1]} : vector<8x96xf32> to vector<8x32xf32>
    %526 = arith.mulf %524, %477 : vector<8x32xf32>
    %527 = arith.mulf %523, %522 : vector<8x32xf32>
    %528 = arith.addf %526, %527 : vector<8x32xf32>
    %529 = math.tanh %528 : vector<8x32xf32>
    %530 = arith.mulf %525, %529 : vector<8x32xf32>
    %c1_102 = arith.constant 1 : index
    %c0_103 = arith.constant 0 : index
    %c0_104 = arith.constant 0 : index
    %531 = vector.load %arg19[%c1_102, %c0_103, %c0_104] : memref<8x8x64xf32, #tpu.memory_space<vmem>>, vector<1x8x32xf32>
    %532 = vector.shape_cast %531 : vector<1x8x32xf32> to vector<8x32xf32>
    %533 = vector.shape_cast %509 : vector<8x32xf32> to vector<1x8x32xf32>
    tpu.vector_store %arg19[%c1_102, %c0_103, %c0_104], %533 {strides = array<i32>} : memref<8x8x64xf32, #tpu.memory_space<vmem>>, vector<1x8x32xf32>,
    %c6_105 = arith.constant 6 : index
    %c0_106 = arith.constant 0 : index
    %c32_107 = arith.constant 32 : index
    %534 = vector.load %arg19[%c6_105, %c0_106, %c32_107] : memref<8x8x64xf32, #tpu.memory_space<vmem>>, vector<1x8x32xf32>
    %535 = vector.shape_cast %534 : vector<1x8x32xf32> to vector<8x32xf32>
    %536 = vector.shape_cast %530 : vector<8x32xf32> to vector<1x8x32xf32>
    tpu.vector_store %arg19[%c6_105, %c0_106, %c32_107], %536 {strides = array<i32>} : memref<8x8x64xf32, #tpu.memory_space<vmem>>, vector<1x8x32xf32>,
    %537 = tpu.concatenate %509, %530 in 1 : vector<8x32xf32>, vector<8x32xf32> -> vector<8x64xf32>
    %538 = arith.truncf %537 : vector<8x64xf32> to vector<8x64xbf16>
    %cst_108 = arith.constant dense<0.000000e+00> : vector<8x256xf32>
    %539 = tpu.matmul %538, %430, %cst_108 {dimension_numbers = #tpu.dot_dimension_numbers<[1], [0], [0], [1], [0, 0, 1, 1], [], []>} : vector<8x64xbf16>, vector<64x256xbf16>, vector<8x256xf32> -> vector<8x256xf32>
    %540 = vector.extract_strided_slice %429 {offsets = [2, 0, 0], sizes = [1, 8, 256], strides = [1, 1, 1]} : vector<8x8x256xf32> to vector<1x8x256xf32>
    %541 = vector.shape_cast %540 : vector<1x8x256xf32> to vector<8x256xf32>
    %542 = vector.extract_strided_slice %541 {offsets = [0, 0], sizes = [8, 128], strides = [1, 1]} : vector<8x256xf32> to vector<8x128xf32>
    %543 = vector.extract_strided_slice %539 {offsets = [0, 0], sizes = [8, 128], strides = [1, 1]} : vector<8x256xf32> to vector<8x128xf32>
    %544 = arith.addf %542, %543 : vector<8x128xf32>
    %545 = vector.extract_strided_slice %544 {offsets = [0, 0], sizes = [8, 96], strides = [1, 1]} : vector<8x128xf32> to vector<8x96xf32>
    %546 = arith.negf %545 : vector<8x96xf32>
    %547 = math.exp %546 : vector<8x96xf32>
    %cst_109 = arith.constant 1.000000e+00 : f32
    %548 = vector.broadcast %cst_109 : f32 to vector<8x96xf32>
    %549 = arith.addf %548, %547 : vector<8x96xf32>
    %550 = arith.divf %548, %549 : vector<8x96xf32>
    %551 = vector.extract_strided_slice %544 {offsets = [0, 96], sizes = [8, 32], strides = [1, 1]} : vector<8x128xf32> to vector<8x32xf32>
    %552 = math.tanh %551 : vector<8x32xf32>
    %553 = vector.extract_strided_slice %550 {offsets = [0, 0], sizes = [8, 32], strides = [1, 1]} : vector<8x96xf32> to vector<8x32xf32>
    %554 = vector.extract_strided_slice %550 {offsets = [0, 32], sizes = [8, 32], strides = [1, 1]} : vector<8x96xf32> to vector<8x32xf32>
    %555 = vector.extract_strided_slice %550 {offsets = [0, 64], sizes = [8, 32], strides = [1, 1]} : vector<8x96xf32> to vector<8x32xf32>
    %556 = arith.mulf %554, %507 : vector<8x32xf32>
    %557 = arith.mulf %553, %552 : vector<8x32xf32>
    %558 = arith.addf %556, %557 : vector<8x32xf32>
    %559 = math.tanh %558 : vector<8x32xf32>
    %560 = arith.mulf %555, %559 : vector<8x32xf32>
    %561 = vector.extract_strided_slice %429 {offsets = [5, 0, 0], sizes = [1, 8, 256], strides = [1, 1, 1]} : vector<8x8x256xf32> to vector<1x8x256xf32>
    %562 = vector.shape_cast %561 : vector<1x8x256xf32> to vector<8x256xf32>
    %563 = vector.extract_strided_slice %562 {offsets = [0, 128], sizes = [8, 128], strides = [1, 1]} : vector<8x256xf32> to vector<8x128xf32>
    %564 = vector.extract_strided_slice %539 {offsets = [0, 128], sizes = [8, 128], strides = [1, 1]} : vector<8x256xf32> to vector<8x128xf32>
    %565 = arith.addf %563, %564 : vector<8x128xf32>
    %566 = vector.extract_strided_slice %565 {offsets = [0, 0], sizes = [8, 96], strides = [1, 1]} : vector<8x128xf32> to vector<8x96xf32>
    %567 = arith.negf %566 : vector<8x96xf32>
    %568 = math.exp %567 : vector<8x96xf32>
    %cst_110 = arith.constant 1.000000e+00 : f32
    %569 = vector.broadcast %cst_110 : f32 to vector<8x96xf32>
    %570 = arith.addf %569, %568 : vector<8x96xf32>
    %571 = arith.divf %569, %570 : vector<8x96xf32>
    %572 = vector.extract_strided_slice %565 {offsets = [0, 96], sizes = [8, 32], strides = [1, 1]} : vector<8x128xf32> to vector<8x32xf32>
    %573 = math.tanh %572 : vector<8x32xf32>
    %574 = vector.extract_strided_slice %571 {offsets = [0, 0], sizes = [8, 32], strides = [1, 1]} : vector<8x96xf32> to vector<8x32xf32>
    %575 = vector.extract_strided_slice %571 {offsets = [0, 32], sizes = [8, 32], strides = [1, 1]} : vector<8x96xf32> to vector<8x32xf32>
    %576 = vector.extract_strided_slice %571 {offsets = [0, 64], sizes = [8, 32], strides = [1, 1]} : vector<8x96xf32> to vector<8x32xf32>
    %577 = arith.mulf %575, %528 : vector<8x32xf32>
    %578 = arith.mulf %574, %573 : vector<8x32xf32>
    %579 = arith.addf %577, %578 : vector<8x32xf32>
    %580 = math.tanh %579 : vector<8x32xf32>
    %581 = arith.mulf %576, %580 : vector<8x32xf32>
    %c2_111 = arith.constant 2 : index
    %c0_112 = arith.constant 0 : index
    %c0_113 = arith.constant 0 : index
    %582 = vector.load %arg19[%c2_111, %c0_112, %c0_113] : memref<8x8x64xf32, #tpu.memory_space<vmem>>, vector<1x8x32xf32>
    %583 = vector.shape_cast %582 : vector<1x8x32xf32> to vector<8x32xf32>
    %584 = vector.shape_cast %560 : vector<8x32xf32> to vector<1x8x32xf32>
    tpu.vector_store %arg19[%c2_111, %c0_112, %c0_113], %584 {strides = array<i32>} : memref<8x8x64xf32, #tpu.memory_space<vmem>>, vector<1x8x32xf32>,
    %c5_114 = arith.constant 5 : index
    %c0_115 = arith.constant 0 : index
    %c32_116 = arith.constant 32 : index
    %585 = vector.load %arg19[%c5_114, %c0_115, %c32_116] : memref<8x8x64xf32, #tpu.memory_space<vmem>>, vector<1x8x32xf32>
    %586 = vector.shape_cast %585 : vector<1x8x32xf32> to vector<8x32xf32>
    %587 = vector.shape_cast %581 : vector<8x32xf32> to vector<1x8x32xf32>
    tpu.vector_store %arg19[%c5_114, %c0_115, %c32_116], %587 {strides = array<i32>} : memref<8x8x64xf32, #tpu.memory_space<vmem>>, vector<1x8x32xf32>,
    %588 = tpu.concatenate %560, %581 in 1 : vector<8x32xf32>, vector<8x32xf32> -> vector<8x64xf32>
    %589 = arith.truncf %588 : vector<8x64xf32> to vector<8x64xbf16>
    %cst_117 = arith.constant dense<0.000000e+00> : vector<8x256xf32>
    %590 = tpu.matmul %589, %430, %cst_117 {dimension_numbers = #tpu.dot_dimension_numbers<[1], [0], [0], [1], [0, 0, 1, 1], [], []>} : vector<8x64xbf16>, vector<64x256xbf16>, vector<8x256xf32> -> vector<8x256xf32>
    %591 = vector.extract_strided_slice %429 {offsets = [3, 0, 0], sizes = [1, 8, 256], strides = [1, 1, 1]} : vector<8x8x256xf32> to vector<1x8x256xf32>
    %592 = vector.shape_cast %591 : vector<1x8x256xf32> to vector<8x256xf32>
    %593 = vector.extract_strided_slice %592 {offsets = [0, 0], sizes = [8, 128], strides = [1, 1]} : vector<8x256xf32> to vector<8x128xf32>
    %594 = vector.extract_strided_slice %590 {offsets = [0, 0], sizes = [8, 128], strides = [1, 1]} : vector<8x256xf32> to vector<8x128xf32>
    %595 = arith.addf %593, %594 : vector<8x128xf32>
    %596 = vector.extract_strided_slice %595 {offsets = [0, 0], sizes = [8, 96], strides = [1, 1]} : vector<8x128xf32> to vector<8x96xf32>
    %597 = arith.negf %596 : vector<8x96xf32>
    %598 = math.exp %597 : vector<8x96xf32>
    %cst_118 = arith.constant 1.000000e+00 : f32
    %599 = vector.broadcast %cst_118 : f32 to vector<8x96xf32>
    %600 = arith.addf %599, %598 : vector<8x96xf32>
    %601 = arith.divf %599, %600 : vector<8x96xf32>
    %602 = vector.extract_strided_slice %595 {offsets = [0, 96], sizes = [8, 32], strides = [1, 1]} : vector<8x128xf32> to vector<8x32xf32>
    %603 = math.tanh %602 : vector<8x32xf32>
    %604 = vector.extract_strided_slice %601 {offsets = [0, 0], sizes = [8, 32], strides = [1, 1]} : vector<8x96xf32> to vector<8x32xf32>
    %605 = vector.extract_strided_slice %601 {offsets = [0, 32], sizes = [8, 32], strides = [1, 1]} : vector<8x96xf32> to vector<8x32xf32>
    %606 = vector.extract_strided_slice %601 {offsets = [0, 64], sizes = [8, 32], strides = [1, 1]} : vector<8x96xf32> to vector<8x32xf32>
    %607 = arith.mulf %605, %558 : vector<8x32xf32>
    %608 = arith.mulf %604, %603 : vector<8x32xf32>
    %609 = arith.addf %607, %608 : vector<8x32xf32>
    %610 = math.tanh %609 : vector<8x32xf32>
    %611 = arith.mulf %606, %610 : vector<8x32xf32>
    %612 = vector.extract_strided_slice %429 {offsets = [4, 0, 0], sizes = [1, 8, 256], strides = [1, 1, 1]} : vector<8x8x256xf32> to vector<1x8x256xf32>
    %613 = vector.shape_cast %612 : vector<1x8x256xf32> to vector<8x256xf32>
    %614 = vector.extract_strided_slice %613 {offsets = [0, 128], sizes = [8, 128], strides = [1, 1]} : vector<8x256xf32> to vector<8x128xf32>
    %615 = vector.extract_strided_slice %590 {offsets = [0, 128], sizes = [8, 128], strides = [1, 1]} : vector<8x256xf32> to vector<8x128xf32>
    %616 = arith.addf %614, %615 : vector<8x128xf32>
    %617 = vector.extract_strided_slice %616 {offsets = [0, 0], sizes = [8, 96], strides = [1, 1]} : vector<8x128xf32> to vector<8x96xf32>
    %618 = arith.negf %617 : vector<8x96xf32>
    %619 = math.exp %618 : vector<8x96xf32>
    %cst_119 = arith.constant 1.000000e+00 : f32
    %620 = vector.broadcast %cst_119 : f32 to vector<8x96xf32>
    %621 = arith.addf %620, %619 : vector<8x96xf32>
    %622 = arith.divf %620, %621 : vector<8x96xf32>
    %623 = vector.extract_strided_slice %616 {offsets = [0, 96], sizes = [8, 32], strides = [1, 1]} : vector<8x128xf32> to vector<8x32xf32>
    %624 = math.tanh %623 : vector<8x32xf32>
    %625 = vector.extract_strided_slice %622 {offsets = [0, 0], sizes = [8, 32], strides = [1, 1]} : vector<8x96xf32> to vector<8x32xf32>
    %626 = vector.extract_strided_slice %622 {offsets = [0, 32], sizes = [8, 32], strides = [1, 1]} : vector<8x96xf32> to vector<8x32xf32>
    %627 = vector.extract_strided_slice %622 {offsets = [0, 64], sizes = [8, 32], strides = [1, 1]} : vector<8x96xf32> to vector<8x32xf32>
    %628 = arith.mulf %626, %579 : vector<8x32xf32>
    %629 = arith.mulf %625, %624 : vector<8x32xf32>
    %630 = arith.addf %628, %629 : vector<8x32xf32>
    %631 = math.tanh %630 : vector<8x32xf32>
    %632 = arith.mulf %627, %631 : vector<8x32xf32>
    %c3_120 = arith.constant 3 : index
    %c0_121 = arith.constant 0 : index
    %c0_122 = arith.constant 0 : index
    %633 = vector.load %arg19[%c3_120, %c0_121, %c0_122] : memref<8x8x64xf32, #tpu.memory_space<vmem>>, vector<1x8x32xf32>
    %634 = vector.shape_cast %633 : vector<1x8x32xf32> to vector<8x32xf32>
    %635 = vector.shape_cast %611 : vector<8x32xf32> to vector<1x8x32xf32>
    tpu.vector_store %arg19[%c3_120, %c0_121, %c0_122], %635 {strides = array<i32>} : memref<8x8x64xf32, #tpu.memory_space<vmem>>, vector<1x8x32xf32>,
    %c4_123 = arith.constant 4 : index
    %c0_124 = arith.constant 0 : index
    %c32_125 = arith.constant 32 : index
    %636 = vector.load %arg19[%c4_123, %c0_124, %c32_125] : memref<8x8x64xf32, #tpu.memory_space<vmem>>, vector<1x8x32xf32>
    %637 = vector.shape_cast %636 : vector<1x8x32xf32> to vector<8x32xf32>
    %638 = vector.shape_cast %632 : vector<8x32xf32> to vector<1x8x32xf32>
    tpu.vector_store %arg19[%c4_123, %c0_124, %c32_125], %638 {strides = array<i32>} : memref<8x8x64xf32, #tpu.memory_space<vmem>>, vector<1x8x32xf32>,
    %639 = tpu.concatenate %611, %632 in 1 : vector<8x32xf32>, vector<8x32xf32> -> vector<8x64xf32>
    %640 = arith.truncf %639 : vector<8x64xf32> to vector<8x64xbf16>
    %cst_126 = arith.constant dense<0.000000e+00> : vector<8x256xf32>
    %641 = tpu.matmul %640, %430, %cst_126 {dimension_numbers = #tpu.dot_dimension_numbers<[1], [0], [0], [1], [0, 0, 1, 1], [], []>} : vector<8x64xbf16>, vector<64x256xbf16>, vector<8x256xf32> -> vector<8x256xf32>
    %642 = vector.extract_strided_slice %429 {offsets = [4, 0, 0], sizes = [1, 8, 256], strides = [1, 1, 1]} : vector<8x8x256xf32> to vector<1x8x256xf32>
    %643 = vector.shape_cast %642 : vector<1x8x256xf32> to vector<8x256xf32>
    %644 = vector.extract_strided_slice %643 {offsets = [0, 0], sizes = [8, 128], strides = [1, 1]} : vector<8x256xf32> to vector<8x128xf32>
    %645 = vector.extract_strided_slice %641 {offsets = [0, 0], sizes = [8, 128], strides = [1, 1]} : vector<8x256xf32> to vector<8x128xf32>
    %646 = arith.addf %644, %645 : vector<8x128xf32>
    %647 = vector.extract_strided_slice %646 {offsets = [0, 0], sizes = [8, 96], strides = [1, 1]} : vector<8x128xf32> to vector<8x96xf32>
    %648 = arith.negf %647 : vector<8x96xf32>
    %649 = math.exp %648 : vector<8x96xf32>
    %cst_127 = arith.constant 1.000000e+00 : f32
    %650 = vector.broadcast %cst_127 : f32 to vector<8x96xf32>
    %651 = arith.addf %650, %649 : vector<8x96xf32>
    %652 = arith.divf %650, %651 : vector<8x96xf32>
    %653 = vector.extract_strided_slice %646 {offsets = [0, 96], sizes = [8, 32], strides = [1, 1]} : vector<8x128xf32> to vector<8x32xf32>
    %654 = math.tanh %653 : vector<8x32xf32>
    %655 = vector.extract_strided_slice %652 {offsets = [0, 0], sizes = [8, 32], strides = [1, 1]} : vector<8x96xf32> to vector<8x32xf32>
    %656 = vector.extract_strided_slice %652 {offsets = [0, 32], sizes = [8, 32], strides = [1, 1]} : vector<8x96xf32> to vector<8x32xf32>
    %657 = vector.extract_strided_slice %652 {offsets = [0, 64], sizes = [8, 32], strides = [1, 1]} : vector<8x96xf32> to vector<8x32xf32>
    %658 = arith.mulf %656, %609 : vector<8x32xf32>
    %659 = arith.mulf %655, %654 : vector<8x32xf32>
    %660 = arith.addf %658, %659 : vector<8x32xf32>
    %661 = math.tanh %660 : vector<8x32xf32>
    %662 = arith.mulf %657, %661 : vector<8x32xf32>
    %663 = vector.extract_strided_slice %429 {offsets = [3, 0, 0], sizes = [1, 8, 256], strides = [1, 1, 1]} : vector<8x8x256xf32> to vector<1x8x256xf32>
    %664 = vector.shape_cast %663 : vector<1x8x256xf32> to vector<8x256xf32>
    %665 = vector.extract_strided_slice %664 {offsets = [0, 128], sizes = [8, 128], strides = [1, 1]} : vector<8x256xf32> to vector<8x128xf32>
    %666 = vector.extract_strided_slice %641 {offsets = [0, 128], sizes = [8, 128], strides = [1, 1]} : vector<8x256xf32> to vector<8x128xf32>
    %667 = arith.addf %665, %666 : vector<8x128xf32>
    %668 = vector.extract_strided_slice %667 {offsets = [0, 0], sizes = [8, 96], strides = [1, 1]} : vector<8x128xf32> to vector<8x96xf32>
    %669 = arith.negf %668 : vector<8x96xf32>
    %670 = math.exp %669 : vector<8x96xf32>
    %cst_128 = arith.constant 1.000000e+00 : f32
    %671 = vector.broadcast %cst_128 : f32 to vector<8x96xf32>
    %672 = arith.addf %671, %670 : vector<8x96xf32>
    %673 = arith.divf %671, %672 : vector<8x96xf32>
    %674 = vector.extract_strided_slice %667 {offsets = [0, 96], sizes = [8, 32], strides = [1, 1]} : vector<8x128xf32> to vector<8x32xf32>
    %675 = math.tanh %674 : vector<8x32xf32>
    %676 = vector.extract_strided_slice %673 {offsets = [0, 0], sizes = [8, 32], strides = [1, 1]} : vector<8x96xf32> to vector<8x32xf32>
    %677 = vector.extract_strided_slice %673 {offsets = [0, 32], sizes = [8, 32], strides = [1, 1]} : vector<8x96xf32> to vector<8x32xf32>
    %678 = vector.extract_strided_slice %673 {offsets = [0, 64], sizes = [8, 32], strides = [1, 1]} : vector<8x96xf32> to vector<8x32xf32>
    %679 = arith.mulf %677, %630 : vector<8x32xf32>
    %680 = arith.mulf %676, %675 : vector<8x32xf32>
    %681 = arith.addf %679, %680 : vector<8x32xf32>
    %682 = math.tanh %681 : vector<8x32xf32>
    %683 = arith.mulf %678, %682 : vector<8x32xf32>
    %c4_129 = arith.constant 4 : index
    %c0_130 = arith.constant 0 : index
    %c0_131 = arith.constant 0 : index
    %684 = vector.load %arg19[%c4_129, %c0_130, %c0_131] : memref<8x8x64xf32, #tpu.memory_space<vmem>>, vector<1x8x32xf32>
    %685 = vector.shape_cast %684 : vector<1x8x32xf32> to vector<8x32xf32>
    %686 = vector.shape_cast %662 : vector<8x32xf32> to vector<1x8x32xf32>
    tpu.vector_store %arg19[%c4_129, %c0_130, %c0_131], %686 {strides = array<i32>} : memref<8x8x64xf32, #tpu.memory_space<vmem>>, vector<1x8x32xf32>,
    %c3_132 = arith.constant 3 : index
    %c0_133 = arith.constant 0 : index
    %c32_134 = arith.constant 32 : index
    %687 = vector.load %arg19[%c3_132, %c0_133, %c32_134] : memref<8x8x64xf32, #tpu.memory_space<vmem>>, vector<1x8x32xf32>
    %688 = vector.shape_cast %687 : vector<1x8x32xf32> to vector<8x32xf32>
    %689 = vector.shape_cast %683 : vector<8x32xf32> to vector<1x8x32xf32>
    tpu.vector_store %arg19[%c3_132, %c0_133, %c32_134], %689 {strides = array<i32>} : memref<8x8x64xf32, #tpu.memory_space<vmem>>, vector<1x8x32xf32>,
    %690 = tpu.concatenate %662, %683 in 1 : vector<8x32xf32>, vector<8x32xf32> -> vector<8x64xf32>
    %691 = arith.truncf %690 : vector<8x64xf32> to vector<8x64xbf16>
    %cst_135 = arith.constant dense<0.000000e+00> : vector<8x256xf32>
    %692 = tpu.matmul %691, %430, %cst_135 {dimension_numbers = #tpu.dot_dimension_numbers<[1], [0], [0], [1], [0, 0, 1, 1], [], []>} : vector<8x64xbf16>, vector<64x256xbf16>, vector<8x256xf32> -> vector<8x256xf32>
    %693 = vector.extract_strided_slice %429 {offsets = [5, 0, 0], sizes = [1, 8, 256], strides = [1, 1, 1]} : vector<8x8x256xf32> to vector<1x8x256xf32>
    %694 = vector.shape_cast %693 : vector<1x8x256xf32> to vector<8x256xf32>
    %695 = vector.extract_strided_slice %694 {offsets = [0, 0], sizes = [8, 128], strides = [1, 1]} : vector<8x256xf32> to vector<8x128xf32>
    %696 = vector.extract_strided_slice %692 {offsets = [0, 0], sizes = [8, 128], strides = [1, 1]} : vector<8x256xf32> to vector<8x128xf32>
    %697 = arith.addf %695, %696 : vector<8x128xf32>
    %698 = vector.extract_strided_slice %697 {offsets = [0, 0], sizes = [8, 96], strides = [1, 1]} : vector<8x128xf32> to vector<8x96xf32>
    %699 = arith.negf %698 : vector<8x96xf32>
    %700 = math.exp %699 : vector<8x96xf32>
    %cst_136 = arith.constant 1.000000e+00 : f32
    %701 = vector.broadcast %cst_136 : f32 to vector<8x96xf32>
    %702 = arith.addf %701, %700 : vector<8x96xf32>
    %703 = arith.divf %701, %702 : vector<8x96xf32>
    %704 = vector.extract_strided_slice %697 {offsets = [0, 96], sizes = [8, 32], strides = [1, 1]} : vector<8x128xf32> to vector<8x32xf32>
    %705 = math.tanh %704 : vector<8x32xf32>
    %706 = vector.extract_strided_slice %703 {offsets = [0, 0], sizes = [8, 32], strides = [1, 1]} : vector<8x96xf32> to vector<8x32xf32>
    %707 = vector.extract_strided_slice %703 {offsets = [0, 32], sizes = [8, 32], strides = [1, 1]} : vector<8x96xf32> to vector<8x32xf32>
    %708 = vector.extract_strided_slice %703 {offsets = [0, 64], sizes = [8, 32], strides = [1, 1]} : vector<8x96xf32> to vector<8x32xf32>
    %709 = arith.mulf %707, %660 : vector<8x32xf32>
    %710 = arith.mulf %706, %705 : vector<8x32xf32>
    %711 = arith.addf %709, %710 : vector<8x32xf32>
    %712 = math.tanh %711 : vector<8x32xf32>
    %713 = arith.mulf %708, %712 : vector<8x32xf32>
    %714 = vector.extract_strided_slice %429 {offsets = [2, 0, 0], sizes = [1, 8, 256], strides = [1, 1, 1]} : vector<8x8x256xf32> to vector<1x8x256xf32>
    %715 = vector.shape_cast %714 : vector<1x8x256xf32> to vector<8x256xf32>
    %716 = vector.extract_strided_slice %715 {offsets = [0, 128], sizes = [8, 128], strides = [1, 1]} : vector<8x256xf32> to vector<8x128xf32>
    %717 = vector.extract_strided_slice %692 {offsets = [0, 128], sizes = [8, 128], strides = [1, 1]} : vector<8x256xf32> to vector<8x128xf32>
    %718 = arith.addf %716, %717 : vector<8x128xf32>
    %719 = vector.extract_strided_slice %718 {offsets = [0, 0], sizes = [8, 96], strides = [1, 1]} : vector<8x128xf32> to vector<8x96xf32>
    %720 = arith.negf %719 : vector<8x96xf32>
    %721 = math.exp %720 : vector<8x96xf32>
    %cst_137 = arith.constant 1.000000e+00 : f32
    %722 = vector.broadcast %cst_137 : f32 to vector<8x96xf32>
    %723 = arith.addf %722, %721 : vector<8x96xf32>
    %724 = arith.divf %722, %723 : vector<8x96xf32>
    %725 = vector.extract_strided_slice %718 {offsets = [0, 96], sizes = [8, 32], strides = [1, 1]} : vector<8x128xf32> to vector<8x32xf32>
    %726 = math.tanh %725 : vector<8x32xf32>
    %727 = vector.extract_strided_slice %724 {offsets = [0, 0], sizes = [8, 32], strides = [1, 1]} : vector<8x96xf32> to vector<8x32xf32>
    %728 = vector.extract_strided_slice %724 {offsets = [0, 32], sizes = [8, 32], strides = [1, 1]} : vector<8x96xf32> to vector<8x32xf32>
    %729 = vector.extract_strided_slice %724 {offsets = [0, 64], sizes = [8, 32], strides = [1, 1]} : vector<8x96xf32> to vector<8x32xf32>
    %730 = arith.mulf %728, %681 : vector<8x32xf32>
    %731 = arith.mulf %727, %726 : vector<8x32xf32>
    %732 = arith.addf %730, %731 : vector<8x32xf32>
    %733 = math.tanh %732 : vector<8x32xf32>
    %734 = arith.mulf %729, %733 : vector<8x32xf32>
    %c5_138 = arith.constant 5 : index
    %c0_139 = arith.constant 0 : index
    %c0_140 = arith.constant 0 : index
    %735 = vector.load %arg19[%c5_138, %c0_139, %c0_140] : memref<8x8x64xf32, #tpu.memory_space<vmem>>, vector<1x8x32xf32>
    %736 = vector.shape_cast %735 : vector<1x8x32xf32> to vector<8x32xf32>
    %737 = vector.shape_cast %713 : vector<8x32xf32> to vector<1x8x32xf32>
    tpu.vector_store %arg19[%c5_138, %c0_139, %c0_140], %737 {strides = array<i32>} : memref<8x8x64xf32, #tpu.memory_space<vmem>>, vector<1x8x32xf32>,
    %c2_141 = arith.constant 2 : index
    %c0_142 = arith.constant 0 : index
    %c32_143 = arith.constant 32 : index
    %738 = vector.load %arg19[%c2_141, %c0_142, %c32_143] : memref<8x8x64xf32, #tpu.memory_space<vmem>>, vector<1x8x32xf32>
    %739 = vector.shape_cast %738 : vector<1x8x32xf32> to vector<8x32xf32>
    %740 = vector.shape_cast %734 : vector<8x32xf32> to vector<1x8x32xf32>
    tpu.vector_store %arg19[%c2_141, %c0_142, %c32_143], %740 {strides = array<i32>} : memref<8x8x64xf32, #tpu.memory_space<vmem>>, vector<1x8x32xf32>,
    %741 = tpu.concatenate %713, %734 in 1 : vector<8x32xf32>, vector<8x32xf32> -> vector<8x64xf32>
    %742 = arith.truncf %741 : vector<8x64xf32> to vector<8x64xbf16>
    %cst_144 = arith.constant dense<0.000000e+00> : vector<8x256xf32>
    %743 = tpu.matmul %742, %430, %cst_144 {dimension_numbers = #tpu.dot_dimension_numbers<[1], [0], [0], [1], [0, 0, 1, 1], [], []>} : vector<8x64xbf16>, vector<64x256xbf16>, vector<8x256xf32> -> vector<8x256xf32>
    %744 = vector.extract_strided_slice %429 {offsets = [6, 0, 0], sizes = [1, 8, 256], strides = [1, 1, 1]} : vector<8x8x256xf32> to vector<1x8x256xf32>
    %745 = vector.shape_cast %744 : vector<1x8x256xf32> to vector<8x256xf32>
    %746 = vector.extract_strided_slice %745 {offsets = [0, 0], sizes = [8, 128], strides = [1, 1]} : vector<8x256xf32> to vector<8x128xf32>
    %747 = vector.extract_strided_slice %743 {offsets = [0, 0], sizes = [8, 128], strides = [1, 1]} : vector<8x256xf32> to vector<8x128xf32>
    %748 = arith.addf %746, %747 : vector<8x128xf32>
    %749 = vector.extract_strided_slice %748 {offsets = [0, 0], sizes = [8, 96], strides = [1, 1]} : vector<8x128xf32> to vector<8x96xf32>
    %750 = arith.negf %749 : vector<8x96xf32>
    %751 = math.exp %750 : vector<8x96xf32>
    %cst_145 = arith.constant 1.000000e+00 : f32
    %752 = vector.broadcast %cst_145 : f32 to vector<8x96xf32>
    %753 = arith.addf %752, %751 : vector<8x96xf32>
    %754 = arith.divf %752, %753 : vector<8x96xf32>
    %755 = vector.extract_strided_slice %748 {offsets = [0, 96], sizes = [8, 32], strides = [1, 1]} : vector<8x128xf32> to vector<8x32xf32>
    %756 = math.tanh %755 : vector<8x32xf32>
    %757 = vector.extract_strided_slice %754 {offsets = [0, 0], sizes = [8, 32], strides = [1, 1]} : vector<8x96xf32> to vector<8x32xf32>
    %758 = vector.extract_strided_slice %754 {offsets = [0, 32], sizes = [8, 32], strides = [1, 1]} : vector<8x96xf32> to vector<8x32xf32>
    %759 = vector.extract_strided_slice %754 {offsets = [0, 64], sizes = [8, 32], strides = [1, 1]} : vector<8x96xf32> to vector<8x32xf32>
    %760 = arith.mulf %758, %711 : vector<8x32xf32>
    %761 = arith.mulf %757, %756 : vector<8x32xf32>
    %762 = arith.addf %760, %761 : vector<8x32xf32>
    %763 = math.tanh %762 : vector<8x32xf32>
    %764 = arith.mulf %759, %763 : vector<8x32xf32>
    %765 = vector.extract_strided_slice %429 {offsets = [1, 0, 0], sizes = [1, 8, 256], strides = [1, 1, 1]} : vector<8x8x256xf32> to vector<1x8x256xf32>
    %766 = vector.shape_cast %765 : vector<1x8x256xf32> to vector<8x256xf32>
    %767 = vector.extract_strided_slice %766 {offsets = [0, 128], sizes = [8, 128], strides = [1, 1]} : vector<8x256xf32> to vector<8x128xf32>
    %768 = vector.extract_strided_slice %743 {offsets = [0, 128], sizes = [8, 128], strides = [1, 1]} : vector<8x256xf32> to vector<8x128xf32>
    %769 = arith.addf %767, %768 : vector<8x128xf32>
    %770 = vector.extract_strided_slice %769 {offsets = [0, 0], sizes = [8, 96], strides = [1, 1]} : vector<8x128xf32> to vector<8x96xf32>
    %771 = arith.negf %770 : vector<8x96xf32>
    %772 = math.exp %771 : vector<8x96xf32>
    %cst_146 = arith.constant 1.000000e+00 : f32
    %773 = vector.broadcast %cst_146 : f32 to vector<8x96xf32>
    %774 = arith.addf %773, %772 : vector<8x96xf32>
    %775 = arith.divf %773, %774 : vector<8x96xf32>
    %776 = vector.extract_strided_slice %769 {offsets = [0, 96], sizes = [8, 32], strides = [1, 1]} : vector<8x128xf32> to vector<8x32xf32>
    %777 = math.tanh %776 : vector<8x32xf32>
    %778 = vector.extract_strided_slice %775 {offsets = [0, 0], sizes = [8, 32], strides = [1, 1]} : vector<8x96xf32> to vector<8x32xf32>
    %779 = vector.extract_strided_slice %775 {offsets = [0, 32], sizes = [8, 32], strides = [1, 1]} : vector<8x96xf32> to vector<8x32xf32>
    %780 = vector.extract_strided_slice %775 {offsets = [0, 64], sizes = [8, 32], strides = [1, 1]} : vector<8x96xf32> to vector<8x32xf32>
    %781 = arith.mulf %779, %732 : vector<8x32xf32>
    %782 = arith.mulf %778, %777 : vector<8x32xf32>
    %783 = arith.addf %781, %782 : vector<8x32xf32>
    %784 = math.tanh %783 : vector<8x32xf32>
    %785 = arith.mulf %780, %784 : vector<8x32xf32>
    %c6_147 = arith.constant 6 : index
    %c0_148 = arith.constant 0 : index
    %c0_149 = arith.constant 0 : index
    %786 = vector.load %arg19[%c6_147, %c0_148, %c0_149] : memref<8x8x64xf32, #tpu.memory_space<vmem>>, vector<1x8x32xf32>
    %787 = vector.shape_cast %786 : vector<1x8x32xf32> to vector<8x32xf32>
    %788 = vector.shape_cast %764 : vector<8x32xf32> to vector<1x8x32xf32>
    tpu.vector_store %arg19[%c6_147, %c0_148, %c0_149], %788 {strides = array<i32>} : memref<8x8x64xf32, #tpu.memory_space<vmem>>, vector<1x8x32xf32>,
    %c1_150 = arith.constant 1 : index
    %c0_151 = arith.constant 0 : index
    %c32_152 = arith.constant 32 : index
    %789 = vector.load %arg19[%c1_150, %c0_151, %c32_152] : memref<8x8x64xf32, #tpu.memory_space<vmem>>, vector<1x8x32xf32>
    %790 = vector.shape_cast %789 : vector<1x8x32xf32> to vector<8x32xf32>
    %791 = vector.shape_cast %785 : vector<8x32xf32> to vector<1x8x32xf32>
    tpu.vector_store %arg19[%c1_150, %c0_151, %c32_152], %791 {strides = array<i32>} : memref<8x8x64xf32, #tpu.memory_space<vmem>>, vector<1x8x32xf32>,
    %792 = tpu.concatenate %764, %785 in 1 : vector<8x32xf32>, vector<8x32xf32> -> vector<8x64xf32>
    %793 = arith.truncf %792 : vector<8x64xf32> to vector<8x64xbf16>
    %cst_153 = arith.constant dense<0.000000e+00> : vector<8x256xf32>
    %794 = tpu.matmul %793, %430, %cst_153 {dimension_numbers = #tpu.dot_dimension_numbers<[1], [0], [0], [1], [0, 0, 1, 1], [], []>} : vector<8x64xbf16>, vector<64x256xbf16>, vector<8x256xf32> -> vector<8x256xf32>
    %795 = vector.extract_strided_slice %429 {offsets = [7, 0, 0], sizes = [1, 8, 256], strides = [1, 1, 1]} : vector<8x8x256xf32> to vector<1x8x256xf32>
    %796 = vector.shape_cast %795 : vector<1x8x256xf32> to vector<8x256xf32>
    %797 = vector.extract_strided_slice %796 {offsets = [0, 0], sizes = [8, 128], strides = [1, 1]} : vector<8x256xf32> to vector<8x128xf32>
    %798 = vector.extract_strided_slice %794 {offsets = [0, 0], sizes = [8, 128], strides = [1, 1]} : vector<8x256xf32> to vector<8x128xf32>
    %799 = arith.addf %797, %798 : vector<8x128xf32>
    %800 = vector.extract_strided_slice %799 {offsets = [0, 0], sizes = [8, 96], strides = [1, 1]} : vector<8x128xf32> to vector<8x96xf32>
    %801 = arith.negf %800 : vector<8x96xf32>
    %802 = math.exp %801 : vector<8x96xf32>
    %cst_154 = arith.constant 1.000000e+00 : f32
    %803 = vector.broadcast %cst_154 : f32 to vector<8x96xf32>
    %804 = arith.addf %803, %802 : vector<8x96xf32>
    %805 = arith.divf %803, %804 : vector<8x96xf32>
    %806 = vector.extract_strided_slice %799 {offsets = [0, 96], sizes = [8, 32], strides = [1, 1]} : vector<8x128xf32> to vector<8x32xf32>
    %807 = math.tanh %806 : vector<8x32xf32>
    %808 = vector.extract_strided_slice %805 {offsets = [0, 0], sizes = [8, 32], strides = [1, 1]} : vector<8x96xf32> to vector<8x32xf32>
    %809 = vector.extract_strided_slice %805 {offsets = [0, 32], sizes = [8, 32], strides = [1, 1]} : vector<8x96xf32> to vector<8x32xf32>
    %810 = vector.extract_strided_slice %805 {offsets = [0, 64], sizes = [8, 32], strides = [1, 1]} : vector<8x96xf32> to vector<8x32xf32>
    %811 = arith.mulf %809, %762 : vector<8x32xf32>
    %812 = arith.mulf %808, %807 : vector<8x32xf32>
    %813 = arith.addf %811, %812 : vector<8x32xf32>
    %814 = math.tanh %813 : vector<8x32xf32>
    %815 = arith.mulf %810, %814 : vector<8x32xf32>
    %816 = vector.extract_strided_slice %429 {offsets = [0, 0, 0], sizes = [1, 8, 256], strides = [1, 1, 1]} : vector<8x8x256xf32> to vector<1x8x256xf32>
    %817 = vector.shape_cast %816 : vector<1x8x256xf32> to vector<8x256xf32>
    %818 = vector.extract_strided_slice %817 {offsets = [0, 128], sizes = [8, 128], strides = [1, 1]} : vector<8x256xf32> to vector<8x128xf32>
    %819 = vector.extract_strided_slice %794 {offsets = [0, 128], sizes = [8, 128], strides = [1, 1]} : vector<8x256xf32> to vector<8x128xf32>
    %820 = arith.addf %818, %819 : vector<8x128xf32>
    %821 = vector.extract_strided_slice %820 {offsets = [0, 0], sizes = [8, 96], strides = [1, 1]} : vector<8x128xf32> to vector<8x96xf32>
    %822 = arith.negf %821 : vector<8x96xf32>
    %823 = math.exp %822 : vector<8x96xf32>
    %cst_155 = arith.constant 1.000000e+00 : f32
    %824 = vector.broadcast %cst_155 : f32 to vector<8x96xf32>
    %825 = arith.addf %824, %823 : vector<8x96xf32>
    %826 = arith.divf %824, %825 : vector<8x96xf32>
    %827 = vector.extract_strided_slice %820 {offsets = [0, 96], sizes = [8, 32], strides = [1, 1]} : vector<8x128xf32> to vector<8x32xf32>
    %828 = math.tanh %827 : vector<8x32xf32>
    %829 = vector.extract_strided_slice %826 {offsets = [0, 0], sizes = [8, 32], strides = [1, 1]} : vector<8x96xf32> to vector<8x32xf32>
    %830 = vector.extract_strided_slice %826 {offsets = [0, 32], sizes = [8, 32], strides = [1, 1]} : vector<8x96xf32> to vector<8x32xf32>
    %831 = vector.extract_strided_slice %826 {offsets = [0, 64], sizes = [8, 32], strides = [1, 1]} : vector<8x96xf32> to vector<8x32xf32>
    %832 = arith.mulf %830, %783 : vector<8x32xf32>
    %833 = arith.mulf %829, %828 : vector<8x32xf32>
    %834 = arith.addf %832, %833 : vector<8x32xf32>
    %835 = math.tanh %834 : vector<8x32xf32>
    %836 = arith.mulf %831, %835 : vector<8x32xf32>
    %c7_156 = arith.constant 7 : index
    %c0_157 = arith.constant 0 : index
    %c0_158 = arith.constant 0 : index
    %837 = vector.load %arg19[%c7_156, %c0_157, %c0_158] : memref<8x8x64xf32, #tpu.memory_space<vmem>>, vector<1x8x32xf32>
    %838 = vector.shape_cast %837 : vector<1x8x32xf32> to vector<8x32xf32>
    %839 = vector.shape_cast %815 : vector<8x32xf32> to vector<1x8x32xf32>
    tpu.vector_store %arg19[%c7_156, %c0_157, %c0_158], %839 {strides = array<i32>} : memref<8x8x64xf32, #tpu.memory_space<vmem>>, vector<1x8x32xf32>,
    %c0_159 = arith.constant 0 : index
    %c0_160 = arith.constant 0 : index
    %c32_161 = arith.constant 32 : index
    %840 = vector.load %arg19[%c0_159, %c0_160, %c32_161] : memref<8x8x64xf32, #tpu.memory_space<vmem>>, vector<1x8x32xf32>
    %841 = vector.shape_cast %840 : vector<1x8x32xf32> to vector<8x32xf32>
    %842 = vector.shape_cast %836 : vector<8x32xf32> to vector<1x8x32xf32>
    tpu.vector_store %arg19[%c0_159, %c0_160, %c32_161], %842 {strides = array<i32>} : memref<8x8x64xf32, #tpu.memory_space<vmem>>, vector<1x8x32xf32>,
    %c0_162 = arith.constant 0 : index
    %c0_163 = arith.constant 0 : index
    %c0_164 = arith.constant 0 : index
    %843 = vector.load %arg19[%c0_162, %c0_163, %c0_164] : memref<8x8x64xf32, #tpu.memory_space<vmem>>, vector<8x8x64xf32>
    %844 = vector.shape_cast %843 : vector<8x8x64xf32> to vector<64x64xf32>
    %845 = arith.truncf %844 : vector<64x64xf32> to vector<64x64xbf16>
    %c0_165 = arith.constant 0 : index
    %c0_166 = arith.constant 0 : index
    %846 = vector.load %arg8[%c0_165, %c0_166] : memref<64x32xbf16, #tpu.memory_space<vmem>>, vector<64x32xbf16>
    %cst_167 = arith.constant dense<0.000000e+00> : vector<64x32xf32>
    %847 = tpu.matmul %845, %846, %cst_167 {dimension_numbers = #tpu.dot_dimension_numbers<[1], [0], [0], [1], [0, 0, 1, 1], [], []>} : vector<64x64xbf16>, vector<64x32xbf16>, vector<64x32xf32> -> vector<64x32xf32>
    %c0_168 = arith.constant 0 : index
    %c0_169 = arith.constant 0 : index
    %848 = vector.load %arg9[%c0_168, %c0_169] : memref<1x32xf32, #tpu.memory_space<vmem>>, vector<1x32xf32>
    %849 = vector.broadcast %848 : vector<1x32xf32> to vector<64x32xf32>
    %850 = arith.addf %847, %849 : vector<64x32xf32>
    %851 = math.tanh %850 : vector<64x32xf32>
    %c0_170 = arith.constant 0 : index
    %c0_171 = arith.constant 0 : index
    %852 = vector.load %arg10[%c0_170, %c0_171] : memref<1x32xf32, #tpu.memory_space<vmem>>, vector<1x32xf32>
    %853 = vector.broadcast %852 : vector<1x32xf32> to vector<64x32xf32>
    %854 = arith.mulf %851, %853 : vector<64x32xf32>
    %cst_172 = arith.constant dense<0.000000e+00> : vector<64xf32>
    %855 = vector.multi_reduction <add>, %854, %cst_172 [1] : vector<64x32xf32> to vector<64xf32>
    %856 = vector.shape_cast %855 : vector<64xf32> to vector<64x1xf32>
    %c0_173 = arith.constant 0 : index
    %c0_174 = arith.constant 0 : index
    %857 = vector.load %arg11[%c0_173, %c0_174] : memref<1x1xf32, #tpu.memory_space<vmem>>, vector<1x1xf32>
    %858 = vector.broadcast %857 : vector<1x1xf32> to vector<64x1xf32>
    %859 = arith.addf %856, %858 : vector<64x1xf32>
    %860 = vector.shape_cast %859 : vector<64x1xf32> to vector<8x8x1xf32>
    %cst_175 = arith.constant dense<0xFF800000> : vector<8x1xf32>
    %861 = vector.multi_reduction <maximumf>, %860, %cst_175 [0] : vector<8x8x1xf32> to vector<8x1xf32>
    %862 = vector.shape_cast %861 : vector<8x1xf32> to vector<1x8x1xf32>
    %863 = vector.broadcast %862 : vector<1x8x1xf32> to vector<8x8x1xf32>
    %864 = arith.subf %860, %863 : vector<8x8x1xf32>
    %865 = math.exp %864 : vector<8x8x1xf32>
    %cst_176 = arith.constant dense<0.000000e+00> : vector<8x1xf32>
    %866 = vector.multi_reduction <add>, %865, %cst_176 [0] : vector<8x8x1xf32> to vector<8x1xf32>
    %867 = vector.shape_cast %866 : vector<8x1xf32> to vector<1x8x1xf32>
    %868 = tpu.reciprocal %867 {approx = true} : vector<1x8x1xf32> -> vector<1x8x1xf32>
    %869 = vector.broadcast %868 : vector<1x8x1xf32> to vector<8x8x1xf32>
    %870 = arith.mulf %865, %869 : vector<8x8x1xf32>
    %871 = vector.broadcast %870 : vector<8x8x1xf32> to vector<8x8x64xf32>
    %872 = arith.mulf %871, %843 : vector<8x8x64xf32>
    %cst_177 = arith.constant dense<0.000000e+00> : vector<8x64xf32>
    %873 = vector.multi_reduction <add>, %872, %cst_177 [0] : vector<8x8x64xf32> to vector<8x64xf32>
    %874 = arith.truncf %873 : vector<8x64xf32> to vector<8x64xbf16>
    %c0_178 = arith.constant 0 : index
    %c0_179 = arith.constant 0 : index
    %875 = vector.load %arg12[%c0_178, %c0_179] : memref<64x32xbf16, #tpu.memory_space<vmem>>, vector<64x32xbf16>
    %cst_180 = arith.constant dense<0.000000e+00> : vector<8x32xf32>
    %876 = tpu.matmul %874, %875, %cst_180 {dimension_numbers = #tpu.dot_dimension_numbers<[1], [0], [0], [1], [0, 0, 1, 1], [], []>} : vector<8x64xbf16>, vector<64x32xbf16>, vector<8x32xf32> -> vector<8x32xf32>
    %c0_181 = arith.constant 0 : index
    %c0_182 = arith.constant 0 : index
    %877 = vector.load %arg13[%c0_181, %c0_182] : memref<1x32xf32, #tpu.memory_space<vmem>>, vector<1x32xf32>
    %878 = vector.broadcast %877 : vector<1x32xf32> to vector<8x32xf32>
    %879 = arith.addf %876, %878 : vector<8x32xf32>
    %cst_183 = arith.constant 0.000000e+00 : f32
    %880 = vector.broadcast %cst_183 : f32 to vector<8x32xf32>
    %881 = arith.maximumf %879, %880 : vector<8x32xf32>
    %882 = arith.truncf %881 : vector<8x32xf32> to vector<8x32xbf16>
    %c0_184 = arith.constant 0 : index
    %c0_185 = arith.constant 0 : index
    %883 = vector.load %arg14[%c0_184, %c0_185] : memref<32x16xbf16, #tpu.memory_space<vmem>>, vector<32x16xbf16>
    %cst_186 = arith.constant dense<0.000000e+00> : vector<8x16xf32>
    %884 = tpu.matmul %882, %883, %cst_186 {dimension_numbers = #tpu.dot_dimension_numbers<[1], [0], [0], [1], [0, 0, 1, 1], [], []>} : vector<8x32xbf16>, vector<32x16xbf16>, vector<8x16xf32> -> vector<8x16xf32>
    %c0_187 = arith.constant 0 : index
    %c0_188 = arith.constant 0 : index
    %885 = vector.load %arg15[%c0_187, %c0_188] : memref<1x16xf32, #tpu.memory_space<vmem>>, vector<1x16xf32>
    %886 = vector.broadcast %885 : vector<1x16xf32> to vector<8x16xf32>
    %887 = arith.addf %884, %886 : vector<8x16xf32>
    %cst_189 = arith.constant 0.000000e+00 : f32
    %888 = vector.broadcast %cst_189 : f32 to vector<8x16xf32>
    %889 = arith.maximumf %887, %888 : vector<8x16xf32>
    %890 = arith.truncf %889 : vector<8x16xf32> to vector<8x16xbf16>
    %c0_190 = arith.constant 0 : index
    %c0_191 = arith.constant 0 : index
    %891 = vector.load %arg16[%c0_190, %c0_191] : memref<16x128xbf16, #tpu.memory_space<vmem>>, vector<16x128xbf16>
    %cst_192 = arith.constant dense<0.000000e+00> : vector<8x128xf32>
    %892 = tpu.matmul %890, %891, %cst_192 {dimension_numbers = #tpu.dot_dimension_numbers<[1], [0], [0], [1], [0, 0, 1, 1], [], []>} : vector<8x16xbf16>, vector<16x128xbf16>, vector<8x128xf32> -> vector<8x128xf32>
    %c0_193 = arith.constant 0 : index
    %c0_194 = arith.constant 0 : index
    %893 = vector.load %arg17[%c0_193, %c0_194] : memref<1x128xf32, #tpu.memory_space<vmem>>, vector<1x128xf32>
    %894 = vector.broadcast %893 : vector<1x128xf32> to vector<8x128xf32>
    %895 = arith.addf %892, %894 : vector<8x128xf32>
    %c0_195 = arith.constant 0 : index
    %c0_196 = arith.constant 0 : index
    %896 = vector.load %arg18[%c0_195, %c0_196] : memref<8x128xf32, #tpu.memory_space<vmem>>, vector<8x128xf32>
    tpu.vector_store %arg18[%c0_195, %c0_196], %895 {strides = array<i32>} : memref<8x128xf32, #tpu.memory_space<vmem>>, vector<8x128xf32>,
    return
  }
  func.func @transform_0(%arg0: i32) -> (i32, i32, i32) {
    %c0_i32 = arith.constant 0 : i32
    %c0_i32_0 = arith.constant 0 : i32
    %c0_i32_1 = arith.constant 0 : i32
    return %c0_i32, %arg0, %c0_i32_0 : i32, i32, i32
  }
  func.func @transform_1(%arg0: i32) -> (i32, i32) {
    %c0_i32 = arith.constant 0 : i32
    %c0_i32_0 = arith.constant 0 : i32
    %c0_i32_1 = arith.constant 0 : i32
    return %c0_i32, %c0_i32_0 : i32, i32
  }
  func.func @transform_2(%arg0: i32) -> (i32, i32) {
    %c0_i32 = arith.constant 0 : i32
    %c0_i32_0 = arith.constant 0 : i32
    %c0_i32_1 = arith.constant 0 : i32
    return %c0_i32, %c0_i32_0 : i32, i32
  }
  func.func @transform_3(%arg0: i32) -> (i32, i32) {
    %c0_i32 = arith.constant 0 : i32
    %c0_i32_0 = arith.constant 0 : i32
    %c0_i32_1 = arith.constant 0 : i32
    return %c0_i32, %c0_i32_0 : i32, i32
  }
  func.func @transform_4(%arg0: i32) -> (i32, i32) {
    %c0_i32 = arith.constant 0 : i32
    %c0_i32_0 = arith.constant 0 : i32
    %c0_i32_1 = arith.constant 0 : i32
    return %c0_i32, %c0_i32_0 : i32, i32
  }
  func.func @transform_5(%arg0: i32) -> (i32, i32) {
    %c0_i32 = arith.constant 0 : i32
    %c0_i32_0 = arith.constant 0 : i32
    %c0_i32_1 = arith.constant 0 : i32
    return %c0_i32, %c0_i32_0 : i32, i32
  }
  func.func @transform_6(%arg0: i32) -> (i32, i32) {
    %c0_i32 = arith.constant 0 : i32
    %c0_i32_0 = arith.constant 0 : i32
    %c0_i32_1 = arith.constant 0 : i32
    return %c0_i32, %c0_i32_0 : i32, i32
  }
  func.func @transform_7(%arg0: i32) -> (i32, i32) {
    %c0_i32 = arith.constant 0 : i32
    %c0_i32_0 = arith.constant 0 : i32
    %c0_i32_1 = arith.constant 0 : i32
    return %c0_i32, %c0_i32_0 : i32, i32
  }
  func.func @transform_8(%arg0: i32) -> (i32, i32) {
    %c0_i32 = arith.constant 0 : i32
    %c0_i32_0 = arith.constant 0 : i32
    %c0_i32_1 = arith.constant 0 : i32
    return %c0_i32, %c0_i32_0 : i32, i32
  }
  func.func @transform_9(%arg0: i32) -> (i32, i32) {
    %c0_i32 = arith.constant 0 : i32
    %c0_i32_0 = arith.constant 0 : i32
    %c0_i32_1 = arith.constant 0 : i32
    return %c0_i32, %c0_i32_0 : i32, i32
  }
  func.func @transform_10(%arg0: i32) -> (i32, i32) {
    %c0_i32 = arith.constant 0 : i32
    %c0_i32_0 = arith.constant 0 : i32
    %c0_i32_1 = arith.constant 0 : i32
    return %c0_i32, %c0_i32_0 : i32, i32
  }
  func.func @transform_11(%arg0: i32) -> (i32, i32) {
    %c0_i32 = arith.constant 0 : i32
    %c0_i32_0 = arith.constant 0 : i32
    %c0_i32_1 = arith.constant 0 : i32
    return %c0_i32, %c0_i32_0 : i32, i32
  }
  func.func @transform_12(%arg0: i32) -> (i32, i32) {
    %c0_i32 = arith.constant 0 : i32
    %c0_i32_0 = arith.constant 0 : i32
    %c0_i32_1 = arith.constant 0 : i32
    return %c0_i32, %c0_i32_0 : i32, i32
  }
  func.func @transform_13(%arg0: i32) -> (i32, i32) {
    %c0_i32 = arith.constant 0 : i32
    %c0_i32_0 = arith.constant 0 : i32
    %c0_i32_1 = arith.constant 0 : i32
    return %c0_i32, %c0_i32_0 : i32, i32
  }
  func.func @transform_14(%arg0: i32) -> (i32, i32) {
    %c0_i32 = arith.constant 0 : i32
    %c0_i32_0 = arith.constant 0 : i32
    %c0_i32_1 = arith.constant 0 : i32
    return %c0_i32, %c0_i32_0 : i32, i32
  }
  func.func @transform_15(%arg0: i32) -> (i32, i32) {
    %c0_i32 = arith.constant 0 : i32
    %c0_i32_0 = arith.constant 0 : i32
    %c0_i32_1 = arith.constant 0 : i32
    return %c0_i32, %c0_i32_0 : i32, i32
  }
  func.func @transform_16(%arg0: i32) -> (i32, i32) {
    %c0_i32 = arith.constant 0 : i32
    %c0_i32_0 = arith.constant 0 : i32
    %c0_i32_1 = arith.constant 0 : i32
    return %c0_i32, %c0_i32_0 : i32, i32
  }
  func.func @transform_17(%arg0: i32) -> (i32, i32) {
    %c0_i32 = arith.constant 0 : i32
    %c0_i32_0 = arith.constant 0 : i32
    return %arg0, %c0_i32 : i32, i32
  }
}

</mosaic_0001>

<llo_original>
// kernel: forward.1
$region0: #{forward.1}
  #allocation0 [shape = 'u32[]', space=smem, size = 0x4, offset = 0x4, fixed_abs, tag = 'smem constant byte address 0x4 - core index']
  #allocation1 [shape = 'u32[144,128]{1,0:T(1,128)}', space=vmem, size = 0x12000, scoped, tag = 'internal scratch']
  #allocation2 [shape = 'f32[8,8,64]{2,1,0:T(8,128)}', space=vmem, size = 0x8000, scoped, tag = 'scratch operand']
  #allocation3 [shape = 'f32[1,1]{1,0:T(1,128)S(1)}', space=vmem, size = 0x200, scoped, tag = 'scoped memory for forward.1']
  %s0 = inlined_call_operand.vmem [shape: bf16[8,8,32], index: 0, kind: input, shape index: {}]
  %s1 = inlined_call_operand.vmem [shape: bf16[32,256], index: 1, kind: input, shape index: {}]
  %s2 = inlined_call_operand.vmem [shape: bf16[64,256], index: 2, kind: input, shape index: {}]
  %s3 = inlined_call_operand.vmem [shape: f32[1,256], index: 3, kind: input, shape index: {}]
  %s4 = inlined_call_operand.vmem [shape: bf16[64,256], index: 4, kind: input, shape index: {}]
  %s5 = inlined_call_operand.vmem [shape: bf16[64,256], index: 5, kind: input, shape index: {}]
  %s6 = inlined_call_operand.vmem [shape: f32[1,256], index: 6, kind: input, shape index: {}]
  %s7 = inlined_call_operand.vmem [shape: bf16[64,32], index: 7, kind: input, shape index: {}]
  %s8 = inlined_call_operand.vmem [shape: f32[1,32], index: 8, kind: input, shape index: {}]
  %s9 = inlined_call_operand.vmem [shape: f32[1,32], index: 9, kind: input, shape index: {}]
  %s10 = inlined_call_operand.<no memory space> [shape: f32[1,1], index: 10, kind: input, shape index: {}]
  %s11 = inlined_call_operand.vmem [shape: bf16[64,32], index: 11, kind: input, shape index: {}]
  %s12 = inlined_call_operand.vmem [shape: f32[1,32], index: 12, kind: input, shape index: {}]
  %s13 = inlined_call_operand.vmem [shape: bf16[32,16], index: 13, kind: input, shape index: {}]
  %s14 = inlined_call_operand.vmem [shape: f32[1,16], index: 14, kind: input, shape index: {}]
  %s15 = inlined_call_operand.vmem [shape: bf16[16,128], index: 15, kind: input, shape index: {}]
  %s16 = inlined_call_operand.vmem [shape: f32[1,128], index: 16, kind: input, shape index: {}]
  %s17 = inlined_call_operand.vmem [shape: f32[8,128], index: 17, kind: output, shape index: {}]
  %s18 = sld [smem:[#allocation0]]
  $region78: #{forward.1} parent=0
    _
  %s20 = ssub.s32 1, %s18
  %s21 = scalar_select 0, %s20, %s18
  %v22 = vstv %s10
  %23 = vst [vmem:[#allocation3] sm:$0x1] %v22
  // Predicated region
  $region2: #{forward.1} parent=0 // pred_check
    _
  $region3: #{forward.1} parent=0 // pred_check_branch
    %25 = sbr.rel (0) target = $region5
  $region4: #{forward.1} parent=0 // pred_region
    _
  $region5: #{forward.1} parent=0 // pred_fallthru
    _
  // Predicated region
  $region6: #{forward.1} parent=0 // pred_check
    _
  $region7: #{forward.1} parent=0 // pred_check_branch
    %27 = sbr.rel (0) target = $region9
  $region8: #{forward.1} parent=0 // pred_region
    _
  $region9: #{forward.1} parent=0 // pred_fallthru
    _
  // Predicated region
  $region10: #{forward.1} parent=0 // pred_check
    _
  $region11: #{forward.1} parent=0 // pred_check_branch
    %29 = sbr.rel (0) target = $region13
  $region12: #{forward.1} parent=0 // pred_region
    _
  $region13: #{forward.1} parent=0 // pred_fallthru
    _
  // Predicated region
  $region14: #{forward.1} parent=0 // pred_check
    _
  $region15: #{forward.1} parent=0 // pred_check_branch
    %31 = sbr.rel (0) target = $region17
  $region16: #{forward.1} parent=0 // pred_region
    _
  $region17: #{forward.1} parent=0 // pred_fallthru
    _
  // Predicated region
  $region18: #{forward.1} parent=0 // pred_check
    _
  $region19: #{forward.1} parent=0 // pred_check_branch
    %33 = sbr.rel (0) target = $region21
  $region20: #{forward.1} parent=0 // pred_region
    _
  $region21: #{forward.1} parent=0 // pred_fallthru
    _
  // Predicated region
  $region22: #{forward.1} parent=0 // pred_check
    _
  $region23: #{forward.1} parent=0 // pred_check_branch
    %35 = sbr.rel (0) target = $region25
  $region24: #{forward.1} parent=0 // pred_region
    _
  $region25: #{forward.1} parent=0 // pred_fallthru
    _
  // Predicated region
  $region26: #{forward.1} parent=0 // pred_check
    _
  $region27: #{forward.1} parent=0 // pred_check_branch
    %37 = sbr.rel (0) target = $region29
  $region28: #{forward.1} parent=0 // pred_region
    _
  $region29: #{forward.1} parent=0 // pred_fallthru
    _
  // Predicated region
  $region30: #{forward.1} parent=0 // pred_check
    _
  $region31: #{forward.1} parent=0 // pred_check_branch
    %39 = sbr.rel (0) target = $region33
  $region32: #{forward.1} parent=0 // pred_region
    _
  $region33: #{forward.1} parent=0 // pred_fallthru
    _
  // Predicated region
  $region34: #{forward.1} parent=0 // pred_check
    _
  $region35: #{forward.1} parent=0 // pred_check_branch
    %41 = sbr.rel (0) target = $region37
  $region36: #{forward.1} parent=0 // pred_region
    _
  $region37: #{forward.1} parent=0 // pred_fallthru
    _
  // Predicated region
  $region38: #{forward.1} parent=0 // pred_check
    _
  $region39: #{forward.1} parent=0 // pred_check_branch
    %43 = sbr.rel (0) target = $region41
  $region40: #{forward.1} parent=0 // pred_region
    _
  $region41: #{forward.1} parent=0 // pred_fallthru
    _
  // Predicated region
  $region42: #{forward.1} parent=0 // pred_check
    _
  $region43: #{forward.1} parent=0 // pred_check_branch
    %45 = sbr.rel (0) target = $region45
  $region44: #{forward.1} parent=0 // pred_region
    _
  $region45: #{forward.1} parent=0 // pred_fallthru
    _
  // Predicated region
  $region46: #{forward.1} parent=0 // pred_check
    _
  $region47: #{forward.1} parent=0 // pred_check_branch
    %47 = sbr.rel (0) target = $region49
  $region48: #{forward.1} parent=0 // pred_region
    _
  $region49: #{forward.1} parent=0 // pred_fallthru
    _
  // Predicated region
  $region50: #{forward.1} parent=0 // pred_check
    _
  $region51: #{forward.1} parent=0 // pred_check_branch
    %49 = sbr.rel (0) target = $region53
  $region52: #{forward.1} parent=0 // pred_region
    _
  $region53: #{forward.1} parent=0 // pred_fallthru
    _
  // Predicated region
  $region54: #{forward.1} parent=0 // pred_check
    _
  $region55: #{forward.1} parent=0 // pred_check_branch
    %51 = sbr.rel (0) target = $region57
  $region56: #{forward.1} parent=0 // pred_region
    _
  $region57: #{forward.1} parent=0 // pred_fallthru
    _
  // Predicated region
  $region58: #{forward.1} parent=0 // pred_check
    _
  $region59: #{forward.1} parent=0 // pred_check_branch
    %53 = sbr.rel (0) target = $region61
  $region60: #{forward.1} parent=0 // pred_region
    _
  $region61: #{forward.1} parent=0 // pred_fallthru
    _
  // Predicated region
  $region62: #{forward.1} parent=0 // pred_check
    _
  $region63: #{forward.1} parent=0 // pred_check_branch
    %55 = sbr.rel (0) target = $region65
  $region64: #{forward.1} parent=0 // pred_region
    _
  $region65: #{forward.1} parent=0 // pred_fallthru
    _
  // Predicated region
  $region66: #{forward.1} parent=0 // pred_check
    _
  $region67: #{forward.1} parent=0 // pred_check_branch
    %57 = sbr.rel (0) target = $region69
  $region68: #{forward.1} parent=0 // pred_region
    _
  $region69: #{forward.1} parent=0 // pred_fallthru
    _
  %v59 = vld [vmem:[%s0] sm:$0xf]
  %v60 = vld [vmem:[%s0 + $0x4] sm:$0xf]
  %v61 = vld [vmem:[%s0 + $0x8] sm:$0xf]
  %v62 = vld [vmem:[%s0 + $0xc] sm:$0xf]
  %v63 = vld [vmem:[%s0 + $0x10] sm:$0xf]
  %v64 = vld [vmem:[%s0 + $0x14] sm:$0xf]
  %v65 = vld [vmem:[%s0 + $0x18] sm:$0xf]
  %v66 = vld [vmem:[%s0 + $0x1c] sm:$0xf]
  %v67 = vld [vmem:[%s1] sm:$0xff]
  %v68 = vld [vmem:[%s1 + $0x8] sm:$0xff]
  %v69 = vld [vmem:[%s1 + $0x10] sm:$0xff]
  %v70 = vld [vmem:[%s1 + $0x18] sm:$0xff]
  %v71 = vld [vmem:[%s3] sm:$0x3]
  %v73 = vlaneseq
  %v74 = vshrl.u32 %v73, 7
  %v75 = vsub.s32 0, %v74
  %v76 = vrot.slane %v71, %v75
  %v77 = vlaneseq
  %v78 = vshrl.u32 %v77, 7
  %v79 = vsub.s32 1, %v78
  %v80 = vrot.slane %v71, %v79
  %v91 = vunpack.c.l.b16 %v59
  %v92 = vunpack.c.l.b16 %v60
  %v93 = vunpack.c.l.b16 %v61
  %v94 = vunpack.c.l.b16 %v62
  %v95 = vunpack.c.l.b16 %v63
  %v96 = vunpack.c.l.b16 %v64
  %v97 = vunpack.c.l.b16 %v65
  %v98 = vunpack.c.l.b16 %v66
  %v99 = vpack.c.b16 %v92, %v91
  %v100 = vpack.c.b16 %v94, %v93
  %v101 = vpack.c.b16 %v96, %v95
  %v102 = vpack.c.b16 %v98, %v97
  %v107 = vunpack.c.l.b16 %v67
  %v108 = vunpack.c.h.b16 %v67
  %v109 = vunpack.c.l.b16 %v68
  %v110 = vunpack.c.h.b16 %v68
  %v111 = vunpack.c.l.b16 %v69
  %v112 = vunpack.c.h.b16 %v69
  %v113 = vunpack.c.l.b16 %v70
  %v114 = vunpack.c.h.b16 %v70
  %v115 = vpack.c.b16 %v109, %v107
  %v116 = vpack.c.b16 %v110, %v108
  %v117 = vpack.c.b16 %v113, %v111
  %v118 = vpack.c.b16 %v114, %v112
  %vm123 = vcmask 261120
  %v125 = vsel %vm123, %v99, 0
  %v128 = vsel %vm123, %v100, 0
  %v131 = vsel %vm123, %v101, 0
  %v134 = vsel %vm123, %v102, 0
  %136 = vmatprep.subr.bf16.mxu0 %v116
  %137 = vmatpush1.bf16.msra.mxu0 %v115
  %138 = vmatprep.subr.bf16.mxu0 %v118
  %139 = vmatpush1.bf16.msra.mxu0 %v117
  %140 = vmatprep.subr.bf16.mxu0 0
  %141 = vmatpush1.bf16.msra.mxu0 0
  %142 = vmatprep.subr.bf16.mxu0 0
  %143 = vmatpush1.bf16.msra.mxu0 0
  %144 = vmatprep.subr.bf16.mxu0 0
  %145 = vmatpush1.bf16.msra.mxu0 0
  %146 = vmatprep.subr.bf16.mxu0 0
  %147 = vmatpush1.bf16.msra.mxu0 0
  %148 = vmatprep.subr.bf16.mxu0 0
  %149 = vmatpush1.bf16.msra.mxu0 0
  %150 = vmatprep.subr.bf16.mxu0 0
  %151 = vmatpush1.bf16.msra.mxu0 0
  %152 = vmatprep.subr.bf16.mxu0 0
  %153 = vmatpush1.bf16.msra.mxu0 0
  %154 = vmatprep.subr.bf16.mxu0 0
  %155 = vmatpush1.bf16.msra.mxu0 0
  %156 = vmatprep.subr.bf16.mxu0 0
  %157 = vmatpush1.bf16.msra.mxu0 0
  %158 = vmatprep.subr.bf16.mxu0 0
  %159 = vmatpush1.bf16.msra.mxu0 0
  %160 = vmatprep.subr.bf16.mxu0 0
  %161 = vmatpush1.bf16.msra.mxu0 0
  %162 = vmatprep.subr.bf16.mxu0 0
  %163 = vmatpush1.bf16.msra.mxu0 0
  %164 = vmatprep.subr.bf16.mxu0 0
  %165 = vmatpush1.bf16.msra.mxu0 0
  %166 = vmatprep.subr.bf16.mxu0 0
  %167 = vmatpush1.bf16.msra.mxu0 0
  %168 = vmatprep.mubr.bf16.mxu0 0
  %169 = vmatmul.mubr.bf16.gmra.mrb[0].mxu0 %v125
  %v170 = vpop.f32.mrb[0].mxu0
  %v171 = vadd.f32 %v76, %v170
  %v172 = vpop.f32.mrb[0].mxu0
  %v173 = vadd.f32 %v80, %v172
  %v174 = vpop.f32.mrb[0].mxu0
  %v175 = vadd.f32 %v76, %v174
  %v176 = vpop.f32.mrb[0].mxu0
  %v177 = vadd.f32 %v80, %v176
  %178 = vmatprep.mubr.bf16.mxu0 0
  %179 = vmatmul.mubr.bf16.gmra.mrb[0].mxu0 %v128
  %v180 = vpop.f32.mrb[0].mxu0
  %v181 = vadd.f32 %v76, %v180
  %v182 = vpop.f32.mrb[0].mxu0
  %v183 = vadd.f32 %v80, %v182
  %v184 = vpop.f32.mrb[0].mxu0
  %v185 = vadd.f32 %v76, %v184
  %v186 = vpop.f32.mrb[0].mxu0
  %v187 = vadd.f32 %v80, %v186
  %188 = vmatprep.mubr.bf16.mxu0 0
  %189 = vmatmul.mubr.bf16.gmra.mrb[0].mxu0 %v131
  %v190 = vpop.f32.mrb[0].mxu0
  %v191 = vadd.f32 %v76, %v190
  %v192 = vpop.f32.mrb[0].mxu0
  %v193 = vadd.f32 %v80, %v192
  %v194 = vpop.f32.mrb[0].mxu0
  %v195 = vadd.f32 %v76, %v194
  %v196 = vpop.f32.mrb[0].mxu0
  %v197 = vadd.f32 %v80, %v196
  %198 = vmatprep.mubr.bf16.mxu0 0
  %199 = vmatmul.mubr.bf16.gmra.mrb[0].mxu0 %v134
  %v200 = vpop.f32.mrb[0].mxu0
  %v201 = vadd.f32 %v76, %v200
  %v202 = vpop.f32.mrb[0].mxu0
  %v203 = vadd.f32 %v80, %v202
  %v204 = vpop.f32.mrb[0].mxu0
  %v205 = vadd.f32 %v76, %v204
  %v206 = vpop.f32.mrb[0].mxu0
  %v207 = vadd.f32 %v80, %v206
  %208 = vdwg.mxu0
  %v209 = vld [vmem:[%s2] sm:$0xff]
  %v210 = vld [vmem:[%s2 + $0x8] sm:$0xff]
  %v211 = vld [vmem:[%s2 + $0x10] sm:$0xff]
  %v212 = vld [vmem:[%s2 + $0x18] sm:$0xff]
  %v213 = vld [vmem:[%s2 + $0x20] sm:$0xff]
  %v214 = vld [vmem:[%s2 + $0x28] sm:$0xff]
  %v215 = vld [vmem:[%s2 + $0x30] sm:$0xff]
  %v216 = vld [vmem:[%s2 + $0x38] sm:$0xff]
  %v217 = vpack.c.bf16 0.0, 0.0
  %v226 = vunpack.c.l.b16 %v209
  %v227 = vunpack.c.h.b16 %v209
  %v228 = vunpack.c.l.b16 %v210
  %v229 = vunpack.c.h.b16 %v210
  %v230 = vunpack.c.l.b16 %v211
  %v231 = vunpack.c.h.b16 %v211
  %v232 = vunpack.c.l.b16 %v212
  %v233 = vunpack.c.h.b16 %v212
  %v234 = vunpack.c.l.b16 %v213
  %v235 = vunpack.c.h.b16 %v213
  %v236 = vunpack.c.l.b16 %v214
  %v237 = vunpack.c.h.b16 %v214
  %v238 = vunpack.c.l.b16 %v215
  %v239 = vunpack.c.h.b16 %v215
  %v240 = vunpack.c.l.b16 %v216
  %v241 = vunpack.c.h.b16 %v216
  %v242 = vpack.c.b16 %v228, %v226
  %v243 = vpack.c.b16 %v229, %v227
  %v244 = vpack.c.b16 %v232, %v230
  %v245 = vpack.c.b16 %v233, %v231
  %v246 = vpack.c.b16 %v236, %v234
  %v247 = vpack.c.b16 %v237, %v235
  %v248 = vpack.c.b16 %v240, %v238
  %v249 = vpack.c.b16 %v241, %v239
  %vm258 = vcmask 523264
  %v260 = vsel %vm258, %v217, 0
  %262 = vmatprep.subr.bf16.mxu0 %v243
  %263 = vmatpush1.bf16.msra.mxu0 %v242
  %264 = vmatprep.subr.bf16.mxu0 %v245
  %265 = vmatpush1.bf16.msra.mxu0 %v244
  %266 = vmatprep.subr.bf16.mxu0 %v247
  %267 = vmatpush1.bf16.msra.mxu0 %v246
  %268 = vmatprep.subr.bf16.mxu0 %v249
  %269 = vmatpush1.bf16.msra.mxu0 %v248
  %270 = vmatprep.subr.bf16.mxu0 0
  %271 = vmatpush1.bf16.msra.mxu0 0
  %272 = vmatprep.subr.bf16.mxu0 0
  %273 = vmatpush1.bf16.msra.mxu0 0
  %274 = vmatprep.subr.bf16.mxu0 0
  %275 = vmatpush1.bf16.msra.mxu0 0
  %276 = vmatprep.subr.bf16.mxu0 0
  %277 = vmatpush1.bf16.msra.mxu0 0
  %278 = vmatprep.subr.bf16.mxu0 0
  %279 = vmatpush1.bf16.msra.mxu0 0
  %280 = vmatprep.subr.bf16.mxu0 0
  %281 = vmatpush1.bf16.msra.mxu0 0
  %282 = vmatprep.subr.bf16.mxu0 0
  %283 = vmatpush1.bf16.msra.mxu0 0
  %284 = vmatprep.subr.bf16.mxu0 0
  %285 = vmatpush1.bf16.msra.mxu0 0
  %286 = vmatprep.subr.bf16.mxu0 0
  %287 = vmatpush1.bf16.msra.mxu0 0
  %288 = vmatprep.subr.bf16.mxu0 0
  %289 = vmatpush1.bf16.msra.mxu0 0
  %290 = vmatprep.subr.bf16.mxu0 0
  %291 = vmatpush1.bf16.msra.mxu0 0
  %292 = vmatprep.subr.bf16.mxu0 0
  %293 = vmatpush1.bf16.msra.mxu0 0
  %294 = vmatprep.mubr.bf16.mxu0 0
  %295 = vmatmul.mubr.bf16.gmra.mrb[0].mxu0 %v260
  %v296 = vpop.f32.mrb[0].mxu0
  %v297 = vadd.f32 0.0, %v296
  %v298 = vpop.f32.mrb[0].mxu0
  %v299 = vadd.f32 0.0, %v298
  %v300 = vpop.f32.mrb[0].mxu0
  %v301 = vpop.f32.mrb[0].mxu0
  %302 = vdwg.mxu0
  %v303 = vadd.f32 %v171, %v297
  %v304 = vxor.u32 %v303, 2147483648
  %v305 = vmul.f32 %v304, 1.442695
  %v306 = vpow.pop %v305
  %v307 = vadd.f32 %v306, 1.0
  %v308 = vrcp.pop %v307
  %v309 = vmul.f32 1.0, %v308
  %v310 = vtanh.pop %v303
  %v311 = vmul.f32 %v309, 0.0
  %313 = vrot.lane.b32.xlu0 %v310, 32
  %v314 = vpop.permute.xlu0 %313
  %v316 = vmul.f32 %v309, %v314
  %318 = vrot.lane.b32.xlu0 %v316, 32
  %v319 = vpop.permute.xlu0 %318
  %v321 = vadd.f32 %v311, %v319
  %v322 = vtanh.pop %v321
  %324 = vrot.lane.b32.xlu0 %v322, 32
  %v325 = vpop.permute.xlu0 %324
  %v327 = vmul.f32 %v309, %v325
  %v328 = vadd.f32 %v207, %v299
  %v329 = vxor.u32 %v328, 2147483648
  %v330 = vmul.f32 %v329, 1.442695
  %v331 = vpow.pop %v330
  %v332 = vadd.f32 %v331, 1.0
  %v333 = vrcp.pop %v332
  %v334 = vmul.f32 1.0, %v333
  %v335 = vtanh.pop %v328
  %v336 = vmul.f32 %v334, 0.0
  %338 = vrot.lane.b32.xlu0 %v335, 32
  %v339 = vpop.permute.xlu0 %338
  %v341 = vmul.f32 %v334, %v339
  %343 = vrot.lane.b32.xlu0 %v341, 32
  %v344 = vpop.permute.xlu0 %343
  %v346 = vadd.f32 %v336, %v344
  %v347 = vtanh.pop %v346
  %349 = vrot.lane.b32.xlu0 %v347, 32
  %v350 = vpop.permute.xlu0 %349
  %v352 = vmul.f32 %v334, %v350
  %354 = vrot.lane.b32.xlu0 %v327, 64
  %v355 = vpop.permute.xlu0 %354
  %357 = vst.msk [vmem:[#allocation2] sm:$0xff] %vm123, %v355
  %359 = vrot.lane.b32.xlu0 %v352, 96
  %v360 = vpop.permute.xlu0 %359
  %s362 = scalar_lea.vmem [#allocation2], 56
  %vm363 = vcmask 523520
  %364 = vst.msk [vmem:[%s362] sm:$0xff] %vm363, %v360
  %v365 = vsel %vm123, %v355, %v360
  %v366 = vpack.c.bf16 %v365, %v365
  %v368 = vsel %vm258, %v366, 0
  %370 = vmatprep.subr.bf16.mxu0 %v243
  %371 = vmatpush1.bf16.msra.mxu0 %v242
  %372 = vmatprep.subr.bf16.mxu0 %v245
  %373 = vmatpush1.bf16.msra.mxu0 %v244
  %374 = vmatprep.subr.bf16.mxu0 %v247
  %375 = vmatpush1.bf16.msra.mxu0 %v246
  %376 = vmatprep.subr.bf16.mxu0 %v249
  %377 = vmatpush1.bf16.msra.mxu0 %v248
  %378 = vmatprep.subr.bf16.mxu0 0
  %379 = vmatpush1.bf16.msra.mxu0 0
  %380 = vmatprep.subr.bf16.mxu0 0
  %381 = vmatpush1.bf16.msra.mxu0 0
  %382 = vmatprep.subr.bf16.mxu0 0
  %383 = vmatpush1.bf16.msra.mxu0 0
  %384 = vmatprep.subr.bf16.mxu0 0
  %385 = vmatpush1.bf16.msra.mxu0 0
  %386 = vmatprep.subr.bf16.mxu0 0
  %387 = vmatpush1.bf16.msra.mxu0 0
  %388 = vmatprep.subr.bf16.mxu0 0
  %389 = vmatpush1.bf16.msra.mxu0 0
  %390 = vmatprep.subr.bf16.mxu0 0
  %391 = vmatpush1.bf16.msra.mxu0 0
  %392 = vmatprep.subr.bf16.mxu0 0
  %393 = vmatpush1.bf16.msra.mxu0 0
  %394 = vmatprep.subr.bf16.mxu0 0
  %395 = vmatpush1.bf16.msra.mxu0 0
  %396 = vmatprep.subr.bf16.mxu0 0
  %397 = vmatpush1.bf16.msra.mxu0 0
  %398 = vmatprep.subr.bf16.mxu0 0
  %399 = vmatpush1.bf16.msra.mxu0 0
  %400 = vmatprep.subr.bf16.mxu0 0
  %401 = vmatpush1.bf16.msra.mxu0 0
  %402 = vmatprep.mubr.bf16.mxu0 0
  %403 = vmatmul.mubr.bf16.gmra.mrb[0].mxu0 %v368
  %v404 = vpop.f32.mrb[0].mxu0
  %v405 = vadd.f32 0.0, %v404
  %v406 = vpop.f32.mrb[0].mxu0
  %v407 = vadd.f32 0.0, %v406
  %v408 = vpop.f32.mrb[0].mxu0
  %v409 = vpop.f32.mrb[0].mxu0
  %410 = vdwg.mxu0
  %v411 = vadd.f32 %v175, %v405
  %v412 = vxor.u32 %v411, 2147483648
  %v413 = vmul.f32 %v412, 1.442695
  %v414 = vpow.pop %v413
  %v415 = vadd.f32 %v414, 1.0
  %v416 = vrcp.pop %v415
  %v417 = vmul.f32 1.0, %v416
  %v418 = vtanh.pop %v411
  %v419 = vmul.f32 %v417, %v321
  %421 = vrot.lane.b32.xlu0 %v418, 32
  %v422 = vpop.permute.xlu0 %421
  %v424 = vmul.f32 %v417, %v422
  %426 = vrot.lane.b32.xlu0 %v424, 32
  %v427 = vpop.permute.xlu0 %426
  %v429 = vadd.f32 %v419, %v427
  %v430 = vtanh.pop %v429
  %432 = vrot.lane.b32.xlu0 %v430, 32
  %v433 = vpop.permute.xlu0 %432
  %v435 = vmul.f32 %v417, %v433
  %v436 = vadd.f32 %v203, %v407
  %v437 = vxor.u32 %v436, 2147483648
  %v438 = vmul.f32 %v437, 1.442695
  %v439 = vpow.pop %v438
  %v440 = vadd.f32 %v439, 1.0
  %v441 = vrcp.pop %v440
  %v442 = vmul.f32 1.0, %v441
  %v443 = vtanh.pop %v436
  %v444 = vmul.f32 %v442, %v346
  %446 = vrot.lane.b32.xlu0 %v443, 32
  %v447 = vpop.permute.xlu0 %446
  %v449 = vmul.f32 %v442, %v447
  %451 = vrot.lane.b32.xlu0 %v449, 32
  %v452 = vpop.permute.xlu0 %451
  %v454 = vadd.f32 %v444, %v452
  %v455 = vtanh.pop %v454
  %457 = vrot.lane.b32.xlu0 %v455, 32
  %v458 = vpop.permute.xlu0 %457
  %v460 = vmul.f32 %v442, %v458
  %462 = vrot.lane.b32.xlu0 %v435, 64
  %v463 = vpop.permute.xlu0 %462
  %s465 = scalar_lea.vmem [#allocation2], 8
  %466 = vst.msk [vmem:[%s465] sm:$0xff] %vm123, %v463
  %468 = vrot.lane.b32.xlu0 %v460, 96
  %v469 = vpop.permute.xlu0 %468
  %s471 = scalar_lea.vmem [#allocation2], 48
  %472 = vst.msk [vmem:[%s471] sm:$0xff] %vm363, %v469
  %v473 = vsel %vm123, %v463, %v469
  %v474 = vpack.c.bf16 %v473, %v473
  %v476 = vsel %vm258, %v474, 0
  %478 = vmatprep.subr.bf16.mxu0 %v243
  %479 = vmatpush1.bf16.msra.mxu0 %v242
  %480 = vmatprep.subr.bf16.mxu0 %v245
  %481 = vmatpush1.bf16.msra.mxu0 %v244
  %482 = vmatprep.subr.bf16.mxu0 %v247
  %483 = vmatpush1.bf16.msra.mxu0 %v246
  %484 = vmatprep.subr.bf16.mxu0 %v249
  %485 = vmatpush1.bf16.msra.mxu0 %v248
  %486 = vmatprep.subr.bf16.mxu0 0
  %487 = vmatpush1.bf16.msra.mxu0 0
  %488 = vmatprep.subr.bf16.mxu0 0
  %489 = vmatpush1.bf16.msra.mxu0 0
  %490 = vmatprep.subr.bf16.mxu0 0
  %491 = vmatpush1.bf16.msra.mxu0 0
  %492 = vmatprep.subr.bf16.mxu0 0
  %493 = vmatpush1.bf16.msra.mxu0 0
  %494 = vmatprep.subr.bf16.mxu0 0
  %495 = vmatpush1.bf16.msra.mxu0 0
  %496 = vmatprep.subr.bf16.mxu0 0
  %497 = vmatpush1.bf16.msra.mxu0 0
  %498 = vmatprep.subr.bf16.mxu0 0
  %499 = vmatpush1.bf16.msra.mxu0 0
  %500 = vmatprep.subr.bf16.mxu0 0
  %501 = vmatpush1.bf16.msra.mxu0 0
  %502 = vmatprep.subr.bf16.mxu0 0
  %503 = vmatpush1.bf16.msra.mxu0 0
  %504 = vmatprep.subr.bf16.mxu0 0
  %505 = vmatpush1.bf16.msra.mxu0 0
  %506 = vmatprep.subr.bf16.mxu0 0
  %507 = vmatpush1.bf16.msra.mxu0 0
  %508 = vmatprep.subr.bf16.mxu0 0
  %509 = vmatpush1.bf16.msra.mxu0 0
  %510 = vmatprep.mubr.bf16.mxu0 0
  %511 = vmatmul.mubr.bf16.gmra.mrb[0].mxu0 %v476
  %v512 = vpop.f32.mrb[0].mxu0
  %v513 = vadd.f32 0.0, %v512
  %v514 = vpop.f32.mrb[0].mxu0
  %v515 = vadd.f32 0.0, %v514
  %v516 = vpop.f32.mrb[0].mxu0
  %v517 = vpop.f32.mrb[0].mxu0
  %518 = vdwg.mxu0
  %v519 = vadd.f32 %v181, %v513
  %v520 = vxor.u32 %v519, 2147483648
  %v521 = vmul.f32 %v520, 1.442695
  %v522 = vpow.pop %v521
  %v523 = vadd.f32 %v522, 1.0
  %v524 = vrcp.pop %v523
  %v525 = vmul.f32 1.0, %v524
  %v526 = vtanh.pop %v519
  %v527 = vmul.f32 %v525, %v429
  %529 = vrot.lane.b32.xlu0 %v526, 32
  %v530 = vpop.permute.xlu0 %529
  %v532 = vmul.f32 %v525, %v530
  %534 = vrot.lane.b32.xlu0 %v532, 32
  %v535 = vpop.permute.xlu0 %534
  %v537 = vadd.f32 %v527, %v535
  %v538 = vtanh.pop %v537
  %540 = vrot.lane.b32.xlu0 %v538, 32
  %v541 = vpop.permute.xlu0 %540
  %v543 = vmul.f32 %v525, %v541
  %v544 = vadd.f32 %v197, %v515
  %v545 = vxor.u32 %v544, 2147483648
  %v546 = vmul.f32 %v545, 1.442695
  %v547 = vpow.pop %v546
  %v548 = vadd.f32 %v547, 1.0
  %v549 = vrcp.pop %v548
  %v550 = vmul.f32 1.0, %v549
  %v551 = vtanh.pop %v544
  %v552 = vmul.f32 %v550, %v454
  %554 = vrot.lane.b32.xlu0 %v551, 32
  %v555 = vpop.permute.xlu0 %554
  %v557 = vmul.f32 %v550, %v555
  %559 = vrot.lane.b32.xlu0 %v557, 32
  %v560 = vpop.permute.xlu0 %559
  %v562 = vadd.f32 %v552, %v560
  %v563 = vtanh.pop %v562
  %565 = vrot.lane.b32.xlu0 %v563, 32
  %v566 = vpop.permute.xlu0 %565
  %v568 = vmul.f32 %v550, %v566
  %570 = vrot.lane.b32.xlu0 %v543, 64
  %v571 = vpop.permute.xlu0 %570
  %s573 = scalar_lea.vmem [#allocation2], 16
  %574 = vst.msk [vmem:[%s573] sm:$0xff] %vm123, %v571
  %576 = vrot.lane.b32.xlu0 %v568, 96
  %v577 = vpop.permute.xlu0 %576
  %s579 = scalar_lea.vmem [#allocation2], 40
  %580 = vst.msk [vmem:[%s579] sm:$0xff] %vm363, %v577
  %v581 = vsel %vm123, %v571, %v577
  %v582 = vpack.c.bf16 %v581, %v581
  %v584 = vsel %vm258, %v582, 0
  %586 = vmatprep.subr.bf16.mxu0 %v243
  %587 = vmatpush1.bf16.msra.mxu0 %v242
  %588 = vmatprep.subr.bf16.mxu0 %v245
  %589 = vmatpush1.bf16.msra.mxu0 %v244
  %590 = vmatprep.subr.bf16.mxu0 %v247
  %591 = vmatpush1.bf16.msra.mxu0 %v246
  %592 = vmatprep.subr.bf16.mxu0 %v249
  %593 = vmatpush1.bf16.msra.mxu0 %v248
  %594 = vmatprep.subr.bf16.mxu0 0
  %595 = vmatpush1.bf16.msra.mxu0 0
  %596 = vmatprep.subr.bf16.mxu0 0
  %597 = vmatpush1.bf16.msra.mxu0 0
  %598 = vmatprep.subr.bf16.mxu0 0
  %599 = vmatpush1.bf16.msra.mxu0 0
  %600 = vmatprep.subr.bf16.mxu0 0
  %601 = vmatpush1.bf16.msra.mxu0 0
  %602 = vmatprep.subr.bf16.mxu0 0
  %603 = vmatpush1.bf16.msra.mxu0 0
  %604 = vmatprep.subr.bf16.mxu0 0
  %605 = vmatpush1.bf16.msra.mxu0 0
  %606 = vmatprep.subr.bf16.mxu0 0
  %607 = vmatpush1.bf16.msra.mxu0 0
  %608 = vmatprep.subr.bf16.mxu0 0
  %609 = vmatpush1.bf16.msra.mxu0 0
  %610 = vmatprep.subr.bf16.mxu0 0
  %611 = vmatpush1.bf16.msra.mxu0 0
  %612 = vmatprep.subr.bf16.mxu0 0
  %613 = vmatpush1.bf16.msra.mxu0 0
  %614 = vmatprep.subr.bf16.mxu0 0
  %615 = vmatpush1.bf16.msra.mxu0 0
  %616 = vmatprep.subr.bf16.mxu0 0
  %617 = vmatpush1.bf16.msra.mxu0 0
  %618 = vmatprep.mubr.bf16.mxu0 0
  %619 = vmatmul.mubr.bf16.gmra.mrb[0].mxu0 %v584
  %v620 = vpop.f32.mrb[0].mxu0
  %v621 = vadd.f32 0.0, %v620
  %v622 = vpop.f32.mrb[0].mxu0
  %v623 = vadd.f32 0.0, %v622
  %v624 = vpop.f32.mrb[0].mxu0
  %v625 = vpop.f32.mrb[0].mxu0
  %626 = vdwg.mxu0
  %v627 = vadd.f32 %v185, %v621
  %v628 = vxor.u32 %v627, 2147483648
  %v629 = vmul.f32 %v628, 1.442695
  %v630 = vpow.pop %v629
  %v631 = vadd.f32 %v630, 1.0
  %v632 = vrcp.pop %v631
  %v633 = vmul.f32 1.0, %v632
  %v634 = vtanh.pop %v627
  %v635 = vmul.f32 %v633, %v537
  %637 = vrot.lane.b32.xlu0 %v634, 32
  %v638 = vpop.permute.xlu0 %637
  %v640 = vmul.f32 %v633, %v638
  %642 = vrot.lane.b32.xlu0 %v640, 32
  %v643 = vpop.permute.xlu0 %642
  %v645 = vadd.f32 %v635, %v643
  %v646 = vtanh.pop %v645
  %648 = vrot.lane.b32.xlu0 %v646, 32
  %v649 = vpop.permute.xlu0 %648
  %v651 = vmul.f32 %v633, %v649
  %v652 = vadd.f32 %v193, %v623
  %v653 = vxor.u32 %v652, 2147483648
  %v654 = vmul.f32 %v653, 1.442695
  %v655 = vpow.pop %v654
  %v656 = vadd.f32 %v655, 1.0
  %v657 = vrcp.pop %v656
  %v658 = vmul.f32 1.0, %v657
  %v659 = vtanh.pop %v652
  %v660 = vmul.f32 %v658, %v562
  %662 = vrot.lane.b32.xlu0 %v659, 32
  %v663 = vpop.permute.xlu0 %662
  %v665 = vmul.f32 %v658, %v663
  %667 = vrot.lane.b32.xlu0 %v665, 32
  %v668 = vpop.permute.xlu0 %667
  %v670 = vadd.f32 %v660, %v668
  %v671 = vtanh.pop %v670
  %673 = vrot.lane.b32.xlu0 %v671, 32
  %v674 = vpop.permute.xlu0 %673
  %v676 = vmul.f32 %v658, %v674
  %678 = vrot.lane.b32.xlu0 %v651, 64
  %v679 = vpop.permute.xlu0 %678
  %s681 = scalar_lea.vmem [#allocation2], 24
  %682 = vst.msk [vmem:[%s681] sm:$0xff] %vm123, %v679
  %684 = vrot.lane.b32.xlu0 %v676, 96
  %v685 = vpop.permute.xlu0 %684
  %s687 = scalar_lea.vmem [#allocation2], 32
  %688 = vst.msk [vmem:[%s687] sm:$0xff] %vm363, %v685
  %v689 = vsel %vm123, %v679, %v685
  %v690 = vpack.c.bf16 %v689, %v689
  %v692 = vsel %vm258, %v690, 0
  %694 = vmatprep.subr.bf16.mxu0 %v243
  %695 = vmatpush1.bf16.msra.mxu0 %v242
  %696 = vmatprep.subr.bf16.mxu0 %v245
  %697 = vmatpush1.bf16.msra.mxu0 %v244
  %698 = vmatprep.subr.bf16.mxu0 %v247
  %699 = vmatpush1.bf16.msra.mxu0 %v246
  %700 = vmatprep.subr.bf16.mxu0 %v249
  %701 = vmatpush1.bf16.msra.mxu0 %v248
  %702 = vmatprep.subr.bf16.mxu0 0
  %703 = vmatpush1.bf16.msra.mxu0 0
  %704 = vmatprep.subr.bf16.mxu0 0
  %705 = vmatpush1.bf16.msra.mxu0 0
  %706 = vmatprep.subr.bf16.mxu0 0
  %707 = vmatpush1.bf16.msra.mxu0 0
  %708 = vmatprep.subr.bf16.mxu0 0
  %709 = vmatpush1.bf16.msra.mxu0 0
  %710 = vmatprep.subr.bf16.mxu0 0
  %711 = vmatpush1.bf16.msra.mxu0 0
  %712 = vmatprep.subr.bf16.mxu0 0
  %713 = vmatpush1.bf16.msra.mxu0 0
  %714 = vmatprep.subr.bf16.mxu0 0
  %715 = vmatpush1.bf16.msra.mxu0 0
  %716 = vmatprep.subr.bf16.mxu0 0
  %717 = vmatpush1.bf16.msra.mxu0 0
  %718 = vmatprep.subr.bf16.mxu0 0
  %719 = vmatpush1.bf16.msra.mxu0 0
  %720 = vmatprep.subr.bf16.mxu0 0
  %721 = vmatpush1.bf16.msra.mxu0 0
  %722 = vmatprep.subr.bf16.mxu0 0
  %723 = vmatpush1.bf16.msra.mxu0 0
  %724 = vmatprep.subr.bf16.mxu0 0
  %725 = vmatpush1.bf16.msra.mxu0 0
  %726 = vmatprep.mubr.bf16.mxu0 0
  %727 = vmatmul.mubr.bf16.gmra.mrb[0].mxu0 %v692
  %v728 = vpop.f32.mrb[0].mxu0
  %v729 = vadd.f32 0.0, %v728
  %v730 = vpop.f32.mrb[0].mxu0
  %v731 = vadd.f32 0.0, %v730
  %v732 = vpop.f32.mrb[0].mxu0
  %v733 = vpop.f32.mrb[0].mxu0
  %734 = vdwg.mxu0
  %v735 = vadd.f32 %v191, %v729
  %v736 = vxor.u32 %v735, 2147483648
  %v737 = vmul.f32 %v736, 1.442695
  %v738 = vpow.pop %v737
  %v739 = vadd.f32 %v738, 1.0
  %v740 = vrcp.pop %v739
  %v741 = vmul.f32 1.0, %v740
  %v742 = vtanh.pop %v735
  %v743 = vmul.f32 %v741, %v645
  %745 = vrot.lane.b32.xlu0 %v742, 32
  %v746 = vpop.permute.xlu0 %745
  %v748 = vmul.f32 %v741, %v746
  %750 = vrot.lane.b32.xlu0 %v748, 32
  %v751 = vpop.permute.xlu0 %750
  %v753 = vadd.f32 %v743, %v751
  %v754 = vtanh.pop %v753
  %756 = vrot.lane.b32.xlu0 %v754, 32
  %v757 = vpop.permute.xlu0 %756
  %v759 = vmul.f32 %v741, %v757
  %v760 = vadd.f32 %v187, %v731
  %v761 = vxor.u32 %v760, 2147483648
  %v762 = vmul.f32 %v761, 1.442695
  %v763 = vpow.pop %v762
  %v764 = vadd.f32 %v763, 1.0
  %v765 = vrcp.pop %v764
  %v766 = vmul.f32 1.0, %v765
  %v767 = vtanh.pop %v760
  %v768 = vmul.f32 %v766, %v670
  %770 = vrot.lane.b32.xlu0 %v767, 32
  %v771 = vpop.permute.xlu0 %770
  %v773 = vmul.f32 %v766, %v771
  %775 = vrot.lane.b32.xlu0 %v773, 32
  %v776 = vpop.permute.xlu0 %775
  %v778 = vadd.f32 %v768, %v776
  %v779 = vtanh.pop %v778
  %781 = vrot.lane.b32.xlu0 %v779, 32
  %v782 = vpop.permute.xlu0 %781
  %v784 = vmul.f32 %v766, %v782
  %786 = vrot.lane.b32.xlu0 %v759, 64
  %v787 = vpop.permute.xlu0 %786
  %789 = vst.msk [vmem:[%s687] sm:$0xff] %vm123, %v787
  %791 = vrot.lane.b32.xlu0 %v784, 96
  %v792 = vpop.permute.xlu0 %791
  %794 = vst.msk [vmem:[%s681] sm:$0xff] %vm363, %v792
  %v795 = vsel %vm123, %v787, %v792
  %v796 = vpack.c.bf16 %v795, %v795
  %v798 = vsel %vm258, %v796, 0
  %800 = vmatprep.subr.bf16.mxu0 %v243
  %801 = vmatpush1.bf16.msra.mxu0 %v242
  %802 = vmatprep.subr.bf16.mxu0 %v245
  %803 = vmatpush1.bf16.msra.mxu0 %v244
  %804 = vmatprep.subr.bf16.mxu0 %v247
  %805 = vmatpush1.bf16.msra.mxu0 %v246
  %806 = vmatprep.subr.bf16.mxu0 %v249
  %807 = vmatpush1.bf16.msra.mxu0 %v248
  %808 = vmatprep.subr.bf16.mxu0 0
  %809 = vmatpush1.bf16.msra.mxu0 0
  %810 = vmatprep.subr.bf16.mxu0 0
  %811 = vmatpush1.bf16.msra.mxu0 0
  %812 = vmatprep.subr.bf16.mxu0 0
  %813 = vmatpush1.bf16.msra.mxu0 0
  %814 = vmatprep.subr.bf16.mxu0 0
  %815 = vmatpush1.bf16.msra.mxu0 0
  %816 = vmatprep.subr.bf16.mxu0 0
  %817 = vmatpush1.bf16.msra.mxu0 0
  %818 = vmatprep.subr.bf16.mxu0 0
  %819 = vmatpush1.bf16.msra.mxu0 0
  %820 = vmatprep.subr.bf16.mxu0 0
  %821 = vmatpush1.bf16.msra.mxu0 0
  %822 = vmatprep.subr.bf16.mxu0 0
  %823 = vmatpush1.bf16.msra.mxu0 0
  %824 = vmatprep.subr.bf16.mxu0 0
  %825 = vmatpush1.bf16.msra.mxu0 0
  %826 = vmatprep.subr.bf16.mxu0 0
  %827 = vmatpush1.bf16.msra.mxu0 0
  %828 = vmatprep.subr.bf16.mxu0 0
  %829 = vmatpush1.bf16.msra.mxu0 0
  %830 = vmatprep.subr.bf16.mxu0 0
  %831 = vmatpush1.bf16.msra.mxu0 0
  %832 = vmatprep.mubr.bf16.mxu0 0
  %833 = vmatmul.mubr.bf16.gmra.mrb[0].mxu0 %v798
  %v834 = vpop.f32.mrb[0].mxu0
  %v835 = vadd.f32 0.0, %v834
  %v836 = vpop.f32.mrb[0].mxu0
  %v837 = vadd.f32 0.0, %v836
  %v838 = vpop.f32.mrb[0].mxu0
  %v839 = vpop.f32.mrb[0].mxu0
  %840 = vdwg.mxu0
  %v841 = vadd.f32 %v195, %v835
  %v842 = vxor.u32 %v841, 2147483648
  %v843 = vmul.f32 %v842, 1.442695
  %v844 = vpow.pop %v843
  %v845 = vadd.f32 %v844, 1.0
  %v846 = vrcp.pop %v845
  %v847 = vmul.f32 1.0, %v846
  %v848 = vtanh.pop %v841
  %v849 = vmul.f32 %v847, %v753
  %851 = vrot.lane.b32.xlu0 %v848, 32
  %v852 = vpop.permute.xlu0 %851
  %v854 = vmul.f32 %v847, %v852
  %856 = vrot.lane.b32.xlu0 %v854, 32
  %v857 = vpop.permute.xlu0 %856
  %v859 = vadd.f32 %v849, %v857
  %v860 = vtanh.pop %v859
  %862 = vrot.lane.b32.xlu0 %v860, 32
  %v863 = vpop.permute.xlu0 %862
  %v865 = vmul.f32 %v847, %v863
  %v866 = vadd.f32 %v183, %v837
  %v867 = vxor.u32 %v866, 2147483648
  %v868 = vmul.f32 %v867, 1.442695
  %v869 = vpow.pop %v868
  %v870 = vadd.f32 %v869, 1.0
  %v871 = vrcp.pop %v870
  %v872 = vmul.f32 1.0, %v871
  %v873 = vtanh.pop %v866
  %v874 = vmul.f32 %v872, %v778
  %876 = vrot.lane.b32.xlu0 %v873, 32
  %v877 = vpop.permute.xlu0 %876
  %v879 = vmul.f32 %v872, %v877
  %881 = vrot.lane.b32.xlu0 %v879, 32
  %v882 = vpop.permute.xlu0 %881
  %v884 = vadd.f32 %v874, %v882
  %v885 = vtanh.pop %v884
  %887 = vrot.lane.b32.xlu0 %v885, 32
  %v888 = vpop.permute.xlu0 %887
  %v890 = vmul.f32 %v872, %v888
  %892 = vrot.lane.b32.xlu0 %v865, 64
  %v893 = vpop.permute.xlu0 %892
  %895 = vst.msk [vmem:[%s579] sm:$0xff] %vm123, %v893
  %897 = vrot.lane.b32.xlu0 %v890, 96
  %v898 = vpop.permute.xlu0 %897
  %900 = vst.msk [vmem:[%s573] sm:$0xff] %vm363, %v898
  %v901 = vsel %vm123, %v893, %v898
  %v902 = vpack.c.bf16 %v901, %v901
  %v904 = vsel %vm258, %v902, 0
  %906 = vmatprep.subr.bf16.mxu0 %v243
  %907 = vmatpush1.bf16.msra.mxu0 %v242
  %908 = vmatprep.subr.bf16.mxu0 %v245
  %909 = vmatpush1.bf16.msra.mxu0 %v244
  %910 = vmatprep.subr.bf16.mxu0 %v247
  %911 = vmatpush1.bf16.msra.mxu0 %v246
  %912 = vmatprep.subr.bf16.mxu0 %v249
  %913 = vmatpush1.bf16.msra.mxu0 %v248
  %914 = vmatprep.subr.bf16.mxu0 0
  %915 = vmatpush1.bf16.msra.mxu0 0
  %916 = vmatprep.subr.bf16.mxu0 0
  %917 = vmatpush1.bf16.msra.mxu0 0
  %918 = vmatprep.subr.bf16.mxu0 0
  %919 = vmatpush1.bf16.msra.mxu0 0
  %920 = vmatprep.subr.bf16.mxu0 0
  %921 = vmatpush1.bf16.msra.mxu0 0
  %922 = vmatprep.subr.bf16.mxu0 0
  %923 = vmatpush1.bf16.msra.mxu0 0
  %924 = vmatprep.subr.bf16.mxu0 0
  %925 = vmatpush1.bf16.msra.mxu0 0
  %926 = vmatprep.subr.bf16.mxu0 0
  %927 = vmatpush1.bf16.msra.mxu0 0
  %928 = vmatprep.subr.bf16.mxu0 0
  %929 = vmatpush1.bf16.msra.mxu0 0
  %930 = vmatprep.subr.bf16.mxu0 0
  %931 = vmatpush1.bf16.msra.mxu0 0
  %932 = vmatprep.subr.bf16.mxu0 0
  %933 = vmatpush1.bf16.msra.mxu0 0
  %934 = vmatprep.subr.bf16.mxu0 0
  %935 = vmatpush1.bf16.msra.mxu0 0
  %936 = vmatprep.subr.bf16.mxu0 0
  %937 = vmatpush1.bf16.msra.mxu0 0
  %938 = vmatprep.mubr.bf16.mxu0 0
  %939 = vmatmul.mubr.bf16.gmra.mrb[0].mxu0 %v904
  %v940 = vpop.f32.mrb[0].mxu0
  %v941 = vadd.f32 0.0, %v940
  %v942 = vpop.f32.mrb[0].mxu0
  %v943 = vadd.f32 0.0, %v942
  %v944 = vpop.f32.mrb[0].mxu0
  %v945 = vpop.f32.mrb[0].mxu0
  %946 = vdwg.mxu0
  %v947 = vadd.f32 %v201, %v941
  %v948 = vxor.u32 %v947, 2147483648
  %v949 = vmul.f32 %v948, 1.442695
  %v950 = vpow.pop %v949
  %v951 = vadd.f32 %v950, 1.0
  %v952 = vrcp.pop %v951
  %v953 = vmul.f32 1.0, %v952
  %v954 = vtanh.pop %v947
  %v955 = vmul.f32 %v953, %v859
  %957 = vrot.lane.b32.xlu0 %v954, 32
  %v958 = vpop.permute.xlu0 %957
  %v960 = vmul.f32 %v953, %v958
  %962 = vrot.lane.b32.xlu0 %v960, 32
  %v963 = vpop.permute.xlu0 %962
  %v965 = vadd.f32 %v955, %v963
  %v966 = vtanh.pop %v965
  %968 = vrot.lane.b32.xlu0 %v966, 32
  %v969 = vpop.permute.xlu0 %968
  %v971 = vmul.f32 %v953, %v969
  %v972 = vadd.f32 %v177, %v943
  %v973 = vxor.u32 %v972, 2147483648
  %v974 = vmul.f32 %v973, 1.442695
  %v975 = vpow.pop %v974
  %v976 = vadd.f32 %v975, 1.0
  %v977 = vrcp.pop %v976
  %v978 = vmul.f32 1.0, %v977
  %v979 = vtanh.pop %v972
  %v980 = vmul.f32 %v978, %v884
  %982 = vrot.lane.b32.xlu0 %v979, 32
  %v983 = vpop.permute.xlu0 %982
  %v985 = vmul.f32 %v978, %v983
  %987 = vrot.lane.b32.xlu0 %v985, 32
  %v988 = vpop.permute.xlu0 %987
  %v990 = vadd.f32 %v980, %v988
  %v991 = vtanh.pop %v990
  %993 = vrot.lane.b32.xlu0 %v991, 32
  %v994 = vpop.permute.xlu0 %993
  %v996 = vmul.f32 %v978, %v994
  %998 = vrot.lane.b32.xlu0 %v971, 64
  %v999 = vpop.permute.xlu0 %998
  %1001 = vst.msk [vmem:[%s471] sm:$0xff] %vm123, %v999
  %1003 = vrot.lane.b32.xlu0 %v996, 96
  %v1004 = vpop.permute.xlu0 %1003
  %1006 = vst.msk [vmem:[%s465] sm:$0xff] %vm363, %v1004
  %v1007 = vsel %vm123, %v999, %v1004
  %v1008 = vpack.c.bf16 %v1007, %v1007
  %v1010 = vsel %vm258, %v1008, 0
  %1012 = vmatprep.subr.bf16.mxu0 %v243
  %1013 = vmatpush1.bf16.msra.mxu0 %v242
  %1014 = vmatprep.subr.bf16.mxu0 %v245
  %1015 = vmatpush1.bf16.msra.mxu0 %v244
  %1016 = vmatprep.subr.bf16.mxu0 %v247
  %1017 = vmatpush1.bf16.msra.mxu0 %v246
  %1018 = vmatprep.subr.bf16.mxu0 %v249
  %1019 = vmatpush1.bf16.msra.mxu0 %v248
  %1020 = vmatprep.subr.bf16.mxu0 0
  %1021 = vmatpush1.bf16.msra.mxu0 0
  %1022 = vmatprep.subr.bf16.mxu0 0
  %1023 = vmatpush1.bf16.msra.mxu0 0
  %1024 = vmatprep.subr.bf16.mxu0 0
  %1025 = vmatpush1.bf16.msra.mxu0 0
  %1026 = vmatprep.subr.bf16.mxu0 0
  %1027 = vmatpush1.bf16.msra.mxu0 0
  %1028 = vmatprep.subr.bf16.mxu0 0
  %1029 = vmatpush1.bf16.msra.mxu0 0
  %1030 = vmatprep.subr.bf16.mxu0 0
  %1031 = vmatpush1.bf16.msra.mxu0 0
  %1032 = vmatprep.subr.bf16.mxu0 0
  %1033 = vmatpush1.bf16.msra.mxu0 0
  %1034 = vmatprep.subr.bf16.mxu0 0
  %1035 = vmatpush1.bf16.msra.mxu0 0
  %1036 = vmatprep.subr.bf16.mxu0 0
  %1037 = vmatpush1.bf16.msra.mxu0 0
  %1038 = vmatprep.subr.bf16.mxu0 0
  %1039 = vmatpush1.bf16.msra.mxu0 0
  %1040 = vmatprep.subr.bf16.mxu0 0
  %1041 = vmatpush1.bf16.msra.mxu0 0
  %1042 = vmatprep.subr.bf16.mxu0 0
  %1043 = vmatpush1.bf16.msra.mxu0 0
  %1044 = vmatprep.mubr.bf16.mxu0 0
  %1045 = vmatmul.mubr.bf16.gmra.mrb[0].mxu0 %v1010
  %v1046 = vpop.f32.mrb[0].mxu0
  %v1047 = vadd.f32 0.0, %v1046
  %v1048 = vpop.f32.mrb[0].mxu0
  %v1049 = vadd.f32 0.0, %v1048
  %v1050 = vpop.f32.mrb[0].mxu0
  %v1051 = vpop.f32.mrb[0].mxu0
  %1052 = vdwg.mxu0
  %v1053 = vadd.f32 %v205, %v1047
  %v1054 = vxor.u32 %v1053, 2147483648
  %v1055 = vmul.f32 %v1054, 1.442695
  %v1056 = vpow.pop %v1055
  %v1057 = vadd.f32 %v1056, 1.0
  %v1058 = vrcp.pop %v1057
  %v1059 = vmul.f32 1.0, %v1058
  %v1060 = vtanh.pop %v1053
  %v1061 = vmul.f32 %v1059, %v965
  %1063 = vrot.lane.b32.xlu0 %v1060, 32
  %v1064 = vpop.permute.xlu0 %1063
  %v1066 = vmul.f32 %v1059, %v1064
  %1068 = vrot.lane.b32.xlu0 %v1066, 32
  %v1069 = vpop.permute.xlu0 %1068
  %v1071 = vadd.f32 %v1061, %v1069
  %v1072 = vtanh.pop %v1071
  %1074 = vrot.lane.b32.xlu0 %v1072, 32
  %v1075 = vpop.permute.xlu0 %1074
  %v1077 = vmul.f32 %v1059, %v1075
  %v1078 = vadd.f32 %v173, %v1049
  %v1079 = vxor.u32 %v1078, 2147483648
  %v1080 = vmul.f32 %v1079, 1.442695
  %v1081 = vpow.pop %v1080
  %v1082 = vadd.f32 %v1081, 1.0
  %v1083 = vrcp.pop %v1082
  %v1084 = vmul.f32 1.0, %v1083
  %v1085 = vtanh.pop %v1078
  %v1086 = vmul.f32 %v1084, %v990
  %1088 = vrot.lane.b32.xlu0 %v1085, 32
  %v1089 = vpop.permute.xlu0 %1088
  %v1091 = vmul.f32 %v1084, %v1089
  %1093 = vrot.lane.b32.xlu0 %v1091, 32
  %v1094 = vpop.permute.xlu0 %1093
  %v1096 = vadd.f32 %v1086, %v1094
  %v1097 = vtanh.pop %v1096
  %1099 = vrot.lane.b32.xlu0 %v1097, 32
  %v1100 = vpop.permute.xlu0 %1099
  %v1102 = vmul.f32 %v1084, %v1100
  %1104 = vrot.lane.b32.xlu0 %v1077, 64
  %v1105 = vpop.permute.xlu0 %1104
  %1107 = vst.msk [vmem:[%s362] sm:$0xff] %vm123, %v1105
  %1109 = vrot.lane.b32.xlu0 %v1102, 96
  %v1110 = vpop.permute.xlu0 %1109
  %1112 = vst.msk [vmem:[#allocation2] sm:$0xff] %vm363, %v1110
  %v1113 = vld [vmem:[#allocation2] sm:$0xff]
  %v1114 = vld [vmem:[#allocation2 + $0x8] sm:$0xff]
  %v1115 = vld [vmem:[#allocation2 + $0x10] sm:$0xff]
  %v1116 = vld [vmem:[#allocation2 + $0x18] sm:$0xff]
  %v1117 = vld [vmem:[#allocation2 + $0x20] sm:$0xff]
  %v1118 = vld [vmem:[#allocation2 + $0x28] sm:$0xff]
  %v1119 = vld [vmem:[#allocation2 + $0x30] sm:$0xff]
  %v1120 = vld [vmem:[#allocation2 + $0x38] sm:$0xff]
  %v1121 = vpack.c.bf16 %v1114, %v1113
  %v1122 = vpack.c.bf16 %v1116, %v1115
  %v1123 = vpack.c.bf16 %v1118, %v1117
  %v1124 = vpack.c.bf16 %v1120, %v1119
  %v1125 = vld [vmem:[%s4] sm:$0xff]
  %v1126 = vld [vmem:[%s4 + $0x8] sm:$0xff]
  %v1127 = vld [vmem:[%s4 + $0x10] sm:$0xff]
  %v1128 = vld [vmem:[%s4 + $0x18] sm:$0xff]
  %v1129 = vld [vmem:[%s4 + $0x20] sm:$0xff]
  %v1130 = vld [vmem:[%s4 + $0x28] sm:$0xff]
  %v1131 = vld [vmem:[%s4 + $0x30] sm:$0xff]
  %v1132 = vld [vmem:[%s4 + $0x38] sm:$0xff]
  %v1133 = vld [vmem:[%s6] sm:$0x3]
  %v1135 = vlaneseq
  %v1136 = vshrl.u32 %v1135, 7
  %v1137 = vsub.s32 0, %v1136
  %v1138 = vrot.slane %v1133, %v1137
  %v1139 = vlaneseq
  %v1140 = vshrl.u32 %v1139, 7
  %v1141 = vsub.s32 1, %v1140
  %v1142 = vrot.slane %v1133, %v1141
  %v1153 = vunpack.c.l.b16 %v1125
  %v1154 = vunpack.c.h.b16 %v1125
  %v1155 = vunpack.c.l.b16 %v1126
  %v1156 = vunpack.c.h.b16 %v1126
  %v1157 = vunpack.c.l.b16 %v1127
  %v1158 = vunpack.c.h.b16 %v1127
  %v1159 = vunpack.c.l.b16 %v1128
  %v1160 = vunpack.c.h.b16 %v1128
  %v1161 = vunpack.c.l.b16 %v1129
  %v1162 = vunpack.c.h.b16 %v1129
  %v1163 = vunpack.c.l.b16 %v1130
  %v1164 = vunpack.c.h.b16 %v1130
  %v1165 = vunpack.c.l.b16 %v1131
  %v1166 = vunpack.c.h.b16 %v1131
  %v1167 = vunpack.c.l.b16 %v1132
  %v1168 = vunpack.c.h.b16 %v1132
  %v1169 = vpack.c.b16 %v1155, %v1153
  %v1170 = vpack.c.b16 %v1156, %v1154
  %v1171 = vpack.c.b16 %v1159, %v1157
  %v1172 = vpack.c.b16 %v1160, %v1158
  %v1173 = vpack.c.b16 %v1163, %v1161
  %v1174 = vpack.c.b16 %v1164, %v1162
  %v1175 = vpack.c.b16 %v1167, %v1165
  %v1176 = vpack.c.b16 %v1168, %v1166
  %v1186 = vsel %vm258, %v1121, 0
  %v1189 = vsel %vm258, %v1122, 0
  %v1192 = vsel %vm258, %v1123, 0
  %v1195 = vsel %vm258, %v1124, 0
  %1197 = vmatprep.subr.bf16.mxu0 %v1170
  %1198 = vmatpush1.bf16.msra.mxu0 %v1169
  %1199 = vmatprep.subr.bf16.mxu0 %v1172
  %1200 = vmatpush1.bf16.msra.mxu0 %v1171
  %1201 = vmatprep.subr.bf16.mxu0 %v1174
  %1202 = vmatpush1.bf16.msra.mxu0 %v1173
  %1203 = vmatprep.subr.bf16.mxu0 %v1176
  %1204 = vmatpush1.bf16.msra.mxu0 %v1175
  %1205 = vmatprep.subr.bf16.mxu0 0
  %1206 = vmatpush1.bf16.msra.mxu0 0
  %1207 = vmatprep.subr.bf16.mxu0 0
  %1208 = vmatpush1.bf16.msra.mxu0 0
  %1209 = vmatprep.subr.bf16.mxu0 0
  %1210 = vmatpush1.bf16.msra.mxu0 0
  %1211 = vmatprep.subr.bf16.mxu0 0
  %1212 = vmatpush1.bf16.msra.mxu0 0
  %1213 = vmatprep.subr.bf16.mxu0 0
  %1214 = vmatpush1.bf16.msra.mxu0 0
  %1215 = vmatprep.subr.bf16.mxu0 0
  %1216 = vmatpush1.bf16.msra.mxu0 0
  %1217 = vmatprep.subr.bf16.mxu0 0
  %1218 = vmatpush1.bf16.msra.mxu0 0
  %1219 = vmatprep.subr.bf16.mxu0 0
  %1220 = vmatpush1.bf16.msra.mxu0 0
  %1221 = vmatprep.subr.bf16.mxu0 0
  %1222 = vmatpush1.bf16.msra.mxu0 0
  %1223 = vmatprep.subr.bf16.mxu0 0
  %1224 = vmatpush1.bf16.msra.mxu0 0
  %1225 = vmatprep.subr.bf16.mxu0 0
  %1226 = vmatpush1.bf16.msra.mxu0 0
  %1227 = vmatprep.subr.bf16.mxu0 0
  %1228 = vmatpush1.bf16.msra.mxu0 0
  %1229 = vmatprep.mubr.bf16.mxu0 0
  %1230 = vmatmul.mubr.bf16.gmra.mrb[0].mxu0 %v1186
  %v1231 = vpop.f32.mrb[0].mxu0
  %v1232 = vadd.f32 %v1138, %v1231
  %v1233 = vpop.f32.mrb[0].mxu0
  %v1234 = vadd.f32 %v1142, %v1233
  %v1235 = vpop.f32.mrb[0].mxu0
  %v1236 = vadd.f32 %v1138, %v1235
  %v1237 = vpop.f32.mrb[0].mxu0
  %v1238 = vadd.f32 %v1142, %v1237
  %1239 = vmatprep.mubr.bf16.mxu0 0
  %1240 = vmatmul.mubr.bf16.gmra.mrb[0].mxu0 %v1189
  %v1241 = vpop.f32.mrb[0].mxu0
  %v1242 = vadd.f32 %v1138, %v1241
  %v1243 = vpop.f32.mrb[0].mxu0
  %v1244 = vadd.f32 %v1142, %v1243
  %v1245 = vpop.f32.mrb[0].mxu0
  %v1246 = vadd.f32 %v1138, %v1245
  %v1247 = vpop.f32.mrb[0].mxu0
  %v1248 = vadd.f32 %v1142, %v1247
  %1249 = vmatprep.mubr.bf16.mxu0 0
  %1250 = vmatmul.mubr.bf16.gmra.mrb[0].mxu0 %v1192
  %v1251 = vpop.f32.mrb[0].mxu0
  %v1252 = vadd.f32 %v1138, %v1251
  %v1253 = vpop.f32.mrb[0].mxu0
  %v1254 = vadd.f32 %v1142, %v1253
  %v1255 = vpop.f32.mrb[0].mxu0
  %v1256 = vadd.f32 %v1138, %v1255
  %v1257 = vpop.f32.mrb[0].mxu0
  %v1258 = vadd.f32 %v1142, %v1257
  %1259 = vmatprep.mubr.bf16.mxu0 0
  %1260 = vmatmul.mubr.bf16.gmra.mrb[0].mxu0 %v1195
  %v1261 = vpop.f32.mrb[0].mxu0
  %v1262 = vadd.f32 %v1138, %v1261
  %v1263 = vpop.f32.mrb[0].mxu0
  %v1264 = vadd.f32 %v1142, %v1263
  %v1265 = vpop.f32.mrb[0].mxu0
  %v1266 = vadd.f32 %v1138, %v1265
  %v1267 = vpop.f32.mrb[0].mxu0
  %v1268 = vadd.f32 %v1142, %v1267
  %1269 = vdwg.mxu0
  %v1270 = vld [vmem:[%s5] sm:$0xff]
  %v1271 = vld [vmem:[%s5 + $0x8] sm:$0xff]
  %v1272 = vld [vmem:[%s5 + $0x10] sm:$0xff]
  %v1273 = vld [vmem:[%s5 + $0x18] sm:$0xff]
  %v1274 = vld [vmem:[%s5 + $0x20] sm:$0xff]
  %v1275 = vld [vmem:[%s5 + $0x28] sm:$0xff]
  %v1276 = vld [vmem:[%s5 + $0x30] sm:$0xff]
  %v1277 = vld [vmem:[%s5 + $0x38] sm:$0xff]
  %v1286 = vunpack.c.l.b16 %v1270
  %v1287 = vunpack.c.h.b16 %v1270
  %v1288 = vunpack.c.l.b16 %v1271
  %v1289 = vunpack.c.h.b16 %v1271
  %v1290 = vunpack.c.l.b16 %v1272
  %v1291 = vunpack.c.h.b16 %v1272
  %v1292 = vunpack.c.l.b16 %v1273
  %v1293 = vunpack.c.h.b16 %v1273
  %v1294 = vunpack.c.l.b16 %v1274
  %v1295 = vunpack.c.h.b16 %v1274
  %v1296 = vunpack.c.l.b16 %v1275
  %v1297 = vunpack.c.h.b16 %v1275
  %v1298 = vunpack.c.l.b16 %v1276
  %v1299 = vunpack.c.h.b16 %v1276
  %v1300 = vunpack.c.l.b16 %v1277
  %v1301 = vunpack.c.h.b16 %v1277
  %v1302 = vpack.c.b16 %v1288, %v1286
  %v1303 = vpack.c.b16 %v1289, %v1287
  %v1304 = vpack.c.b16 %v1292, %v1290
  %v1305 = vpack.c.b16 %v1293, %v1291
  %v1306 = vpack.c.b16 %v1296, %v1294
  %v1307 = vpack.c.b16 %v1297, %v1295
  %v1308 = vpack.c.b16 %v1300, %v1298
  %v1309 = vpack.c.b16 %v1301, %v1299
  %1318 = vmatprep.subr.bf16.mxu0 %v1303
  %1319 = vmatpush1.bf16.msra.mxu0 %v1302
  %1320 = vmatprep.subr.bf16.mxu0 %v1305
  %1321 = vmatpush1.bf16.msra.mxu0 %v1304
  %1322 = vmatprep.subr.bf16.mxu0 %v1307
  %1323 = vmatpush1.bf16.msra.mxu0 %v1306
  %1324 = vmatprep.subr.bf16.mxu0 %v1309
  %1325 = vmatpush1.bf16.msra.mxu0 %v1308
  %1326 = vmatprep.subr.bf16.mxu0 0
  %1327 = vmatpush1.bf16.msra.mxu0 0
  %1328 = vmatprep.subr.bf16.mxu0 0
  %1329 = vmatpush1.bf16.msra.mxu0 0
  %1330 = vmatprep.subr.bf16.mxu0 0
  %1331 = vmatpush1.bf16.msra.mxu0 0
  %1332 = vmatprep.subr.bf16.mxu0 0
  %1333 = vmatpush1.bf16.msra.mxu0 0
  %1334 = vmatprep.subr.bf16.mxu0 0
  %1335 = vmatpush1.bf16.msra.mxu0 0
  %1336 = vmatprep.subr.bf16.mxu0 0
  %1337 = vmatpush1.bf16.msra.mxu0 0
  %1338 = vmatprep.subr.bf16.mxu0 0
  %1339 = vmatpush1.bf16.msra.mxu0 0
  %1340 = vmatprep.subr.bf16.mxu0 0
  %1341 = vmatpush1.bf16.msra.mxu0 0
  %1342 = vmatprep.subr.bf16.mxu0 0
  %1343 = vmatpush1.bf16.msra.mxu0 0
  %1344 = vmatprep.subr.bf16.mxu0 0
  %1345 = vmatpush1.bf16.msra.mxu0 0
  %1346 = vmatprep.subr.bf16.mxu0 0
  %1347 = vmatpush1.bf16.msra.mxu0 0
  %1348 = vmatprep.subr.bf16.mxu0 0
  %1349 = vmatpush1.bf16.msra.mxu0 0
  %1350 = vmatprep.mubr.bf16.mxu0 0
  %1351 = vmatmul.mubr.bf16.gmra.mrb[0].mxu0 %v260
  %v1352 = vpop.f32.mrb[0].mxu0
  %v1353 = vadd.f32 0.0, %v1352
  %v1354 = vpop.f32.mrb[0].mxu0
  %v1355 = vadd.f32 0.0, %v1354
  %v1356 = vpop.f32.mrb[0].mxu0
  %v1357 = vpop.f32.mrb[0].mxu0
  %1358 = vdwg.mxu0
  %v1359 = vadd.f32 %v1232, %v1353
  %v1360 = vxor.u32 %v1359, 2147483648
  %v1361 = vmul.f32 %v1360, 1.442695
  %v1362 = vpow.pop %v1361
  %v1363 = vadd.f32 %v1362, 1.0
  %v1364 = vrcp.pop %v1363
  %v1365 = vmul.f32 1.0, %v1364
  %v1366 = vtanh.pop %v1359
  %v1367 = vmul.f32 %v1365, 0.0
  %1369 = vrot.lane.b32.xlu0 %v1366, 32
  %v1370 = vpop.permute.xlu0 %1369
  %v1372 = vmul.f32 %v1365, %v1370
  %1374 = vrot.lane.b32.xlu0 %v1372, 32
  %v1375 = vpop.permute.xlu0 %1374
  %v1377 = vadd.f32 %v1367, %v1375
  %v1378 = vtanh.pop %v1377
  %1380 = vrot.lane.b32.xlu0 %v1378, 32
  %v1381 = vpop.permute.xlu0 %1380
  %v1383 = vmul.f32 %v1365, %v1381
  %v1384 = vadd.f32 %v1268, %v1355
  %v1385 = vxor.u32 %v1384, 2147483648
  %v1386 = vmul.f32 %v1385, 1.442695
  %v1387 = vpow.pop %v1386
  %v1388 = vadd.f32 %v1387, 1.0
  %v1389 = vrcp.pop %v1388
  %v1390 = vmul.f32 1.0, %v1389
  %v1391 = vtanh.pop %v1384
  %v1392 = vmul.f32 %v1390, 0.0
  %1394 = vrot.lane.b32.xlu0 %v1391, 32
  %v1395 = vpop.permute.xlu0 %1394
  %v1397 = vmul.f32 %v1390, %v1395
  %1399 = vrot.lane.b32.xlu0 %v1397, 32
  %v1400 = vpop.permute.xlu0 %1399
  %v1402 = vadd.f32 %v1392, %v1400
  %v1403 = vtanh.pop %v1402
  %1405 = vrot.lane.b32.xlu0 %v1403, 32
  %v1406 = vpop.permute.xlu0 %1405
  %v1408 = vmul.f32 %v1390, %v1406
  %1410 = vrot.lane.b32.xlu0 %v1383, 64
  %v1411 = vpop.permute.xlu0 %1410
  %1413 = vst.msk [vmem:[#allocation2] sm:$0xff] %vm123, %v1411
  %1415 = vrot.lane.b32.xlu0 %v1408, 96
  %v1416 = vpop.permute.xlu0 %1415
  %1418 = vst.msk [vmem:[%s362] sm:$0xff] %vm363, %v1416
  %v1419 = vsel %vm123, %v1411, %v1416
  %v1420 = vpack.c.bf16 %v1419, %v1419
  %v1422 = vsel %vm258, %v1420, 0
  %1424 = vmatprep.subr.bf16.mxu0 %v1303
  %1425 = vmatpush1.bf16.msra.mxu0 %v1302
  %1426 = vmatprep.subr.bf16.mxu0 %v1305
  %1427 = vmatpush1.bf16.msra.mxu0 %v1304
  %1428 = vmatprep.subr.bf16.mxu0 %v1307
  %1429 = vmatpush1.bf16.msra.mxu0 %v1306
  %1430 = vmatprep.subr.bf16.mxu0 %v1309
  %1431 = vmatpush1.bf16.msra.mxu0 %v1308
  %1432 = vmatprep.subr.bf16.mxu0 0
  %1433 = vmatpush1.bf16.msra.mxu0 0
  %1434 = vmatprep.subr.bf16.mxu0 0
  %1435 = vmatpush1.bf16.msra.mxu0 0
  %1436 = vmatprep.subr.bf16.mxu0 0
  %1437 = vmatpush1.bf16.msra.mxu0 0
  %1438 = vmatprep.subr.bf16.mxu0 0
  %1439 = vmatpush1.bf16.msra.mxu0 0
  %1440 = vmatprep.subr.bf16.mxu0 0
  %1441 = vmatpush1.bf16.msra.mxu0 0
  %1442 = vmatprep.subr.bf16.mxu0 0
  %1443 = vmatpush1.bf16.msra.mxu0 0
  %1444 = vmatprep.subr.bf16.mxu0 0
  %1445 = vmatpush1.bf16.msra.mxu0 0
  %1446 = vmatprep.subr.bf16.mxu0 0
  %1447 = vmatpush1.bf16.msra.mxu0 0
  %1448 = vmatprep.subr.bf16.mxu0 0
  %1449 = vmatpush1.bf16.msra.mxu0 0
  %1450 = vmatprep.subr.bf16.mxu0 0
  %1451 = vmatpush1.bf16.msra.mxu0 0
  %1452 = vmatprep.subr.bf16.mxu0 0
  %1453 = vmatpush1.bf16.msra.mxu0 0
  %1454 = vmatprep.subr.bf16.mxu0 0
  %1455 = vmatpush1.bf16.msra.mxu0 0
  %1456 = vmatprep.mubr.bf16.mxu0 0
  %1457 = vmatmul.mubr.bf16.gmra.mrb[0].mxu0 %v1422
  %v1458 = vpop.f32.mrb[0].mxu0
  %v1459 = vadd.f32 0.0, %v1458
  %v1460 = vpop.f32.mrb[0].mxu0
  %v1461 = vadd.f32 0.0, %v1460
  %v1462 = vpop.f32.mrb[0].mxu0
  %v1463 = vpop.f32.mrb[0].mxu0
  %1464 = vdwg.mxu0
  %v1465 = vadd.f32 %v1236, %v1459
  %v1466 = vxor.u32 %v1465, 2147483648
  %v1467 = vmul.f32 %v1466, 1.442695
  %v1468 = vpow.pop %v1467
  %v1469 = vadd.f32 %v1468, 1.0
  %v1470 = vrcp.pop %v1469
  %v1471 = vmul.f32 1.0, %v1470
  %v1472 = vtanh.pop %v1465
  %v1473 = vmul.f32 %v1471, %v1377
  %1475 = vrot.lane.b32.xlu0 %v1472, 32
  %v1476 = vpop.permute.xlu0 %1475
  %v1478 = vmul.f32 %v1471, %v1476
  %1480 = vrot.lane.b32.xlu0 %v1478, 32
  %v1481 = vpop.permute.xlu0 %1480
  %v1483 = vadd.f32 %v1473, %v1481
  %v1484 = vtanh.pop %v1483
  %1486 = vrot.lane.b32.xlu0 %v1484, 32
  %v1487 = vpop.permute.xlu0 %1486
  %v1489 = vmul.f32 %v1471, %v1487
  %v1490 = vadd.f32 %v1264, %v1461
  %v1491 = vxor.u32 %v1490, 2147483648
  %v1492 = vmul.f32 %v1491, 1.442695
  %v1493 = vpow.pop %v1492
  %v1494 = vadd.f32 %v1493, 1.0
  %v1495 = vrcp.pop %v1494
  %v1496 = vmul.f32 1.0, %v1495
  %v1497 = vtanh.pop %v1490
  %v1498 = vmul.f32 %v1496, %v1402
  %1500 = vrot.lane.b32.xlu0 %v1497, 32
  %v1501 = vpop.permute.xlu0 %1500
  %v1503 = vmul.f32 %v1496, %v1501
  %1505 = vrot.lane.b32.xlu0 %v1503, 32
  %v1506 = vpop.permute.xlu0 %1505
  %v1508 = vadd.f32 %v1498, %v1506
  %v1509 = vtanh.pop %v1508
  %1511 = vrot.lane.b32.xlu0 %v1509, 32
  %v1512 = vpop.permute.xlu0 %1511
  %v1514 = vmul.f32 %v1496, %v1512
  %1516 = vrot.lane.b32.xlu0 %v1489, 64
  %v1517 = vpop.permute.xlu0 %1516
  %1519 = vst.msk [vmem:[%s465] sm:$0xff] %vm123, %v1517
  %1521 = vrot.lane.b32.xlu0 %v1514, 96
  %v1522 = vpop.permute.xlu0 %1521
  %1524 = vst.msk [vmem:[%s471] sm:$0xff] %vm363, %v1522
  %v1525 = vsel %vm123, %v1517, %v1522
  %v1526 = vpack.c.bf16 %v1525, %v1525
  %v1528 = vsel %vm258, %v1526, 0
  %1530 = vmatprep.subr.bf16.mxu0 %v1303
  %1531 = vmatpush1.bf16.msra.mxu0 %v1302
  %1532 = vmatprep.subr.bf16.mxu0 %v1305
  %1533 = vmatpush1.bf16.msra.mxu0 %v1304
  %1534 = vmatprep.subr.bf16.mxu0 %v1307
  %1535 = vmatpush1.bf16.msra.mxu0 %v1306
  %1536 = vmatprep.subr.bf16.mxu0 %v1309
  %1537 = vmatpush1.bf16.msra.mxu0 %v1308
  %1538 = vmatprep.subr.bf16.mxu0 0
  %1539 = vmatpush1.bf16.msra.mxu0 0
  %1540 = vmatprep.subr.bf16.mxu0 0
  %1541 = vmatpush1.bf16.msra.mxu0 0
  %1542 = vmatprep.subr.bf16.mxu0 0
  %1543 = vmatpush1.bf16.msra.mxu0 0
  %1544 = vmatprep.subr.bf16.mxu0 0
  %1545 = vmatpush1.bf16.msra.mxu0 0
  %1546 = vmatprep.subr.bf16.mxu0 0
  %1547 = vmatpush1.bf16.msra.mxu0 0
  %1548 = vmatprep.subr.bf16.mxu0 0
  %1549 = vmatpush1.bf16.msra.mxu0 0
  %1550 = vmatprep.subr.bf16.mxu0 0
  %1551 = vmatpush1.bf16.msra.mxu0 0
  %1552 = vmatprep.subr.bf16.mxu0 0
  %1553 = vmatpush1.bf16.msra.mxu0 0
  %1554 = vmatprep.subr.bf16.mxu0 0
  %1555 = vmatpush1.bf16.msra.mxu0 0
  %1556 = vmatprep.subr.bf16.mxu0 0
  %1557 = vmatpush1.bf16.msra.mxu0 0
  %1558 = vmatprep.subr.bf16.mxu0 0
  %1559 = vmatpush1.bf16.msra.mxu0 0
  %1560 = vmatprep.subr.bf16.mxu0 0
  %1561 = vmatpush1.bf16.msra.mxu0 0
  %1562 = vmatprep.mubr.bf16.mxu0 0
  %1563 = vmatmul.mubr.bf16.gmra.mrb[0].mxu0 %v1528
  %v1564 = vpop.f32.mrb[0].mxu0
  %v1565 = vadd.f32 0.0, %v1564
  %v1566 = vpop.f32.mrb[0].mxu0
  %v1567 = vadd.f32 0.0, %v1566
  %v1568 = vpop.f32.mrb[0].mxu0
  %v1569 = vpop.f32.mrb[0].mxu0
  %1570 = vdwg.mxu0
  %v1571 = vadd.f32 %v1242, %v1565
  %v1572 = vxor.u32 %v1571, 2147483648
  %v1573 = vmul.f32 %v1572, 1.442695
  %v1574 = vpow.pop %v1573
  %v1575 = vadd.f32 %v1574, 1.0
  %v1576 = vrcp.pop %v1575
  %v1577 = vmul.f32 1.0, %v1576
  %v1578 = vtanh.pop %v1571
  %v1579 = vmul.f32 %v1577, %v1483
  %1581 = vrot.lane.b32.xlu0 %v1578, 32
  %v1582 = vpop.permute.xlu0 %1581
  %v1584 = vmul.f32 %v1577, %v1582
  %1586 = vrot.lane.b32.xlu0 %v1584, 32
  %v1587 = vpop.permute.xlu0 %1586
  %v1589 = vadd.f32 %v1579, %v1587
  %v1590 = vtanh.pop %v1589
  %1592 = vrot.lane.b32.xlu0 %v1590, 32
  %v1593 = vpop.permute.xlu0 %1592
  %v1595 = vmul.f32 %v1577, %v1593
  %v1596 = vadd.f32 %v1258, %v1567
  %v1597 = vxor.u32 %v1596, 2147483648
  %v1598 = vmul.f32 %v1597, 1.442695
  %v1599 = vpow.pop %v1598
  %v1600 = vadd.f32 %v1599, 1.0
  %v1601 = vrcp.pop %v1600
  %v1602 = vmul.f32 1.0, %v1601
  %v1603 = vtanh.pop %v1596
  %v1604 = vmul.f32 %v1602, %v1508
  %1606 = vrot.lane.b32.xlu0 %v1603, 32
  %v1607 = vpop.permute.xlu0 %1606
  %v1609 = vmul.f32 %v1602, %v1607
  %1611 = vrot.lane.b32.xlu0 %v1609, 32
  %v1612 = vpop.permute.xlu0 %1611
  %v1614 = vadd.f32 %v1604, %v1612
  %v1615 = vtanh.pop %v1614
  %1617 = vrot.lane.b32.xlu0 %v1615, 32
  %v1618 = vpop.permute.xlu0 %1617
  %v1620 = vmul.f32 %v1602, %v1618
  %1622 = vrot.lane.b32.xlu0 %v1595, 64
  %v1623 = vpop.permute.xlu0 %1622
  %1625 = vst.msk [vmem:[%s573] sm:$0xff] %vm123, %v1623
  %1627 = vrot.lane.b32.xlu0 %v1620, 96
  %v1628 = vpop.permute.xlu0 %1627
  %1630 = vst.msk [vmem:[%s579] sm:$0xff] %vm363, %v1628
  %v1631 = vsel %vm123, %v1623, %v1628
  %v1632 = vpack.c.bf16 %v1631, %v1631
  %v1634 = vsel %vm258, %v1632, 0
  %1636 = vmatprep.subr.bf16.mxu0 %v1303
  %1637 = vmatpush1.bf16.msra.mxu0 %v1302
  %1638 = vmatprep.subr.bf16.mxu0 %v1305
  %1639 = vmatpush1.bf16.msra.mxu0 %v1304
  %1640 = vmatprep.subr.bf16.mxu0 %v1307
  %1641 = vmatpush1.bf16.msra.mxu0 %v1306
  %1642 = vmatprep.subr.bf16.mxu0 %v1309
  %1643 = vmatpush1.bf16.msra.mxu0 %v1308
  %1644 = vmatprep.subr.bf16.mxu0 0
  %1645 = vmatpush1.bf16.msra.mxu0 0
  %1646 = vmatprep.subr.bf16.mxu0 0
  %1647 = vmatpush1.bf16.msra.mxu0 0
  %1648 = vmatprep.subr.bf16.mxu0 0
  %1649 = vmatpush1.bf16.msra.mxu0 0
  %1650 = vmatprep.subr.bf16.mxu0 0
  %1651 = vmatpush1.bf16.msra.mxu0 0
  %1652 = vmatprep.subr.bf16.mxu0 0
  %1653 = vmatpush1.bf16.msra.mxu0 0
  %1654 = vmatprep.subr.bf16.mxu0 0
  %1655 = vmatpush1.bf16.msra.mxu0 0
  %1656 = vmatprep.subr.bf16.mxu0 0
  %1657 = vmatpush1.bf16.msra.mxu0 0
  %1658 = vmatprep.subr.bf16.mxu0 0
  %1659 = vmatpush1.bf16.msra.mxu0 0
  %1660 = vmatprep.subr.bf16.mxu0 0
  %1661 = vmatpush1.bf16.msra.mxu0 0
  %1662 = vmatprep.subr.bf16.mxu0 0
  %1663 = vmatpush1.bf16.msra.mxu0 0
  %1664 = vmatprep.subr.bf16.mxu0 0
  %1665 = vmatpush1.bf16.msra.mxu0 0
  %1666 = vmatprep.subr.bf16.mxu0 0
  %1667 = vmatpush1.bf16.msra.mxu0 0
  %1668 = vmatprep.mubr.bf16.mxu0 0
  %1669 = vmatmul.mubr.bf16.gmra.mrb[0].mxu0 %v1634
  %v1670 = vpop.f32.mrb[0].mxu0
  %v1671 = vadd.f32 0.0, %v1670
  %v1672 = vpop.f32.mrb[0].mxu0
  %v1673 = vadd.f32 0.0, %v1672
  %v1674 = vpop.f32.mrb[0].mxu0
  %v1675 = vpop.f32.mrb[0].mxu0
  %1676 = vdwg.mxu0
  %v1677 = vadd.f32 %v1246, %v1671
  %v1678 = vxor.u32 %v1677, 2147483648
  %v1679 = vmul.f32 %v1678, 1.442695
  %v1680 = vpow.pop %v1679
  %v1681 = vadd.f32 %v1680, 1.0
  %v1682 = vrcp.pop %v1681
  %v1683 = vmul.f32 1.0, %v1682
  %v1684 = vtanh.pop %v1677
  %v1685 = vmul.f32 %v1683, %v1589
  %1687 = vrot.lane.b32.xlu0 %v1684, 32
  %v1688 = vpop.permute.xlu0 %1687
  %v1690 = vmul.f32 %v1683, %v1688
  %1692 = vrot.lane.b32.xlu0 %v1690, 32
  %v1693 = vpop.permute.xlu0 %1692
  %v1695 = vadd.f32 %v1685, %v1693
  %v1696 = vtanh.pop %v1695
  %1698 = vrot.lane.b32.xlu0 %v1696, 32
  %v1699 = vpop.permute.xlu0 %1698
  %v1701 = vmul.f32 %v1683, %v1699
  %v1702 = vadd.f32 %v1254, %v1673
  %v1703 = vxor.u32 %v1702, 2147483648
  %v1704 = vmul.f32 %v1703, 1.442695
  %v1705 = vpow.pop %v1704
  %v1706 = vadd.f32 %v1705, 1.0
  %v1707 = vrcp.pop %v1706
  %v1708 = vmul.f32 1.0, %v1707
  %v1709 = vtanh.pop %v1702
  %v1710 = vmul.f32 %v1708, %v1614
  %1712 = vrot.lane.b32.xlu0 %v1709, 32
  %v1713 = vpop.permute.xlu0 %1712
  %v1715 = vmul.f32 %v1708, %v1713
  %1717 = vrot.lane.b32.xlu0 %v1715, 32
  %v1718 = vpop.permute.xlu0 %1717
  %v1720 = vadd.f32 %v1710, %v1718
  %v1721 = vtanh.pop %v1720
  %1723 = vrot.lane.b32.xlu0 %v1721, 32
  %v1724 = vpop.permute.xlu0 %1723
  %v1726 = vmul.f32 %v1708, %v1724
  %1728 = vrot.lane.b32.xlu0 %v1701, 64
  %v1729 = vpop.permute.xlu0 %1728
  %1731 = vst.msk [vmem:[%s681] sm:$0xff] %vm123, %v1729
  %1733 = vrot.lane.b32.xlu0 %v1726, 96
  %v1734 = vpop.permute.xlu0 %1733
  %1736 = vst.msk [vmem:[%s687] sm:$0xff] %vm363, %v1734
  %v1737 = vsel %vm123, %v1729, %v1734
  %v1738 = vpack.c.bf16 %v1737, %v1737
  %v1740 = vsel %vm258, %v1738, 0
  %1742 = vmatprep.subr.bf16.mxu0 %v1303
  %1743 = vmatpush1.bf16.msra.mxu0 %v1302
  %1744 = vmatprep.subr.bf16.mxu0 %v1305
  %1745 = vmatpush1.bf16.msra.mxu0 %v1304
  %1746 = vmatprep.subr.bf16.mxu0 %v1307
  %1747 = vmatpush1.bf16.msra.mxu0 %v1306
  %1748 = vmatprep.subr.bf16.mxu0 %v1309
  %1749 = vmatpush1.bf16.msra.mxu0 %v1308
  %1750 = vmatprep.subr.bf16.mxu0 0
  %1751 = vmatpush1.bf16.msra.mxu0 0
  %1752 = vmatprep.subr.bf16.mxu0 0
  %1753 = vmatpush1.bf16.msra.mxu0 0
  %1754 = vmatprep.subr.bf16.mxu0 0
  %1755 = vmatpush1.bf16.msra.mxu0 0
  %1756 = vmatprep.subr.bf16.mxu0 0
  %1757 = vmatpush1.bf16.msra.mxu0 0
  %1758 = vmatprep.subr.bf16.mxu0 0
  %1759 = vmatpush1.bf16.msra.mxu0 0
  %1760 = vmatprep.subr.bf16.mxu0 0
  %1761 = vmatpush1.bf16.msra.mxu0 0
  %1762 = vmatprep.subr.bf16.mxu0 0
  %1763 = vmatpush1.bf16.msra.mxu0 0
  %1764 = vmatprep.subr.bf16.mxu0 0
  %1765 = vmatpush1.bf16.msra.mxu0 0
  %1766 = vmatprep.subr.bf16.mxu0 0
  %1767 = vmatpush1.bf16.msra.mxu0 0
  %1768 = vmatprep.subr.bf16.mxu0 0
  %1769 = vmatpush1.bf16.msra.mxu0 0
  %1770 = vmatprep.subr.bf16.mxu0 0
  %1771 = vmatpush1.bf16.msra.mxu0 0
  %1772 = vmatprep.subr.bf16.mxu0 0
  %1773 = vmatpush1.bf16.msra.mxu0 0
  %1774 = vmatprep.mubr.bf16.mxu0 0
  %1775 = vmatmul.mubr.bf16.gmra.mrb[0].mxu0 %v1740
  %v1776 = vpop.f32.mrb[0].mxu0
  %v1777 = vadd.f32 0.0, %v1776
  %v1778 = vpop.f32.mrb[0].mxu0
  %v1779 = vadd.f32 0.0, %v1778
  %v1780 = vpop.f32.mrb[0].mxu0
  %v1781 = vpop.f32.mrb[0].mxu0
  %1782 = vdwg.mxu0
  %v1783 = vadd.f32 %v1252, %v1777
  %v1784 = vxor.u32 %v1783, 2147483648
  %v1785 = vmul.f32 %v1784, 1.442695
  %v1786 = vpow.pop %v1785
  %v1787 = vadd.f32 %v1786, 1.0
  %v1788 = vrcp.pop %v1787
  %v1789 = vmul.f32 1.0, %v1788
  %v1790 = vtanh.pop %v1783
  %v1791 = vmul.f32 %v1789, %v1695
  %1793 = vrot.lane.b32.xlu0 %v1790, 32
  %v1794 = vpop.permute.xlu0 %1793
  %v1796 = vmul.f32 %v1789, %v1794
  %1798 = vrot.lane.b32.xlu0 %v1796, 32
  %v1799 = vpop.permute.xlu0 %1798
  %v1801 = vadd.f32 %v1791, %v1799
  %v1802 = vtanh.pop %v1801
  %1804 = vrot.lane.b32.xlu0 %v1802, 32
  %v1805 = vpop.permute.xlu0 %1804
  %v1807 = vmul.f32 %v1789, %v1805
  %v1808 = vadd.f32 %v1248, %v1779
  %v1809 = vxor.u32 %v1808, 2147483648
  %v1810 = vmul.f32 %v1809, 1.442695
  %v1811 = vpow.pop %v1810
  %v1812 = vadd.f32 %v1811, 1.0
  %v1813 = vrcp.pop %v1812
  %v1814 = vmul.f32 1.0, %v1813
  %v1815 = vtanh.pop %v1808
  %v1816 = vmul.f32 %v1814, %v1720
  %1818 = vrot.lane.b32.xlu0 %v1815, 32
  %v1819 = vpop.permute.xlu0 %1818
  %v1821 = vmul.f32 %v1814, %v1819
  %1823 = vrot.lane.b32.xlu0 %v1821, 32
  %v1824 = vpop.permute.xlu0 %1823
  %v1826 = vadd.f32 %v1816, %v1824
  %v1827 = vtanh.pop %v1826
  %1829 = vrot.lane.b32.xlu0 %v1827, 32
  %v1830 = vpop.permute.xlu0 %1829
  %v1832 = vmul.f32 %v1814, %v1830
  %1834 = vrot.lane.b32.xlu0 %v1807, 64
  %v1835 = vpop.permute.xlu0 %1834
  %1837 = vst.msk [vmem:[%s687] sm:$0xff] %vm123, %v1835
  %1839 = vrot.lane.b32.xlu0 %v1832, 96
  %v1840 = vpop.permute.xlu0 %1839
  %1842 = vst.msk [vmem:[%s681] sm:$0xff] %vm363, %v1840
  %v1843 = vsel %vm123, %v1835, %v1840
  %v1844 = vpack.c.bf16 %v1843, %v1843
  %v1846 = vsel %vm258, %v1844, 0
  %1848 = vmatprep.subr.bf16.mxu0 %v1303
  %1849 = vmatpush1.bf16.msra.mxu0 %v1302
  %1850 = vmatprep.subr.bf16.mxu0 %v1305
  %1851 = vmatpush1.bf16.msra.mxu0 %v1304
  %1852 = vmatprep.subr.bf16.mxu0 %v1307
  %1853 = vmatpush1.bf16.msra.mxu0 %v1306
  %1854 = vmatprep.subr.bf16.mxu0 %v1309
  %1855 = vmatpush1.bf16.msra.mxu0 %v1308
  %1856 = vmatprep.subr.bf16.mxu0 0
  %1857 = vmatpush1.bf16.msra.mxu0 0
  %1858 = vmatprep.subr.bf16.mxu0 0
  %1859 = vmatpush1.bf16.msra.mxu0 0
  %1860 = vmatprep.subr.bf16.mxu0 0
  %1861 = vmatpush1.bf16.msra.mxu0 0
  %1862 = vmatprep.subr.bf16.mxu0 0
  %1863 = vmatpush1.bf16.msra.mxu0 0
  %1864 = vmatprep.subr.bf16.mxu0 0
  %1865 = vmatpush1.bf16.msra.mxu0 0
  %1866 = vmatprep.subr.bf16.mxu0 0
  %1867 = vmatpush1.bf16.msra.mxu0 0
  %1868 = vmatprep.subr.bf16.mxu0 0
  %1869 = vmatpush1.bf16.msra.mxu0 0
  %1870 = vmatprep.subr.bf16.mxu0 0
  %1871 = vmatpush1.bf16.msra.mxu0 0
  %1872 = vmatprep.subr.bf16.mxu0 0
  %1873 = vmatpush1.bf16.msra.mxu0 0
  %1874 = vmatprep.subr.bf16.mxu0 0
  %1875 = vmatpush1.bf16.msra.mxu0 0
  %1876 = vmatprep.subr.bf16.mxu0 0
  %1877 = vmatpush1.bf16.msra.mxu0 0
  %1878 = vmatprep.subr.bf16.mxu0 0
  %1879 = vmatpush1.bf16.msra.mxu0 0
  %1880 = vmatprep.mubr.bf16.mxu0 0
  %1881 = vmatmul.mubr.bf16.gmra.mrb[0].mxu0 %v1846
  %v1882 = vpop.f32.mrb[0].mxu0
  %v1883 = vadd.f32 0.0, %v1882
  %v1884 = vpop.f32.mrb[0].mxu0
  %v1885 = vadd.f32 0.0, %v1884
  %v1886 = vpop.f32.mrb[0].mxu0
  %v1887 = vpop.f32.mrb[0].mxu0
  %1888 = vdwg.mxu0
  %v1889 = vadd.f32 %v1256, %v1883
  %v1890 = vxor.u32 %v1889, 2147483648
  %v1891 = vmul.f32 %v1890, 1.442695
  %v1892 = vpow.pop %v1891
  %v1893 = vadd.f32 %v1892, 1.0
  %v1894 = vrcp.pop %v1893
  %v1895 = vmul.f32 1.0, %v1894
  %v1896 = vtanh.pop %v1889
  %v1897 = vmul.f32 %v1895, %v1801
  %1899 = vrot.lane.b32.xlu0 %v1896, 32
  %v1900 = vpop.permute.xlu0 %1899
  %v1902 = vmul.f32 %v1895, %v1900
  %1904 = vrot.lane.b32.xlu0 %v1902, 32
  %v1905 = vpop.permute.xlu0 %1904
  %v1907 = vadd.f32 %v1897, %v1905
  %v1908 = vtanh.pop %v1907
  %1910 = vrot.lane.b32.xlu0 %v1908, 32
  %v1911 = vpop.permute.xlu0 %1910
  %v1913 = vmul.f32 %v1895, %v1911
  %v1914 = vadd.f32 %v1244, %v1885
  %v1915 = vxor.u32 %v1914, 2147483648
  %v1916 = vmul.f32 %v1915, 1.442695
  %v1917 = vpow.pop %v1916
  %v1918 = vadd.f32 %v1917, 1.0
  %v1919 = vrcp.pop %v1918
  %v1920 = vmul.f32 1.0, %v1919
  %v1921 = vtanh.pop %v1914
  %v1922 = vmul.f32 %v1920, %v1826
  %1924 = vrot.lane.b32.xlu0 %v1921, 32
  %v1925 = vpop.permute.xlu0 %1924
  %v1927 = vmul.f32 %v1920, %v1925
  %1929 = vrot.lane.b32.xlu0 %v1927, 32
  %v1930 = vpop.permute.xlu0 %1929
  %v1932 = vadd.f32 %v1922, %v1930
  %v1933 = vtanh.pop %v1932
  %1935 = vrot.lane.b32.xlu0 %v1933, 32
  %v1936 = vpop.permute.xlu0 %1935
  %v1938 = vmul.f32 %v1920, %v1936
  %1940 = vrot.lane.b32.xlu0 %v1913, 64
  %v1941 = vpop.permute.xlu0 %1940
  %1943 = vst.msk [vmem:[%s579] sm:$0xff] %vm123, %v1941
  %1945 = vrot.lane.b32.xlu0 %v1938, 96
  %v1946 = vpop.permute.xlu0 %1945
  %1948 = vst.msk [vmem:[%s573] sm:$0xff] %vm363, %v1946
  %v1949 = vsel %vm123, %v1941, %v1946
  %v1950 = vpack.c.bf16 %v1949, %v1949
  %v1952 = vsel %vm258, %v1950, 0
  %1954 = vmatprep.subr.bf16.mxu0 %v1303
  %1955 = vmatpush1.bf16.msra.mxu0 %v1302
  %1956 = vmatprep.subr.bf16.mxu0 %v1305
  %1957 = vmatpush1.bf16.msra.mxu0 %v1304
  %1958 = vmatprep.subr.bf16.mxu0 %v1307
  %1959 = vmatpush1.bf16.msra.mxu0 %v1306
  %1960 = vmatprep.subr.bf16.mxu0 %v1309
  %1961 = vmatpush1.bf16.msra.mxu0 %v1308
  %1962 = vmatprep.subr.bf16.mxu0 0
  %1963 = vmatpush1.bf16.msra.mxu0 0
  %1964 = vmatprep.subr.bf16.mxu0 0
  %1965 = vmatpush1.bf16.msra.mxu0 0
  %1966 = vmatprep.subr.bf16.mxu0 0
  %1967 = vmatpush1.bf16.msra.mxu0 0
  %1968 = vmatprep.subr.bf16.mxu0 0
  %1969 = vmatpush1.bf16.msra.mxu0 0
  %1970 = vmatprep.subr.bf16.mxu0 0
  %1971 = vmatpush1.bf16.msra.mxu0 0
  %1972 = vmatprep.subr.bf16.mxu0 0
  %1973 = vmatpush1.bf16.msra.mxu0 0
  %1974 = vmatprep.subr.bf16.mxu0 0
  %1975 = vmatpush1.bf16.msra.mxu0 0
  %1976 = vmatprep.subr.bf16.mxu0 0
  %1977 = vmatpush1.bf16.msra.mxu0 0
  %1978 = vmatprep.subr.bf16.mxu0 0
  %1979 = vmatpush1.bf16.msra.mxu0 0
  %1980 = vmatprep.subr.bf16.mxu0 0
  %1981 = vmatpush1.bf16.msra.mxu0 0
  %1982 = vmatprep.subr.bf16.mxu0 0
  %1983 = vmatpush1.bf16.msra.mxu0 0
  %1984 = vmatprep.subr.bf16.mxu0 0
  %1985 = vmatpush1.bf16.msra.mxu0 0
  %1986 = vmatprep.mubr.bf16.mxu0 0
  %1987 = vmatmul.mubr.bf16.gmra.mrb[0].mxu0 %v1952
  %v1988 = vpop.f32.mrb[0].mxu0
  %v1989 = vadd.f32 0.0, %v1988
  %v1990 = vpop.f32.mrb[0].mxu0
  %v1991 = vadd.f32 0.0, %v1990
  %v1992 = vpop.f32.mrb[0].mxu0
  %v1993 = vpop.f32.mrb[0].mxu0
  %1994 = vdwg.mxu0
  %v1995 = vadd.f32 %v1262, %v1989
  %v1996 = vxor.u32 %v1995, 2147483648
  %v1997 = vmul.f32 %v1996, 1.442695
  %v1998 = vpow.pop %v1997
  %v1999 = vadd.f32 %v1998, 1.0
  %v2000 = vrcp.pop %v1999
  %v2001 = vmul.f32 1.0, %v2000
  %v2002 = vtanh.pop %v1995
  %v2003 = vmul.f32 %v2001, %v1907
  %2005 = vrot.lane.b32.xlu0 %v2002, 32
  %v2006 = vpop.permute.xlu0 %2005
  %v2008 = vmul.f32 %v2001, %v2006
  %2010 = vrot.lane.b32.xlu0 %v2008, 32
  %v2011 = vpop.permute.xlu0 %2010
  %v2013 = vadd.f32 %v2003, %v2011
  %v2014 = vtanh.pop %v2013
  %2016 = vrot.lane.b32.xlu0 %v2014, 32
  %v2017 = vpop.permute.xlu0 %2016
  %v2019 = vmul.f32 %v2001, %v2017
  %v2020 = vadd.f32 %v1238, %v1991
  %v2021 = vxor.u32 %v2020, 2147483648
  %v2022 = vmul.f32 %v2021, 1.442695
  %v2023 = vpow.pop %v2022
  %v2024 = vadd.f32 %v2023, 1.0
  %v2025 = vrcp.pop %v2024
  %v2026 = vmul.f32 1.0, %v2025
  %v2027 = vtanh.pop %v2020
  %v2028 = vmul.f32 %v2026, %v1932
  %2030 = vrot.lane.b32.xlu0 %v2027, 32
  %v2031 = vpop.permute.xlu0 %2030
  %v2033 = vmul.f32 %v2026, %v2031
  %2035 = vrot.lane.b32.xlu0 %v2033, 32
  %v2036 = vpop.permute.xlu0 %2035
  %v2038 = vadd.f32 %v2028, %v2036
  %v2039 = vtanh.pop %v2038
  %2041 = vrot.lane.b32.xlu0 %v2039, 32
  %v2042 = vpop.permute.xlu0 %2041
  %v2044 = vmul.f32 %v2026, %v2042
  %2046 = vrot.lane.b32.xlu0 %v2019, 64
  %v2047 = vpop.permute.xlu0 %2046
  %2049 = vst.msk [vmem:[%s471] sm:$0xff] %vm123, %v2047
  %2051 = vrot.lane.b32.xlu0 %v2044, 96
  %v2052 = vpop.permute.xlu0 %2051
  %2054 = vst.msk [vmem:[%s465] sm:$0xff] %vm363, %v2052
  %v2055 = vsel %vm123, %v2047, %v2052
  %v2056 = vpack.c.bf16 %v2055, %v2055
  %v2058 = vsel %vm258, %v2056, 0
  %2060 = vmatprep.subr.bf16.mxu0 %v1303
  %2061 = vmatpush1.bf16.msra.mxu0 %v1302
  %2062 = vmatprep.subr.bf16.mxu0 %v1305
  %2063 = vmatpush1.bf16.msra.mxu0 %v1304
  %2064 = vmatprep.subr.bf16.mxu0 %v1307
  %2065 = vmatpush1.bf16.msra.mxu0 %v1306
  %2066 = vmatprep.subr.bf16.mxu0 %v1309
  %2067 = vmatpush1.bf16.msra.mxu0 %v1308
  %2068 = vmatprep.subr.bf16.mxu0 0
  %2069 = vmatpush1.bf16.msra.mxu0 0
  %2070 = vmatprep.subr.bf16.mxu0 0
  %2071 = vmatpush1.bf16.msra.mxu0 0
  %2072 = vmatprep.subr.bf16.mxu0 0
  %2073 = vmatpush1.bf16.msra.mxu0 0
  %2074 = vmatprep.subr.bf16.mxu0 0
  %2075 = vmatpush1.bf16.msra.mxu0 0
  %2076 = vmatprep.subr.bf16.mxu0 0
  %2077 = vmatpush1.bf16.msra.mxu0 0
  %2078 = vmatprep.subr.bf16.mxu0 0
  %2079 = vmatpush1.bf16.msra.mxu0 0
  %2080 = vmatprep.subr.bf16.mxu0 0
  %2081 = vmatpush1.bf16.msra.mxu0 0
  %2082 = vmatprep.subr.bf16.mxu0 0
  %2083 = vmatpush1.bf16.msra.mxu0 0
  %2084 = vmatprep.subr.bf16.mxu0 0
  %2085 = vmatpush1.bf16.msra.mxu0 0
  %2086 = vmatprep.subr.bf16.mxu0 0
  %2087 = vmatpush1.bf16.msra.mxu0 0
  %2088 = vmatprep.subr.bf16.mxu0 0
  %2089 = vmatpush1.bf16.msra.mxu0 0
  %2090 = vmatprep.subr.bf16.mxu0 0
  %2091 = vmatpush1.bf16.msra.mxu0 0
  %2092 = vmatprep.mubr.bf16.mxu0 0
  %2093 = vmatmul.mubr.bf16.gmra.mrb[0].mxu0 %v2058
  %v2094 = vpop.f32.mrb[0].mxu0
  %v2095 = vadd.f32 0.0, %v2094
  %v2096 = vpop.f32.mrb[0].mxu0
  %v2097 = vadd.f32 0.0, %v2096
  %v2098 = vpop.f32.mrb[0].mxu0
  %v2099 = vpop.f32.mrb[0].mxu0
  %2100 = vdwg.mxu0
  %v2101 = vadd.f32 %v1266, %v2095
  %v2102 = vxor.u32 %v2101, 2147483648
  %v2103 = vmul.f32 %v2102, 1.442695
  %v2104 = vpow.pop %v2103
  %v2105 = vadd.f32 %v2104, 1.0
  %v2106 = vrcp.pop %v2105
  %v2107 = vmul.f32 1.0, %v2106
  %v2108 = vtanh.pop %v2101
  %v2109 = vmul.f32 %v2107, %v2013
  %2111 = vrot.lane.b32.xlu0 %v2108, 32
  %v2112 = vpop.permute.xlu0 %2111
  %v2114 = vmul.f32 %v2107, %v2112
  %2116 = vrot.lane.b32.xlu0 %v2114, 32
  %v2117 = vpop.permute.xlu0 %2116
  %v2119 = vadd.f32 %v2109, %v2117
  %v2120 = vtanh.pop %v2119
  %2122 = vrot.lane.b32.xlu0 %v2120, 32
  %v2123 = vpop.permute.xlu0 %2122
  %v2125 = vmul.f32 %v2107, %v2123
  %v2126 = vadd.f32 %v1234, %v2097
  %v2127 = vxor.u32 %v2126, 2147483648
  %v2128 = vmul.f32 %v2127, 1.442695
  %v2129 = vpow.pop %v2128
  %v2130 = vadd.f32 %v2129, 1.0
  %v2131 = vrcp.pop %v2130
  %v2132 = vmul.f32 1.0, %v2131
  %v2133 = vtanh.pop %v2126
  %v2134 = vmul.f32 %v2132, %v2038
  %2136 = vrot.lane.b32.xlu0 %v2133, 32
  %v2137 = vpop.permute.xlu0 %2136
  %v2139 = vmul.f32 %v2132, %v2137
  %2141 = vrot.lane.b32.xlu0 %v2139, 32
  %v2142 = vpop.permute.xlu0 %2141
  %v2144 = vadd.f32 %v2134, %v2142
  %v2145 = vtanh.pop %v2144
  %2147 = vrot.lane.b32.xlu0 %v2145, 32
  %v2148 = vpop.permute.xlu0 %2147
  %v2150 = vmul.f32 %v2132, %v2148
  %2152 = vrot.lane.b32.xlu0 %v2125, 64
  %v2153 = vpop.permute.xlu0 %2152
  %2155 = vst.msk [vmem:[%s362] sm:$0xff] %vm123, %v2153
  %2157 = vrot.lane.b32.xlu0 %v2150, 96
  %v2158 = vpop.permute.xlu0 %2157
  %2160 = vst.msk [vmem:[#allocation2] sm:$0xff] %vm363, %v2158
  %v2161 = vld [vmem:[#allocation2] sm:$0xff]
  %v2162 = vld [vmem:[#allocation2 + $0x8] sm:$0xff]
  %v2163 = vld [vmem:[#allocation2 + $0x10] sm:$0xff]
  %v2164 = vld [vmem:[#allocation2 + $0x18] sm:$0xff]
  %v2165 = vld [vmem:[#allocation2 + $0x20] sm:$0xff]
  %v2166 = vld [vmem:[#allocation2 + $0x28] sm:$0xff]
  %v2167 = vld [vmem:[#allocation2 + $0x30] sm:$0xff]
  %v2168 = vld [vmem:[#allocation2 + $0x38] sm:$0xff]
  %v2169 = vpack.c.bf16 %v2162, %v2161
  %v2170 = vpack.c.bf16 %v2164, %v2163
  %v2171 = vpack.c.bf16 %v2166, %v2165
  %v2172 = vpack.c.bf16 %v2168, %v2167
  %v2173 = vld [vmem:[%s7] sm:$0xf]
  %v2174 = vld [vmem:[%s7 + $0x4] sm:$0xf]
  %v2175 = vld [vmem:[%s7 + $0x8] sm:$0xf]
  %v2176 = vld [vmem:[%s7 + $0xc] sm:$0xf]
  %v2177 = vld [vmem:[%s7 + $0x10] sm:$0xf]
  %v2178 = vld [vmem:[%s7 + $0x14] sm:$0xf]
  %v2179 = vld [vmem:[%s7 + $0x18] sm:$0xf]
  %v2180 = vld [vmem:[%s7 + $0x1c] sm:$0xf]
  %v2181 = vld [vmem:[%s8] sm:$0x1]
  %v2183 = vlaneseq
  %v2184 = vshrl.u32 %v2183, 7
  %v2185 = vsub.s32 0, %v2184
  %v2186 = vrot.slane %v2181, %v2185
  %v2196 = vunpack.c.l.b16 %v2173
  %v2197 = vunpack.c.l.b16 %v2174
  %v2198 = vunpack.c.l.b16 %v2175
  %v2199 = vunpack.c.l.b16 %v2176
  %v2200 = vunpack.c.l.b16 %v2177
  %v2201 = vunpack.c.l.b16 %v2178
  %v2202 = vunpack.c.l.b16 %v2179
  %v2203 = vunpack.c.l.b16 %v2180
  %v2204 = vpack.c.b16 %v2197, %v2196
  %v2205 = vpack.c.b16 %v2199, %v2198
  %v2206 = vpack.c.b16 %v2201, %v2200
  %v2207 = vpack.c.b16 %v2203, %v2202
  %v2213 = vsel %vm258, %v2169, 0
  %v2216 = vsel %vm258, %v2170, 0
  %v2219 = vsel %vm258, %v2171, 0
  %v2222 = vsel %vm258, %v2172, 0
  %2224 = vmatprep.subr.bf16.mxu0 0
  %2225 = vmatpush1.bf16.msra.mxu0 %v2204
  %2226 = vmatprep.subr.bf16.mxu0 0
  %2227 = vmatpush1.bf16.msra.mxu0 %v2205
  %2228 = vmatprep.subr.bf16.mxu0 0
  %2229 = vmatpush1.bf16.msra.mxu0 %v2206
  %2230 = vmatprep.subr.bf16.mxu0 0
  %2231 = vmatpush1.bf16.msra.mxu0 %v2207
  %2232 = vmatprep.subr.bf16.mxu0 0
  %2233 = vmatpush1.bf16.msra.mxu0 0
  %2234 = vmatprep.subr.bf16.mxu0 0
  %2235 = vmatpush1.bf16.msra.mxu0 0
  %2236 = vmatprep.subr.bf16.mxu0 0
  %2237 = vmatpush1.bf16.msra.mxu0 0
  %2238 = vmatprep.subr.bf16.mxu0 0
  %2239 = vmatpush1.bf16.msra.mxu0 0
  %2240 = vmatprep.subr.bf16.mxu0 0
  %2241 = vmatpush1.bf16.msra.mxu0 0
  %2242 = vmatprep.subr.bf16.mxu0 0
  %2243 = vmatpush1.bf16.msra.mxu0 0
  %2244 = vmatprep.subr.bf16.mxu0 0
  %2245 = vmatpush1.bf16.msra.mxu0 0
  %2246 = vmatprep.subr.bf16.mxu0 0
  %2247 = vmatpush1.bf16.msra.mxu0 0
  %2248 = vmatprep.subr.bf16.mxu0 0
  %2249 = vmatpush1.bf16.msra.mxu0 0
  %2250 = vmatprep.subr.bf16.mxu0 0
  %2251 = vmatpush1.bf16.msra.mxu0 0
  %2252 = vmatprep.subr.bf16.mxu0 0
  %2253 = vmatpush1.bf16.msra.mxu0 0
  %2254 = vmatprep.subr.bf16.mxu0 0
  %2255 = vmatpush1.bf16.msra.mxu0 0
  %2256 = vmatprep.mubr.bf16.mxu0 0
  %2257 = vmatmul.mubr.bf16.gmra.mrb[0].mxu0 %v2213
  %v2258 = vpop.f32.mrb[0].mxu0
  %v2259 = vadd.f32 %v2186, %v2258
  %v2260 = vpop.f32.mrb[0].mxu0
  %v2261 = vpop.f32.mrb[0].mxu0
  %v2262 = vadd.f32 %v2186, %v2261
  %v2263 = vpop.f32.mrb[0].mxu0
  %2264 = vmatprep.mubr.bf16.mxu0 0
  %2265 = vmatmul.mubr.bf16.gmra.mrb[0].mxu0 %v2216
  %v2266 = vpop.f32.mrb[0].mxu0
  %v2267 = vadd.f32 %v2186, %v2266
  %v2268 = vpop.f32.mrb[0].mxu0
  %v2269 = vpop.f32.mrb[0].mxu0
  %v2270 = vadd.f32 %v2186, %v2269
  %v2271 = vpop.f32.mrb[0].mxu0
  %2272 = vmatprep.mubr.bf16.mxu0 0
  %2273 = vmatmul.mubr.bf16.gmra.mrb[0].mxu0 %v2219
  %v2274 = vpop.f32.mrb[0].mxu0
  %v2275 = vadd.f32 %v2186, %v2274
  %v2276 = vpop.f32.mrb[0].mxu0
  %v2277 = vpop.f32.mrb[0].mxu0
  %v2278 = vadd.f32 %v2186, %v2277
  %v2279 = vpop.f32.mrb[0].mxu0
  %2280 = vmatprep.mubr.bf16.mxu0 0
  %2281 = vmatmul.mubr.bf16.gmra.mrb[0].mxu0 %v2222
  %v2282 = vpop.f32.mrb[0].mxu0
  %v2283 = vadd.f32 %v2186, %v2282
  %v2284 = vpop.f32.mrb[0].mxu0
  %v2285 = vpop.f32.mrb[0].mxu0
  %v2286 = vadd.f32 %v2186, %v2285
  %v2287 = vpop.f32.mrb[0].mxu0
  %2288 = vdwg.mxu0
  %v2289 = vtanh.pop %v2259
  %v2290 = vtanh.pop %v2262
  %v2291 = vtanh.pop %v2267
  %v2292 = vtanh.pop %v2270
  %v2293 = vtanh.pop %v2275
  %v2294 = vtanh.pop %v2278
  %v2295 = vtanh.pop %v2283
  %v2296 = vtanh.pop %v2286
  %v2297 = vld [vmem:[%s9] sm:$0x1]
  %v2299 = vlaneseq
  %v2300 = vshrl.u32 %v2299, 7
  %v2301 = vsub.s32 0, %v2300
  %v2302 = vrot.slane %v2297, %v2301
  %v2304 = vmul.f32 %v2289, %v2302
  %v2305 = vmul.f32 %v2290, %v2302
  %v2306 = vmul.f32 %v2291, %v2302
  %v2307 = vmul.f32 %v2292, %v2302
  %v2308 = vmul.f32 %v2293, %v2302
  %v2309 = vmul.f32 %v2294, %v2302
  %v2310 = vmul.f32 %v2295, %v2302
  %v2311 = vmul.f32 %v2296, %v2302
  %v2312 = vsel %vm123, %v2304, 0.0
  %2313 = vadd.xlane.f32.xlu0 %v2312
  %v2314 = vpop.xlane.xlu0 %2313
  %v2315 = vsel %vm123, %v2305, 0.0
  %2316 = vadd.xlane.f32.xlu0 %v2315
  %v2317 = vpop.xlane.xlu0 %2316
  %v2318 = vsel %vm123, %v2306, 0.0
  %2319 = vadd.xlane.f32.xlu0 %v2318
  %v2320 = vpop.xlane.xlu0 %2319
  %v2321 = vsel %vm123, %v2307, 0.0
  %2322 = vadd.xlane.f32.xlu0 %v2321
  %v2323 = vpop.xlane.xlu0 %2322
  %v2324 = vsel %vm123, %v2308, 0.0
  %2325 = vadd.xlane.f32.xlu0 %v2324
  %v2326 = vpop.xlane.xlu0 %2325
  %v2327 = vsel %vm123, %v2309, 0.0
  %2328 = vadd.xlane.f32.xlu0 %v2327
  %v2329 = vpop.xlane.xlu0 %2328
  %v2330 = vsel %vm123, %v2310, 0.0
  %2331 = vadd.xlane.f32.xlu0 %v2330
  %v2332 = vpop.xlane.xlu0 %2331
  %v2333 = vsel %vm123, %v2311, 0.0
  %2334 = vadd.xlane.f32.xlu0 %v2333
  %v2335 = vpop.xlane.xlu0 %2334
  %v2336 = vld [vmem:[#allocation3] sm:$0x1]
  %v2338 = vlaneseq
  %v2339 = vshrl.u32 %v2338, 7
  %v2340 = vsub.s32 0, %v2339
  %v2341 = vrot.slane %v2336, %v2340
  %v2343 = vadd.f32 %v2314, %v2341
  %v2344 = vadd.f32 %v2317, %v2341
  %v2345 = vadd.f32 %v2320, %v2341
  %v2346 = vadd.f32 %v2323, %v2341
  %v2347 = vadd.f32 %v2326, %v2341
  %v2348 = vadd.f32 %v2329, %v2341
  %v2349 = vadd.f32 %v2332, %v2341
  %v2350 = vadd.f32 %v2335, %v2341
  %vm2351 = vcmask 7168
  %v2352 = vsel %vm2351, %v2343, -inf
  %v2353 = vsel %vm2351, %v2344, -inf
  %v2354 = vsel %vm2351, %v2345, -inf
  %v2355 = vsel %vm2351, %v2346, -inf
  %v2356 = vsel %vm2351, %v2347, -inf
  %v2357 = vmax.f32 %v2352, %v2356
  %v2358 = vsel %vm2351, %v2348, -inf
  %v2359 = vmax.f32 %v2353, %v2358
  %v2360 = vsel %vm2351, %v2349, -inf
  %v2361 = vmax.f32 %v2354, %v2360
  %v2362 = vsel %vm2351, %v2350, -inf
  %v2363 = vmax.f32 %v2355, %v2362
  %v2364 = vmax.f32 %v2357, %v2359
  %v2365 = vmax.f32 %v2361, %v2363
  %v2366 = vmax.f32 %v2364, %v2365
  %v2367 = vsub.f32 %v2343, %v2366
  %v2368 = vsub.f32 %v2344, %v2366
  %v2369 = vsub.f32 %v2345, %v2366
  %v2370 = vsub.f32 %v2346, %v2366
  %v2371 = vsub.f32 %v2347, %v2366
  %v2372 = vsub.f32 %v2348, %v2366
  %v2373 = vsub.f32 %v2349, %v2366
  %v2374 = vsub.f32 %v2350, %v2366
  %v2375 = vmul.f32 %v2367, 1.442695
  %v2376 = vpow.pop %v2375
  %v2377 = vmul.f32 %v2368, 1.442695
  %v2378 = vpow.pop %v2377
  %v2379 = vmul.f32 %v2369, 1.442695
  %v2380 = vpow.pop %v2379
  %v2381 = vmul.f32 %v2370, 1.442695
  %v2382 = vpow.pop %v2381
  %v2383 = vmul.f32 %v2371, 1.442695
  %v2384 = vpow.pop %v2383
  %v2385 = vmul.f32 %v2372, 1.442695
  %v2386 = vpow.pop %v2385
  %v2387 = vmul.f32 %v2373, 1.442695
  %v2388 = vpow.pop %v2387
  %v2389 = vmul.f32 %v2374, 1.442695
  %v2390 = vpow.pop %v2389
  %v2391 = vsel %vm2351, %v2376, 0.0
  %v2392 = vsel %vm2351, %v2378, 0.0
  %v2393 = vadd.f32 %v2391, %v2392
  %v2394 = vsel %vm2351, %v2380, 0.0
  %v2395 = vadd.f32 %v2393, %v2394
  %v2396 = vsel %vm2351, %v2382, 0.0
  %v2397 = vadd.f32 %v2395, %v2396
  %v2398 = vsel %vm2351, %v2384, 0.0
  %v2399 = vadd.f32 %v2397, %v2398
  %v2400 = vsel %vm2351, %v2386, 0.0
  %v2401 = vadd.f32 %v2399, %v2400
  %v2402 = vsel %vm2351, %v2388, 0.0
  %v2403 = vadd.f32 %v2401, %v2402
  %v2404 = vsel %vm2351, %v2390, 0.0
  %v2405 = vadd.f32 %v2403, %v2404
  %v2406 = vrcp.pop %v2405
  %v2407 = vmul.f32 %v2376, %v2406
  %v2408 = vmul.f32 %v2378, %v2406
  %v2409 = vmul.f32 %v2380, %v2406
  %v2410 = vmul.f32 %v2382, %v2406
  %v2411 = vmul.f32 %v2384, %v2406
  %v2412 = vmul.f32 %v2386, %v2406
  %v2413 = vmul.f32 %v2388, %v2406
  %v2414 = vmul.f32 %v2390, %v2406
  %2416 = vset.pattern.permute.xlu0 0
  %2417 = vperm.xlu0 %2416, %v2407
  %v2418 = vpop.permute.xlu0 %2417
  %2421 = vset.pattern.permute.xlu0 0
  %2422 = vperm.xlu0 %2421, %v2408
  %v2423 = vpop.permute.xlu0 %2422
  %2426 = vset.pattern.permute.xlu0 0
  %2427 = vperm.xlu0 %2426, %v2409
  %v2428 = vpop.permute.xlu0 %2427
  %2431 = vset.pattern.permute.xlu0 0
  %2432 = vperm.xlu0 %2431, %v2410
  %v2433 = vpop.permute.xlu0 %2432
  %2436 = vset.pattern.permute.xlu0 0
  %2437 = vperm.xlu0 %2436, %v2411
  %v2438 = vpop.permute.xlu0 %2437
  %2441 = vset.pattern.permute.xlu0 0
  %2442 = vperm.xlu0 %2441, %v2412
  %v2443 = vpop.permute.xlu0 %2442
  %2446 = vset.pattern.permute.xlu0 0
  %2447 = vperm.xlu0 %2446, %v2413
  %v2448 = vpop.permute.xlu0 %2447
  %2451 = vset.pattern.permute.xlu0 0
  %2452 = vperm.xlu0 %2451, %v2414
  %v2453 = vpop.permute.xlu0 %2452
  %v2455 = vmul.f32 %v2418, %v2161
  %v2456 = vmul.f32 %v2423, %v2162
  %v2457 = vmul.f32 %v2428, %v2163
  %v2458 = vmul.f32 %v2433, %v2164
  %v2459 = vmul.f32 %v2438, %v2165
  %v2460 = vmul.f32 %v2443, %v2166
  %v2461 = vmul.f32 %v2448, %v2167
  %v2462 = vmul.f32 %v2453, %v2168
  %v2463 = vsel %vm258, %v2455, 0.0
  %v2464 = vsel %vm258, %v2456, 0.0
  %v2465 = vadd.f32 %v2463, %v2464
  %v2466 = vsel %vm258, %v2457, 0.0
  %v2467 = vadd.f32 %v2465, %v2466
  %v2468 = vsel %vm258, %v2458, 0.0
  %v2469 = vadd.f32 %v2467, %v2468
  %v2470 = vsel %vm258, %v2459, 0.0
  %v2471 = vadd.f32 %v2469, %v2470
  %v2472 = vsel %vm258, %v2460, 0.0
  %v2473 = vadd.f32 %v2471, %v2472
  %v2474 = vsel %vm258, %v2461, 0.0
  %v2475 = vadd.f32 %v2473, %v2474
  %v2476 = vsel %vm258, %v2462, 0.0
  %v2477 = vadd.f32 %v2475, %v2476
  %v2478 = vpack.c.bf16 %v2477, %v2477
  %v2479 = vld [vmem:[%s11] sm:$0xf]
  %v2480 = vld [vmem:[%s11 + $0x4] sm:$0xf]
  %v2481 = vld [vmem:[%s11 + $0x8] sm:$0xf]
  %v2482 = vld [vmem:[%s11 + $0xc] sm:$0xf]
  %v2483 = vld [vmem:[%s11 + $0x10] sm:$0xf]
  %v2484 = vld [vmem:[%s11 + $0x14] sm:$0xf]
  %v2485 = vld [vmem:[%s11 + $0x18] sm:$0xf]
  %v2486 = vld [vmem:[%s11 + $0x1c] sm:$0xf]
  %v2487 = vld [vmem:[%s12] sm:$0x1]
  %v2489 = vlaneseq
  %v2490 = vshrl.u32 %v2489, 7
  %v2491 = vsub.s32 0, %v2490
  %v2492 = vrot.slane %v2487, %v2491
  %v2502 = vunpack.c.l.b16 %v2479
  %v2503 = vunpack.c.l.b16 %v2480
  %v2504 = vunpack.c.l.b16 %v2481
  %v2505 = vunpack.c.l.b16 %v2482
  %v2506 = vunpack.c.l.b16 %v2483
  %v2507 = vunpack.c.l.b16 %v2484
  %v2508 = vunpack.c.l.b16 %v2485
  %v2509 = vunpack.c.l.b16 %v2486
  %v2510 = vpack.c.b16 %v2503, %v2502
  %v2511 = vpack.c.b16 %v2505, %v2504
  %v2512 = vpack.c.b16 %v2507, %v2506
  %v2513 = vpack.c.b16 %v2509, %v2508
  %v2519 = vsel %vm258, %v2478, 0
  %2521 = vmatprep.subr.bf16.mxu0 0
  %2522 = vmatpush1.bf16.msra.mxu0 %v2510
  %2523 = vmatprep.subr.bf16.mxu0 0
  %2524 = vmatpush1.bf16.msra.mxu0 %v2511
  %2525 = vmatprep.subr.bf16.mxu0 0
  %2526 = vmatpush1.bf16.msra.mxu0 %v2512
  %2527 = vmatprep.subr.bf16.mxu0 0
  %2528 = vmatpush1.bf16.msra.mxu0 %v2513
  %2529 = vmatprep.subr.bf16.mxu0 0
  %2530 = vmatpush1.bf16.msra.mxu0 0
  %2531 = vmatprep.subr.bf16.mxu0 0
  %2532 = vmatpush1.bf16.msra.mxu0 0
  %2533 = vmatprep.subr.bf16.mxu0 0
  %2534 = vmatpush1.bf16.msra.mxu0 0
  %2535 = vmatprep.subr.bf16.mxu0 0
  %2536 = vmatpush1.bf16.msra.mxu0 0
  %2537 = vmatprep.subr.bf16.mxu0 0
  %2538 = vmatpush1.bf16.msra.mxu0 0
  %2539 = vmatprep.subr.bf16.mxu0 0
  %2540 = vmatpush1.bf16.msra.mxu0 0
  %2541 = vmatprep.subr.bf16.mxu0 0
  %2542 = vmatpush1.bf16.msra.mxu0 0
  %2543 = vmatprep.subr.bf16.mxu0 0
  %2544 = vmatpush1.bf16.msra.mxu0 0
  %2545 = vmatprep.subr.bf16.mxu0 0
  %2546 = vmatpush1.bf16.msra.mxu0 0
  %2547 = vmatprep.subr.bf16.mxu0 0
  %2548 = vmatpush1.bf16.msra.mxu0 0
  %2549 = vmatprep.subr.bf16.mxu0 0
  %2550 = vmatpush1.bf16.msra.mxu0 0
  %2551 = vmatprep.subr.bf16.mxu0 0
  %2552 = vmatpush1.bf16.msra.mxu0 0
  %2553 = vmatprep.mubr.bf16.mxu0 0
  %2554 = vmatmul.mubr.bf16.gmra.mrb[0].mxu0 %v2519
  %v2555 = vpop.f32.mrb[0].mxu0
  %v2556 = vadd.f32 %v2492, %v2555
  %v2557 = vpop.f32.mrb[0].mxu0
  %v2558 = vpop.f32.mrb[0].mxu0
  %v2559 = vpop.f32.mrb[0].mxu0
  %2560 = vdwg.mxu0
  %v2561 = vmax.f32 %v2556, 0.0
  %v2562 = vpack.c.bf16 %v2561, %v2561
  %v2563 = vld [vmem:[%s13] sm:$0xf]
  %v2564 = vld [vmem:[%s13 + $0x4] sm:$0xf]
  %v2565 = vld [vmem:[%s13 + $0x8] sm:$0xf]
  %v2566 = vld [vmem:[%s13 + $0xc] sm:$0xf]
  %v2567 = vld [vmem:[%s14] sm:$0x1]
  %v2569 = vlaneseq
  %v2570 = vshrl.u32 %v2569, 7
  %v2571 = vsub.s32 0, %v2570
  %v2572 = vrot.slane %v2567, %v2571
  %v2578 = vunpack.c.l.b16 %v2563
  %v2579 = vunpack.c.l.b16 %v2564
  %v2580 = vunpack.c.l.b16 %v2565
  %v2581 = vunpack.c.l.b16 %v2566
  %v2582 = vpack.c.b16 %v2579, %v2578
  %v2583 = vpack.c.b16 %v2581, %v2580
  %v2587 = vsel %vm123, %v2562, 0
  %2589 = vmatprep.subr.bf16.mxu0 0
  %2590 = vmatpush1.bf16.msra.mxu0 %v2582
  %2591 = vmatprep.subr.bf16.mxu0 0
  %2592 = vmatpush1.bf16.msra.mxu0 %v2583
  %2593 = vmatprep.subr.bf16.mxu0 0
  %2594 = vmatpush1.bf16.msra.mxu0 0
  %2595 = vmatprep.subr.bf16.mxu0 0
  %2596 = vmatpush1.bf16.msra.mxu0 0
  %2597 = vmatprep.subr.bf16.mxu0 0
  %2598 = vmatpush1.bf16.msra.mxu0 0
  %2599 = vmatprep.subr.bf16.mxu0 0
  %2600 = vmatpush1.bf16.msra.mxu0 0
  %2601 = vmatprep.subr.bf16.mxu0 0
  %2602 = vmatpush1.bf16.msra.mxu0 0
  %2603 = vmatprep.subr.bf16.mxu0 0
  %2604 = vmatpush1.bf16.msra.mxu0 0
  %2605 = vmatprep.subr.bf16.mxu0 0
  %2606 = vmatpush1.bf16.msra.mxu0 0
  %2607 = vmatprep.subr.bf16.mxu0 0
  %2608 = vmatpush1.bf16.msra.mxu0 0
  %2609 = vmatprep.subr.bf16.mxu0 0
  %2610 = vmatpush1.bf16.msra.mxu0 0
  %2611 = vmatprep.subr.bf16.mxu0 0
  %2612 = vmatpush1.bf16.msra.mxu0 0
  %2613 = vmatprep.subr.bf16.mxu0 0
  %2614 = vmatpush1.bf16.msra.mxu0 0
  %2615 = vmatprep.subr.bf16.mxu0 0
  %2616 = vmatpush1.bf16.msra.mxu0 0
  %2617 = vmatprep.subr.bf16.mxu0 0
  %2618 = vmatpush1.bf16.msra.mxu0 0
  %2619 = vmatprep.subr.bf16.mxu0 0
  %2620 = vmatpush1.bf16.msra.mxu0 0
  %2621 = vmatprep.mubr.bf16.mxu0 0
  %2622 = vmatmul.mubr.bf16.gmra.mrb[0].mxu0 %v2587
  %v2623 = vpop.f32.mrb[0].mxu0
  %v2624 = vadd.f32 %v2572, %v2623
  %v2625 = vpop.f32.mrb[0].mxu0
  %v2626 = vpop.f32.mrb[0].mxu0
  %v2627 = vpop.f32.mrb[0].mxu0
  %2628 = vdwg.mxu0
  %v2629 = vmax.f32 %v2624, 0.0
  %v2630 = vpack.c.bf16 %v2629, %v2629
  %v2631 = vld [vmem:[%s15] sm:$0xf]
  %v2632 = vld [vmem:[%s15 + $0x4] sm:$0xf]
  %v2633 = vld [vmem:[%s16] sm:$0x1]
  %v2635 = vlaneseq
  %v2636 = vshrl.u32 %v2635, 7
  %v2637 = vsub.s32 0, %v2636
  %v2638 = vrot.slane %v2633, %v2637
  %v2642 = vunpack.c.l.b16 %v2631
  %v2643 = vunpack.c.l.b16 %v2632
  %v2644 = vpack.c.b16 %v2643, %v2642
  %vm2646 = vcmask 130048
  %v2648 = vsel %vm2646, %v2630, 0
  %2650 = vmatprep.subr.bf16.mxu0 0
  %2651 = vmatpush1.bf16.msra.mxu0 %v2644
  %2652 = vmatprep.subr.bf16.mxu0 0
  %2653 = vmatpush1.bf16.msra.mxu0 0
  %2654 = vmatprep.subr.bf16.mxu0 0
  %2655 = vmatpush1.bf16.msra.mxu0 0
  %2656 = vmatprep.subr.bf16.mxu0 0
  %2657 = vmatpush1.bf16.msra.mxu0 0
  %2658 = vmatprep.subr.bf16.mxu0 0
  %2659 = vmatpush1.bf16.msra.mxu0 0
  %2660 = vmatprep.subr.bf16.mxu0 0
  %2661 = vmatpush1.bf16.msra.mxu0 0
  %2662 = vmatprep.subr.bf16.mxu0 0
  %2663 = vmatpush1.bf16.msra.mxu0 0
  %2664 = vmatprep.subr.bf16.mxu0 0
  %2665 = vmatpush1.bf16.msra.mxu0 0
  %2666 = vmatprep.subr.bf16.mxu0 0
  %2667 = vmatpush1.bf16.msra.mxu0 0
  %2668 = vmatprep.subr.bf16.mxu0 0
  %2669 = vmatpush1.bf16.msra.mxu0 0
  %2670 = vmatprep.subr.bf16.mxu0 0
  %2671 = vmatpush1.bf16.msra.mxu0 0
  %2672 = vmatprep.subr.bf16.mxu0 0
  %2673 = vmatpush1.bf16.msra.mxu0 0
  %2674 = vmatprep.subr.bf16.mxu0 0
  %2675 = vmatpush1.bf16.msra.mxu0 0
  %2676 = vmatprep.subr.bf16.mxu0 0
  %2677 = vmatpush1.bf16.msra.mxu0 0
  %2678 = vmatprep.subr.bf16.mxu0 0
  %2679 = vmatpush1.bf16.msra.mxu0 0
  %2680 = vmatprep.subr.bf16.mxu0 0
  %2681 = vmatpush1.bf16.msra.mxu0 0
  %2682 = vmatprep.mubr.bf16.mxu0 0
  %2683 = vmatmul.mubr.bf16.gmra.mrb[0].mxu0 %v2648
  %v2684 = vpop.f32.mrb[0].mxu0
  %v2685 = vadd.f32 %v2638, %v2684
  %v2686 = vpop.f32.mrb[0].mxu0
  %v2687 = vpop.f32.mrb[0].mxu0
  %v2688 = vpop.f32.mrb[0].mxu0
  %2689 = vdwg.mxu0
  %2690 = vst [vmem:[%s17] sm:$0xff] %v2685
  // Predicated region
  $region70: #{forward.1} parent=0 // pred_check
    _
  $region71: #{forward.1} parent=0 // pred_check_branch
    %2692 = sbr.rel (0) target = $region73
  $region72: #{forward.1} parent=0 // pred_region
    _
  $region73: #{forward.1} parent=0 // pred_fallthru
    _
  // Predicated region
  $region74: #{forward.1} parent=0 // pred_check
    _
  $region75: #{forward.1} parent=0 // pred_check_branch
    %2694 = sbr.rel (0) target = $region77
  $region76: #{forward.1} parent=0 // pred_region
    _
  $region77: #{forward.1} parent=0 // pred_fallthru
    _

</llo_original>
